<compile_context>
chip_gen: v7x
topology: tpu7x:2x2x1
jax: 0.10.0
libtpu: 0.0.40
codegen_flags: <defaults>
</compile_context>

<pallas_src>
import jax
import jax.numpy as jnp
from jax.experimental import pallas as pl
from jax.experimental.pallas import tpu as pltpu

_LANE = 128
_EPS = 1e-5


def _round_up(x, m):
    return (x + m - 1) // m * m


# ----------------------------------------------------------------------------
# per-generation knobs
# ----------------------------------------------------------------------------
def _tpu_vmem_capacity():
    try:
        return int(pltpu.get_tpu_info().vmem_capacity_bytes)
    except Exception:
        return 64 << 20  # conservative (v7x-sized) fallback


_VMEM_CAP = _tpu_vmem_capacity()
if _VMEM_CAP >= (100 << 20):        # v5e / v6e: 128 MiB physical VMEM
    _ROW_TARGET = 1024
    _VMEM_CLAMP = 96 << 20
else:                               # v7x (64 MiB) or unknown
    _ROW_TARGET = 512
    _VMEM_CLAMP = 40 << 20


def _vmem_limit(bytes_needed):
    return int(min(max(bytes_needed + (2 << 20), 4 << 20), _VMEM_CLAMP))


def _detect_const_pipeline_mode():
    """Probe pipeline_mode=pl.Buffered(1) (single-buffer constant operands)."""
    try:
        mode = pl.Buffered(1)

        def k(x_ref, w_ref, o_ref):
            o_ref[...] = x_ref[...] + w_ref[...]

        f = pl.pallas_call(
            k,
            out_shape=jax.ShapeDtypeStruct((8, 128), jnp.float32),
            grid=(2,),
            in_specs=[pl.BlockSpec((8, 128), lambda i: (0, 0)),
                      pl.BlockSpec((8, 128), lambda i: (0, 0),
                                   pipeline_mode=mode)],
            out_specs=pl.BlockSpec((8, 128), lambda i: (0, 0)))
        jax.block_until_ready(f(jnp.ones((8, 128), jnp.float32),
                                jnp.ones((8, 128), jnp.float32)))
        return mode
    except Exception:
        return None


_CONST_PIPE = _detect_const_pipeline_mode()


def _const_spec(shape, index_map):
    """BlockSpec for an operand whose block never changes across the grid."""
    if _CONST_PIPE is None:
        return pl.BlockSpec(shape, index_map)
    return pl.BlockSpec(shape, index_map, pipeline_mode=_CONST_PIPE)


# ----------------------------------------------------------------------------
# Pallas kernels
# ----------------------------------------------------------------------------
def _matmul_bias_kernel(x_ref, w_ref, b_ref, o_ref):
    """o_tile = x_tile @ w + b (bf16 operands, f32 accumulation, bf16 store)."""
    acc = jnp.dot(x_ref[...], w_ref[...], preferred_element_type=jnp.float32)
    o_ref[...] = (acc + b_ref[...]).astype(o_ref.dtype)


def _make_conv_kernel(th, w_al, n_pad, use_mask):
    """Fused 3x3 conv (3 dy-shifted dots over a resident padded image) + bias +
    per-image batch-stat (sum / sum-of-squares) accumulation over row bands."""
    rows = th * w_al

    def kernel(*refs):
        if use_mask:
            x_ref, w_ref, b_ref, mask_ref = refs[:4]
            y_ref, sum_ref, sq_ref = refs[4:]
        else:
            x_ref, w_ref, b_ref = refs[:3]
            y_ref, sum_ref, sq_ref = refs[3:]

        hb = pl.program_id(1)

        acc = jnp.zeros((rows, n_pad), jnp.float32)
        for dy in range(3):
            start = pl.multiple_of((hb * th + dy) * w_al, 16)
            p = x_ref[pl.ds(start, rows), :]                    # (rows, K)
            acc = acc + jnp.dot(p, w_ref[dy],
                                preferred_element_type=jnp.float32)

        # Conv output (bias added) in bf16; BN affine + ReLU applied outside
        # (fused by XLA into the next stage's input build).
        y_ref[...] = (acc + b_ref[...]).astype(y_ref.dtype)

        # Batch stats on the *pre-bias* accumulator: alignment-padded rows /
        # lanes have acc == 0, except where padding touches real data, in
        # which case a precomputed valid-pixel mask zeroes them.
        if use_mask:
            am = acc * mask_ref[...]
            s = jnp.sum(am, axis=0, keepdims=True)
            q = jnp.sum(am * acc, axis=0, keepdims=True)
        else:
            s = jnp.sum(acc, axis=0, keepdims=True)
            q = jnp.sum(acc * acc, axis=0, keepdims=True)

        @pl.when(hb == 0)
        def _():
            sum_ref[...] = jnp.zeros_like(sum_ref)
            sq_ref[...] = jnp.zeros_like(sq_ref)

        sum_ref[...] += s
        sq_ref[...] += q

    return kernel


# ----------------------------------------------------------------------------
# pallas_call wrappers
# ----------------------------------------------------------------------------
def _matmul_bias(x, w, b):
    """Row-tiled o = x @ w + b, lane-padded (128) output columns, bf16 output."""
    m, k = x.shape
    n = w.shape[1]
    n_pad = _round_up(n, _LANE)
    tm = min(_ROW_TARGET, _round_up(m, 8))
    m_pad = _round_up(m, tm)
    grid_m = m_pad // tm

    x_p = jnp.pad(x.astype(jnp.bfloat16), ((0, m_pad - m), (0, 0)))
    w_p = jnp.pad(w, ((0, 0), (0, n_pad - n))).astype(jnp.bfloat16)
    b_p = jnp.pad(b.reshape(1, -1), ((0, 0), (0, n_pad - n))).astype(jnp.float32)

    vmem_need = (2 * tm * _round_up(k, _LANE) * 2 + 2 * tm * n_pad * 2
                 + _round_up(k, 8) * n_pad * 2 + n_pad * 4)
    y = pl.pallas_call(
        _matmul_bias_kernel,
        out_shape=jax.ShapeDtypeStruct((m_pad, n_pad), jnp.bfloat16),
        grid=(grid_m,),
        in_specs=[pl.BlockSpec((tm, k), lambda i: (i, 0)),
                  _const_spec((k, n_pad), lambda i: (0, 0)),
                  _const_spec((1, n_pad), lambda i: (0, 0))],
        out_specs=pl.BlockSpec((tm, n_pad), lambda i: (i, 0)),
        compiler_params=pltpu.CompilerParams(
            dimension_semantics=("parallel",),
            vmem_limit_bytes=_vmem_limit(vmem_need)),
        cost_estimate=pl.CostEstimate(
            flops=2 * m_pad * k * n_pad, transcendentals=0,
            bytes_accessed=m_pad * k * 2 + k * n_pad * 2 + m_pad * n_pad * 2),
    )(x_p, w_p, b_p)
    return y[:m, :n]


def _conv3x3_bn_relu(inputs_nhwc, w_oihw, b, gamma, beta):
    """3x3/pad=1 conv over channel-concat(inputs) + BatchNorm(batch stats) + ReLU.

    The channel concat and the 3 column (dx) shifts are baked into the channel
    axis of a single flattened input; dy shifts happen in-kernel via pl.ds; the
    BN affine + ReLU runs as JAX fused into the next stage's input build.
    """
    n, h, w = inputs_nhwc[0].shape[:3]
    out_ch = w_oihw.shape[0]
    n_pad = _round_up(out_ch, _LANE)

    w_al = _round_up(w, 16)                       # sublane-aligned row width
    th = max(1, min(h, _ROW_TARGET // w_al))      # output rows per band
    h_al = _round_up(h, th)
    num_hb = h_al // th
    rows = th * w_al
    use_mask = (h_al > h) or (w_al > w)

    # Column-shifted + channel-concatenated input: (N, (h_al+2)*w_al, K),
    # K = 3 * sum(C_t), channel order = (input t, dx, c).
    cols, c_sizes = [], []
    for x in inputs_nhwc:
        c_sizes.append(x.shape[-1])
        xp = jnp.pad(x.astype(jnp.bfloat16),
                     ((0, 0), (1, h_al - h + 1), (1, w_al - w + 1), (0, 0)))
        for dx in range(3):
            cols.append(xp[:, :, dx:dx + w_al, :])
    xcat = jnp.concatenate(cols, axis=-1)
    k_dim = xcat.shape[-1]
    x_flat = xcat.reshape(n, (h_al + 2) * w_al, k_dim)

    # Weights: (3, K, n_pad), rows ordered (t, dx, cin) to match x_flat.
    mats = []
    for dy in range(3):
        blocks = []
        c_off = 0
        for c_t in c_sizes:
            wt = w_oihw[:, c_off:c_off + c_t, dy, :]            # (out, c_t, 3)
            blocks.append(jnp.transpose(wt, (2, 1, 0)).reshape(3 * c_t, out_ch))
            c_off += c_t
        mats.append(jnp.concatenate(blocks, axis=0))            # (K, out)
    w_mat = jnp.pad(jnp.stack(mats, 0),
                    ((0, 0), (0, 0), (0, n_pad - out_ch))).astype(jnp.bfloat16)
    b_p = jnp.pad(b.reshape(1, -1),
                  ((0, 0), (0, n_pad - out_ch))).astype(jnp.float32)

    kernel = _make_conv_kernel(th, w_al, n_pad, use_mask)
    in_specs = [
        pl.BlockSpec((None, (h_al + 2) * w_al, k_dim),
                     lambda ni, hi: (ni, 0, 0)),                 # resident image
        _const_spec((3, k_dim, n_pad), lambda ni, hi: (0, 0, 0)),
        _const_spec((1, n_pad), lambda ni, hi: (0, 0)),
    ]
    operands = [x_flat, w_mat, b_p]
    if use_mask:
        hw_mask = ((jnp.arange(h_al)[:, None] < h) &
                   (jnp.arange(w_al)[None, :] < w)).astype(jnp.float32)
        operands.append(hw_mask.reshape(h_al * w_al, 1))
        in_specs.append(pl.BlockSpec((rows, 1), lambda ni, hi: (hi, 0)))

    x_img_bytes = (h_al + 2) * w_al * _round_up(k_dim, _LANE) * 2
    vmem_need = (2 * x_img_bytes + 2 * rows * n_pad * 2
                 + 3 * _round_up(k_dim, 8) * n_pad * 2
                 + rows * n_pad * 4 + 2 * 8 * n_pad * 4)

    y, ysum, ysq = pl.pallas_call(
        kernel,
        out_shape=(jax.ShapeDtypeStruct((n, h_al * w_al, n_pad), jnp.bfloat16),
                   jax.ShapeDtypeStruct((n, 8, n_pad), jnp.float32),
                   jax.ShapeDtypeStruct((n, 8, n_pad), jnp.float32)),
        grid=(n, num_hb),
        in_specs=in_specs,
        out_specs=(pl.BlockSpec((None, rows, n_pad), lambda ni, hi: (ni, hi, 0)),
                   pl.BlockSpec((None, 8, n_pad), lambda ni, hi: (ni, 0, 0)),
                   pl.BlockSpec((None, 8, n_pad), lambda ni, hi: (ni, 0, 0))),
        compiler_params=pltpu.CompilerParams(
            dimension_semantics=("parallel", "arbitrary"),
            vmem_limit_bytes=_vmem_limit(vmem_need)),
        cost_estimate=pl.CostEstimate(
            flops=2 * 3 * n * h_al * w_al * k_dim * n_pad, transcendentals=0,
            bytes_accessed=(n * (h_al + 2) * w_al * k_dim * 2
                            + n * h_al * w_al * n_pad * 2
                            + 3 * k_dim * n_pad * 2)),
    )(*operands)

    # PyTorch BatchNorm2d training-mode batch stats (biased var, eps=1e-5),
    # computed from the pre-bias accumulator (shift-invariant variance).
    count = jnp.float32(n * h * w)
    s = ysum[:, 0, :out_ch].sum(axis=0) / count
    q = ysq[:, 0, :out_ch].sum(axis=0) / count
    mean = s + b.astype(jnp.float32)
    var = q - s * s
    scale = gamma.astype(jnp.float32) * jax.lax.rsqrt(var + _EPS)
    shift = beta.astype(jnp.float32) - mean * scale

    # BN affine + ReLU in plain JAX: XLA fuses it into the next conv's
    # shifted-input build / the final transpose (no extra HBM round trip).
    yr = y.reshape(n, h_al, w_al, n_pad)[:, :h, :w, :out_ch]
    act = jnp.maximum(yr.astype(jnp.float32) * scale + shift, 0.0)
    return act.astype(jnp.bfloat16)


def _conv_transpose_2x2_s2(x_nhwc, w_iohw, b):
    """ConvTranspose2d(k=2, s=2): out[n, 2i+a, 2j+c, :] = x[n,i,j,:] @ W[:, :, a, c]."""
    n, h, w, cin = x_nhwc.shape
    cout = w_iohw.shape[1]
    x_flat = x_nhwc.reshape(n * h * w, cin)
    wmat = jnp.transpose(w_iohw, (0, 2, 3, 1)).reshape(cin, 4 * cout)  # (a,c,cout)
    bvec = jnp.tile(b, 4)
    y = _matmul_bias(x_flat, wmat, bvec)                  # (N*H*W, 4*cout) bf16
    y = y.reshape(n, h, w, 2, 2, cout)
    y = jnp.transpose(y, (0, 1, 3, 2, 4, 5))              # (n, h, a, w, c, cout)
    return y.reshape(n, 2 * h, 2 * w, cout)               # stays bf16


# ----------------------------------------------------------------------------
# UpLayer params + forward
# ----------------------------------------------------------------------------
def init_params(key, in_ch, out_ch):
    ks = jax.random.split(key, 6)
    return {
        # ConvTranspose2d(in_ch, out_ch, k=2, s=2): weight (in_ch, out_ch, 2, 2)
        "up_w": 0.1 * jax.random.normal(ks[0], (in_ch, out_ch, 2, 2), jnp.float32),
        "up_b": 0.05 * jax.random.normal(ks[1], (out_ch,), jnp.float32),
        # Conv2d(in_ch, out_ch, 3, pad=1)
        "c1_w": 0.1 * jax.random.normal(ks[2], (out_ch, in_ch, 3, 3), jnp.float32),
        "c1_b": 0.05 * jax.random.normal(ks[3], (out_ch,), jnp.float32),
        "bn1_g": jnp.ones((out_ch,), jnp.float32),
        "bn1_b": jnp.zeros((out_ch,), jnp.float32),
        # Conv2d(out_ch, out_ch, 3, pad=1)
        "c2_w": 0.1 * jax.random.normal(ks[4], (out_ch, out_ch, 3, 3), jnp.float32),
        "c2_b": 0.05 * jax.random.normal(ks[5], (out_ch,), jnp.float32),
        "bn2_g": jnp.ones((out_ch,), jnp.float32),
        "bn2_b": jnp.zeros((out_ch,), jnp.float32),
    }


@jax.jit
def up_layer_forward(params, x1_nchw, x2_nchw):
    # NCHW -> NHWC
    x1 = jnp.transpose(x1_nchw, (0, 2, 3, 1))
    x2 = jnp.transpose(x2_nchw, (0, 2, 3, 1))

    # Up: transposed-conv upsample of x2 (bf16 output + bf16 plumbing)
    x2u = _conv_transpose_2x2_s2(x2, params["up_w"], params["up_b"])

    # F.pad to match x1 spatial size (zero with the test shapes; kept for parity)
    diff_y = x1.shape[1] - x2u.shape[1]
    diff_x = x1.shape[2] - x2u.shape[2]
    x2u = jnp.pad(
        x2u,
        ((0, 0),
         (diff_y // 2, diff_y - diff_y // 2),
         (diff_x // 2, diff_x - diff_x // 2),
         (0, 0)))

    # DoubleConv: (conv3x3 + BN + ReLU) x 2; torch.cat([x2_up, x1], dim=1) is
    # fused into the first conv's shifted-channel input build.
    a = _conv3x3_bn_relu([x2u, x1], params["c1_w"], params["c1_b"],
                         params["bn1_g"], params["bn1_b"])
    a = _conv3x3_bn_relu([a], params["c2_w"], params["c2_b"],
                         params["bn2_g"], params["bn2_b"])

    # NHWC -> NCHW, f32 output
    return jnp.transpose(a.astype(jnp.float32), (0, 3, 1, 2))


if __name__ == "__main__":
    in_ch, out_ch = 8, 4
    N, H, W = 2, 16, 16

    key = jax.random.PRNGKey(0)
    k_p, k_x1, k_x2 = jax.random.split(key, 3)

    params = init_params(k_p, in_ch, out_ch)
    # x1: skip connection with out_ch channels at full resolution
    x1 = jax.random.normal(k_x1, (N, out_ch, H, W), jnp.float32)
    # x2: deeper feature map with in_ch channels at half resolution
    x2 = jax.random.normal(k_x2, (N, in_ch, H // 2, W // 2), jnp.float32)

    out = up_layer_forward(params, x1, x2)
    jax.block_until_ready(out)
    assert out.shape == (N, out_ch, H, W), out.shape
    assert bool(jnp.isfinite(out).all())
    print("KERNEL_OK")
</pallas_src>

<mosaic_0001>
module attributes {stable_mosaic.version = 11 : i64} {
  func.func @k(%arg0: i32, %arg1: memref<8x128xf32, #tpu.memory_space<vmem>>, %arg2: memref<8x128xf32, #tpu.memory_space<vmem>>, %arg3: memref<8x128xf32, #tpu.memory_space<vmem>>) attributes {dimension_semantics = [#tpu.dimension_semantics<arbitrary>], iteration_bounds = array<i64: 2>, scalar_prefetch = 0 : i64, scratch_operands = 0 : i64, tpu.core_type = #tpu.core_type<tc>, window_params = [{pipeline_mode = #tpu.pipeline_mode<synchronous>, transform_indices = @transform_0, window_bounds = array<i64: 8, 128>}, {pipeline_mode = #tpu.pipeline_mode<synchronous>, transform_indices = @transform_1, window_bounds = array<i64: 8, 128>}, {pipeline_mode = #tpu.pipeline_mode<synchronous>, transform_indices = @transform_2, window_bounds = array<i64: 8, 128>}]} {
    %c0 = arith.constant 0 : index
    %c0_0 = arith.constant 0 : index
    %0 = vector.load %arg1[%c0, %c0_0] : memref<8x128xf32, #tpu.memory_space<vmem>>, vector<8x128xf32>
    %c0_1 = arith.constant 0 : index
    %c0_2 = arith.constant 0 : index
    %1 = vector.load %arg2[%c0_1, %c0_2] : memref<8x128xf32, #tpu.memory_space<vmem>>, vector<8x128xf32>
    %2 = arith.addf %0, %1 : vector<8x128xf32>
    %c0_3 = arith.constant 0 : index
    %c0_4 = arith.constant 0 : index
    %3 = vector.load %arg3[%c0_3, %c0_4] : memref<8x128xf32, #tpu.memory_space<vmem>>, vector<8x128xf32>
    tpu.vector_store %arg3[%c0_3, %c0_4], %2 {strides = array<i32>} : memref<8x128xf32, #tpu.memory_space<vmem>>, vector<8x128xf32>,
    return
  }
  func.func @transform_0(%arg0: i32) -> (i32, i32) {
    %c0_i32 = arith.constant 0 : i32
    %c0_i32_0 = arith.constant 0 : i32
    %c0_i32_1 = arith.constant 0 : i32
    return %c0_i32, %c0_i32_0 : i32, i32
  }
  func.func @transform_1(%arg0: i32) -> (i32, i32) {
    %c0_i32 = arith.constant 0 : i32
    %c0_i32_0 = arith.constant 0 : i32
    %c0_i32_1 = arith.constant 0 : i32
    return %c0_i32, %c0_i32_0 : i32, i32
  }
  func.func @transform_2(%arg0: i32) -> (i32, i32) {
    %c0_i32 = arith.constant 0 : i32
    %c0_i32_0 = arith.constant 0 : i32
    %c0_i32_1 = arith.constant 0 : i32
    return %c0_i32, %c0_i32_0 : i32, i32
  }
}

module attributes {stable_mosaic.version = 11 : i64} {
  func.func @_matmul_bias_kernel(%arg0: i32, %arg1: memref<128x8xbf16, #tpu.memory_space<vmem>>, %arg2: memref<8x128xbf16, #tpu.memory_space<vmem>>, %arg3: memref<1x128xf32, #tpu.memory_space<vmem>>, %arg4: memref<128x128xbf16, #tpu.memory_space<vmem>>) attributes {dimension_semantics = [#tpu.dimension_semantics<parallel>], iteration_bounds = array<i64: 1>, scalar_prefetch = 0 : i64, scratch_operands = 0 : i64, tpu.core_type = #tpu.core_type<tc>, window_params = [{transform_indices = @transform_0, window_bounds = array<i64: 128, 8>}, {pipeline_mode = #tpu.pipeline_mode<synchronous>, transform_indices = @transform_1, window_bounds = array<i64: 8, 128>}, {pipeline_mode = #tpu.pipeline_mode<synchronous>, transform_indices = @transform_2, window_bounds = array<i64: 1, 128>}, {transform_indices = @transform_3, window_bounds = array<i64: 128, 128>}]} {
    %c0 = arith.constant 0 : index
    %c0_0 = arith.constant 0 : index
    %0 = vector.load %arg1[%c0, %c0_0] : memref<128x8xbf16, #tpu.memory_space<vmem>>, vector<128x8xbf16>
    %c0_1 = arith.constant 0 : index
    %c0_2 = arith.constant 0 : index
    %1 = vector.load %arg2[%c0_1, %c0_2] : memref<8x128xbf16, #tpu.memory_space<vmem>>, vector<8x128xbf16>
    %cst = arith.constant dense<0.000000e+00> : vector<128x128xf32>
    %2 = tpu.matmul %0, %1, %cst {dimension_numbers = #tpu.dot_dimension_numbers<[1], [0], [0], [1], [0, 0, 1, 1], [], []>} : vector<128x8xbf16>, vector<8x128xbf16>, vector<128x128xf32> -> vector<128x128xf32>
    %c0_3 = arith.constant 0 : index
    %c0_4 = arith.constant 0 : index
    %3 = vector.load %arg3[%c0_3, %c0_4] : memref<1x128xf32, #tpu.memory_space<vmem>>, vector<1x128xf32>
    %4 = vector.broadcast %3 : vector<1x128xf32> to vector<128x128xf32>
    %5 = arith.addf %2, %4 : vector<128x128xf32>
    %6 = arith.truncf %5 : vector<128x128xf32> to vector<128x128xbf16>
    %c0_5 = arith.constant 0 : index
    %c0_6 = arith.constant 0 : index
    %7 = vector.load %arg4[%c0_5, %c0_6] : memref<128x128xbf16, #tpu.memory_space<vmem>>, vector<128x128xbf16>
    tpu.vector_store %arg4[%c0_5, %c0_6], %6 {strides = array<i32>} : memref<128x128xbf16, #tpu.memory_space<vmem>>, vector<128x128xbf16>,
    return
  }
  func.func @transform_0(%arg0: i32) -> (i32, i32) {
    %c0_i32 = arith.constant 0 : i32
    %c0_i32_0 = arith.constant 0 : i32
    return %arg0, %c0_i32 : i32, i32
  }
  func.func @transform_1(%arg0: i32) -> (i32, i32) {
    %c0_i32 = arith.constant 0 : i32
    %c0_i32_0 = arith.constant 0 : i32
    %c0_i32_1 = arith.constant 0 : i32
    return %c0_i32, %c0_i32_0 : i32, i32
  }
  func.func @transform_2(%arg0: i32) -> (i32, i32) {
    %c0_i32 = arith.constant 0 : i32
    %c0_i32_0 = arith.constant 0 : i32
    %c0_i32_1 = arith.constant 0 : i32
    return %c0_i32, %c0_i32_0 : i32, i32
  }
  func.func @transform_3(%arg0: i32) -> (i32, i32) {
    %c0_i32 = arith.constant 0 : i32
    %c0_i32_0 = arith.constant 0 : i32
    return %arg0, %c0_i32 : i32, i32
  }
}

module attributes {stable_mosaic.version = 11 : i64} {
  func.func @kernel(%arg0: i32, %arg1: i32, %arg2: memref<1x288x24xbf16, #tpu.memory_space<vmem>>, %arg3: memref<3x24x128xbf16, #tpu.memory_space<vmem>>, %arg4: memref<1x128xf32, #tpu.memory_space<vmem>>, %arg5: memref<1x256x128xbf16, #tpu.memory_space<vmem>>, %arg6: memref<1x8x128xf32, #tpu.memory_space<vmem>>, %arg7: memref<1x8x128xf32, #tpu.memory_space<vmem>>) attributes {dimension_semantics = [#tpu.dimension_semantics<parallel>, #tpu.dimension_semantics<arbitrary>], iteration_bounds = array<i64: 2, 1>, scalar_prefetch = 0 : i64, scratch_operands = 0 : i64, tpu.core_type = #tpu.core_type<tc>, window_params = [{transform_indices = @transform_0, window_bounds = array<i64: 1, 288, 24>}, {pipeline_mode = #tpu.pipeline_mode<synchronous>, transform_indices = @transform_1, window_bounds = array<i64: 3, 24, 128>}, {pipeline_mode = #tpu.pipeline_mode<synchronous>, transform_indices = @transform_2, window_bounds = array<i64: 1, 128>}, {transform_indices = @transform_3, window_bounds = array<i64: 1, 256, 128>}, {transform_indices = @transform_4, window_bounds = array<i64: 1, 8, 128>}, {transform_indices = @transform_5, window_bounds = array<i64: 1, 8, 128>}]} {
    %cst = arith.constant 0.000000e+00 : f32
    %0 = vector.broadcast %cst : f32 to vector<256x128xf32>
    %c16_i32 = arith.constant 16 : i32
    %1 = arith.muli %arg1, %c16_i32 : i32
    %c0_i32 = arith.constant 0 : i32
    %2 = arith.addi %1, %c0_i32 : i32
    %c16_i32_0 = arith.constant 16 : i32
    %3 = arith.muli %2, %c16_i32_0 : i32
    %4 = tpu.assume_multiple %3, 16 : i32
    %c0 = arith.constant 0 : index
    %5 = arith.index_cast %4 : i32 to index
    %c0_1 = arith.constant 0 : index
    %6 = vector.load %arg2[%c0, %5, %c0_1] : memref<1x288x24xbf16, #tpu.memory_space<vmem>>, vector<1x256x24xbf16>
    %7 = vector.shape_cast %6 : vector<1x256x24xbf16> to vector<256x24xbf16>
    %c0_2 = arith.constant 0 : index
    %c0_3 = arith.constant 0 : index
    %c0_4 = arith.constant 0 : index
    %8 = vector.load %arg3[%c0_2, %c0_3, %c0_4] : memref<3x24x128xbf16, #tpu.memory_space<vmem>>, vector<1x24x128xbf16>
    %9 = vector.shape_cast %8 : vector<1x24x128xbf16> to vector<24x128xbf16>
    %cst_5 = arith.constant dense<0.000000e+00> : vector<256x128xf32>
    %10 = tpu.matmul %7, %9, %cst_5 {dimension_numbers = #tpu.dot_dimension_numbers<[1], [0], [0], [1], [0, 0, 1, 1], [], []>} : vector<256x24xbf16>, vector<24x128xbf16>, vector<256x128xf32> -> vector<256x128xf32>
    %11 = arith.addf %0, %10 : vector<256x128xf32>
    %c16_i32_6 = arith.constant 16 : i32
    %12 = arith.muli %arg1, %c16_i32_6 : i32
    %c1_i32 = arith.constant 1 : i32
    %13 = arith.addi %12, %c1_i32 : i32
    %c16_i32_7 = arith.constant 16 : i32
    %14 = arith.muli %13, %c16_i32_7 : i32
    %15 = tpu.assume_multiple %14, 16 : i32
    %c0_8 = arith.constant 0 : index
    %16 = arith.index_cast %15 : i32 to index
    %c0_9 = arith.constant 0 : index
    %17 = vector.load %arg2[%c0_8, %16, %c0_9] : memref<1x288x24xbf16, #tpu.memory_space<vmem>>, vector<1x256x24xbf16>
    %18 = vector.shape_cast %17 : vector<1x256x24xbf16> to vector<256x24xbf16>
    %c1 = arith.constant 1 : index
    %c0_10 = arith.constant 0 : index
    %c0_11 = arith.constant 0 : index
    %19 = vector.load %arg3[%c1, %c0_10, %c0_11] : memref<3x24x128xbf16, #tpu.memory_space<vmem>>, vector<1x24x128xbf16>
    %20 = vector.shape_cast %19 : vector<1x24x128xbf16> to vector<24x128xbf16>
    %cst_12 = arith.constant dense<0.000000e+00> : vector<256x128xf32>
    %21 = tpu.matmul %18, %20, %cst_12 {dimension_numbers = #tpu.dot_dimension_numbers<[1], [0], [0], [1], [0, 0, 1, 1], [], []>} : vector<256x24xbf16>, vector<24x128xbf16>, vector<256x128xf32> -> vector<256x128xf32>
    %22 = arith.addf %11, %21 : vector<256x128xf32>
    %c16_i32_13 = arith.constant 16 : i32
    %23 = arith.muli %arg1, %c16_i32_13 : i32
    %c2_i32 = arith.constant 2 : i32
    %24 = arith.addi %23, %c2_i32 : i32
    %c16_i32_14 = arith.constant 16 : i32
    %25 = arith.muli %24, %c16_i32_14 : i32
    %26 = tpu.assume_multiple %25, 16 : i32
    %c0_15 = arith.constant 0 : index
    %27 = arith.index_cast %26 : i32 to index
    %c0_16 = arith.constant 0 : index
    %28 = vector.load %arg2[%c0_15, %27, %c0_16] : memref<1x288x24xbf16, #tpu.memory_space<vmem>>, vector<1x256x24xbf16>
    %29 = vector.shape_cast %28 : vector<1x256x24xbf16> to vector<256x24xbf16>
    %c2 = arith.constant 2 : index
    %c0_17 = arith.constant 0 : index
    %c0_18 = arith.constant 0 : index
    %30 = vector.load %arg3[%c2, %c0_17, %c0_18] : memref<3x24x128xbf16, #tpu.memory_space<vmem>>, vector<1x24x128xbf16>
    %31 = vector.shape_cast %30 : vector<1x24x128xbf16> to vector<24x128xbf16>
    %cst_19 = arith.constant dense<0.000000e+00> : vector<256x128xf32>
    %32 = tpu.matmul %29, %31, %cst_19 {dimension_numbers = #tpu.dot_dimension_numbers<[1], [0], [0], [1], [0, 0, 1, 1], [], []>} : vector<256x24xbf16>, vector<24x128xbf16>, vector<256x128xf32> -> vector<256x128xf32>
    %33 = arith.addf %22, %32 : vector<256x128xf32>
    %c0_20 = arith.constant 0 : index
    %c0_21 = arith.constant 0 : index
    %34 = vector.load %arg4[%c0_20, %c0_21] : memref<1x128xf32, #tpu.memory_space<vmem>>, vector<1x128xf32>
    %35 = vector.broadcast %34 : vector<1x128xf32> to vector<256x128xf32>
    %36 = arith.addf %33, %35 : vector<256x128xf32>
    %37 = arith.truncf %36 : vector<256x128xf32> to vector<256x128xbf16>
    %c0_22 = arith.constant 0 : index
    %c0_23 = arith.constant 0 : index
    %c0_24 = arith.constant 0 : index
    %38 = vector.load %arg5[%c0_22, %c0_23, %c0_24] : memref<1x256x128xbf16, #tpu.memory_space<vmem>>, vector<1x256x128xbf16>
    %39 = vector.shape_cast %38 : vector<1x256x128xbf16> to vector<256x128xbf16>
    %40 = vector.shape_cast %37 : vector<256x128xbf16> to vector<1x256x128xbf16>
    tpu.vector_store %arg5[%c0_22, %c0_23, %c0_24], %40 {strides = array<i32>} : memref<1x256x128xbf16, #tpu.memory_space<vmem>>, vector<1x256x128xbf16>,
    %cst_25 = arith.constant dense<0.000000e+00> : vector<128xf32>
    %41 = vector.multi_reduction <add>, %33, %cst_25 [0] : vector<256x128xf32> to vector<128xf32>
    %42 = vector.shape_cast %41 : vector<128xf32> to vector<1x128xf32>
    %43 = arith.mulf %33, %33 : vector<256x128xf32>
    %cst_26 = arith.constant dense<0.000000e+00> : vector<128xf32>
    %44 = vector.multi_reduction <add>, %43, %cst_26 [0] : vector<256x128xf32> to vector<128xf32>
    %45 = vector.shape_cast %44 : vector<128xf32> to vector<1x128xf32>
    %c0_i32_27 = arith.constant 0 : i32
    %46 = arith.cmpi eq, %arg1, %c0_i32_27 : i32
    %47 = arith.extui %46 : i1 to i32
    %c0_i32_28 = arith.constant 0 : i32
    %48 = arith.cmpi ne, %47, %c0_i32_28 : i32
    scf.if %48 {
      %cst_41 = arith.constant 0.000000e+00 : f32
      %63 = vector.broadcast %cst_41 : f32 to vector<8x128xf32>
      %c0_42 = arith.constant 0 : index
      %c0_43 = arith.constant 0 : index
      %c0_44 = arith.constant 0 : index
      %64 = vector.load %arg6[%c0_42, %c0_43, %c0_44] : memref<1x8x128xf32, #tpu.memory_space<vmem>>, vector<1x8x128xf32>
      %65 = vector.shape_cast %64 : vector<1x8x128xf32> to vector<8x128xf32>
      %66 = vector.shape_cast %63 : vector<8x128xf32> to vector<1x8x128xf32>
      tpu.vector_store %arg6[%c0_42, %c0_43, %c0_44], %66 {strides = array<i32>} : memref<1x8x128xf32, #tpu.memory_space<vmem>>, vector<1x8x128xf32>,
      %cst_45 = arith.constant 0.000000e+00 : f32
      %67 = vector.broadcast %cst_45 : f32 to vector<8x128xf32>
      %c0_46 = arith.constant 0 : index
      %c0_47 = arith.constant 0 : index
      %c0_48 = arith.constant 0 : index
      %68 = vector.load %arg7[%c0_46, %c0_47, %c0_48] : memref<1x8x128xf32, #tpu.memory_space<vmem>>, vector<1x8x128xf32>
      %69 = vector.shape_cast %68 : vector<1x8x128xf32> to vector<8x128xf32>
      %70 = vector.shape_cast %67 : vector<8x128xf32> to vector<1x8x128xf32>
      tpu.vector_store %arg7[%c0_46, %c0_47, %c0_48], %70 {strides = array<i32>} : memref<1x8x128xf32, #tpu.memory_space<vmem>>, vector<1x8x128xf32>,
    } else {
    }
    %c0_29 = arith.constant 0 : index
    %c0_30 = arith.constant 0 : index
    %c0_31 = arith.constant 0 : index
    %49 = vector.load %arg6[%c0_29, %c0_30, %c0_31] : memref<1x8x128xf32, #tpu.memory_space<vmem>>, vector<1x8x128xf32>
    %50 = vector.shape_cast %49 : vector<1x8x128xf32> to vector<8x128xf32>
    %51 = vector.broadcast %42 : vector<1x128xf32> to vector<8x128xf32>
    %52 = arith.addf %50, %51 : vector<8x128xf32>
    %c0_32 = arith.constant 0 : index
    %c0_33 = arith.constant 0 : index
    %c0_34 = arith.constant 0 : index
    %53 = vector.load %arg6[%c0_32, %c0_33, %c0_34] : memref<1x8x128xf32, #tpu.memory_space<vmem>>, vector<1x8x128xf32>
    %54 = vector.shape_cast %53 : vector<1x8x128xf32> to vector<8x128xf32>
    %55 = vector.shape_cast %52 : vector<8x128xf32> to vector<1x8x128xf32>
    tpu.vector_store %arg6[%c0_32, %c0_33, %c0_34], %55 {strides = array<i32>} : memref<1x8x128xf32, #tpu.memory_space<vmem>>, vector<1x8x128xf32>,
    %c0_35 = arith.constant 0 : index
    %c0_36 = arith.constant 0 : index
    %c0_37 = arith.constant 0 : index
    %56 = vector.load %arg7[%c0_35, %c0_36, %c0_37] : memref<1x8x128xf32, #tpu.memory_space<vmem>>, vector<1x8x128xf32>
    %57 = vector.shape_cast %56 : vector<1x8x128xf32> to vector<8x128xf32>
    %58 = vector.broadcast %45 : vector<1x128xf32> to vector<8x128xf32>
    %59 = arith.addf %57, %58 : vector<8x128xf32>
    %c0_38 = arith.constant 0 : index
    %c0_39 = arith.constant 0 : index
    %c0_40 = arith.constant 0 : index
    %60 = vector.load %arg7[%c0_38, %c0_39, %c0_40] : memref<1x8x128xf32, #tpu.memory_space<vmem>>, vector<1x8x128xf32>
    %61 = vector.shape_cast %60 : vector<1x8x128xf32> to vector<8x128xf32>
    %62 = vector.shape_cast %59 : vector<8x128xf32> to vector<1x8x128xf32>
    tpu.vector_store %arg7[%c0_38, %c0_39, %c0_40], %62 {strides = array<i32>} : memref<1x8x128xf32, #tpu.memory_space<vmem>>, vector<1x8x128xf32>,
    return
  }
  func.func @transform_0(%arg0: i32, %arg1: i32) -> (i32, i32, i32) {
    %c0_i32 = arith.constant 0 : i32
    %c0_i32_0 = arith.constant 0 : i32
    %c0_i32_1 = arith.constant 0 : i32
    return %arg0, %c0_i32, %c0_i32_0 : i32, i32, i32
  }
  func.func @transform_1(%arg0: i32, %arg1: i32) -> (i32, i32, i32) {
    %c0_i32 = arith.constant 0 : i32
    %c0_i32_0 = arith.constant 0 : i32
    %c0_i32_1 = arith.constant 0 : i32
    %c0_i32_2 = arith.constant 0 : i32
    return %c0_i32, %c0_i32_0, %c0_i32_1 : i32, i32, i32
  }
  func.func @transform_2(%arg0: i32, %arg1: i32) -> (i32, i32) {
    %c0_i32 = arith.constant 0 : i32
    %c0_i32_0 = arith.constant 0 : i32
    %c0_i32_1 = arith.constant 0 : i32
    return %c0_i32, %c0_i32_0 : i32, i32
  }
  func.func @transform_3(%arg0: i32, %arg1: i32) -> (i32, i32, i32) {
    %c0_i32 = arith.constant 0 : i32
    %c0_i32_0 = arith.constant 0 : i32
    return %arg0, %arg1, %c0_i32 : i32, i32, i32
  }
  func.func @transform_4(%arg0: i32, %arg1: i32) -> (i32, i32, i32) {
    %c0_i32 = arith.constant 0 : i32
    %c0_i32_0 = arith.constant 0 : i32
    %c0_i32_1 = arith.constant 0 : i32
    return %arg0, %c0_i32, %c0_i32_0 : i32, i32, i32
  }
  func.func @transform_5(%arg0: i32, %arg1: i32) -> (i32, i32, i32) {
    %c0_i32 = arith.constant 0 : i32
    %c0_i32_0 = arith.constant 0 : i32
    %c0_i32_1 = arith.constant 0 : i32
    return %arg0, %c0_i32, %c0_i32_0 : i32, i32, i32
  }
}

module attributes {stable_mosaic.version = 11 : i64} {
  func.func @kernel(%arg0: i32, %arg1: i32, %arg2: memref<1x288x12xbf16, #tpu.memory_space<vmem>>, %arg3: memref<3x12x128xbf16, #tpu.memory_space<vmem>>, %arg4: memref<1x128xf32, #tpu.memory_space<vmem>>, %arg5: memref<1x256x128xbf16, #tpu.memory_space<vmem>>, %arg6: memref<1x8x128xf32, #tpu.memory_space<vmem>>, %arg7: memref<1x8x128xf32, #tpu.memory_space<vmem>>) attributes {dimension_semantics = [#tpu.dimension_semantics<parallel>, #tpu.dimension_semantics<arbitrary>], iteration_bounds = array<i64: 2, 1>, scalar_prefetch = 0 : i64, scratch_operands = 0 : i64, tpu.core_type = #tpu.core_type<tc>, window_params = [{transform_indices = @transform_0, window_bounds = array<i64: 1, 288, 12>}, {pipeline_mode = #tpu.pipeline_mode<synchronous>, transform_indices = @transform_1, window_bounds = array<i64: 3, 12, 128>}, {pipeline_mode = #tpu.pipeline_mode<synchronous>, transform_indices = @transform_2, window_bounds = array<i64: 1, 128>}, {transform_indices = @transform_3, window_bounds = array<i64: 1, 256, 128>}, {transform_indices = @transform_4, window_bounds = array<i64: 1, 8, 128>}, {transform_indices = @transform_5, window_bounds = array<i64: 1, 8, 128>}]} {
    %cst = arith.constant 0.000000e+00 : f32
    %0 = vector.broadcast %cst : f32 to vector<256x128xf32>
    %c16_i32 = arith.constant 16 : i32
    %1 = arith.muli %arg1, %c16_i32 : i32
    %c0_i32 = arith.constant 0 : i32
    %2 = arith.addi %1, %c0_i32 : i32
    %c16_i32_0 = arith.constant 16 : i32
    %3 = arith.muli %2, %c16_i32_0 : i32
    %4 = tpu.assume_multiple %3, 16 : i32
    %c0 = arith.constant 0 : index
    %5 = arith.index_cast %4 : i32 to index
    %c0_1 = arith.constant 0 : index
    %6 = vector.load %arg2[%c0, %5, %c0_1] : memref<1x288x12xbf16, #tpu.memory_space<vmem>>, vector<1x256x12xbf16>
    %7 = vector.shape_cast %6 : vector<1x256x12xbf16> to vector<256x12xbf16>
    %c0_2 = arith.constant 0 : index
    %c0_3 = arith.constant 0 : index
    %c0_4 = arith.constant 0 : index
    %8 = vector.load %arg3[%c0_2, %c0_3, %c0_4] : memref<3x12x128xbf16, #tpu.memory_space<vmem>>, vector<1x12x128xbf16>
    %9 = vector.shape_cast %8 : vector<1x12x128xbf16> to vector<12x128xbf16>
    %cst_5 = arith.constant dense<0.000000e+00> : vector<256x128xf32>
    %10 = tpu.matmul %7, %9, %cst_5 {dimension_numbers = #tpu.dot_dimension_numbers<[1], [0], [0], [1], [0, 0, 1, 1], [], []>} : vector<256x12xbf16>, vector<12x128xbf16>, vector<256x128xf32> -> vector<256x128xf32>
    %11 = arith.addf %0, %10 : vector<256x128xf32>
    %c16_i32_6 = arith.constant 16 : i32
    %12 = arith.muli %arg1, %c16_i32_6 : i32
    %c1_i32 = arith.constant 1 : i32
    %13 = arith.addi %12, %c1_i32 : i32
    %c16_i32_7 = arith.constant 16 : i32
    %14 = arith.muli %13, %c16_i32_7 : i32
    %15 = tpu.assume_multiple %14, 16 : i32
    %c0_8 = arith.constant 0 : index
    %16 = arith.index_cast %15 : i32 to index
    %c0_9 = arith.constant 0 : index
    %17 = vector.load %arg2[%c0_8, %16, %c0_9] : memref<1x288x12xbf16, #tpu.memory_space<vmem>>, vector<1x256x12xbf16>
    %18 = vector.shape_cast %17 : vector<1x256x12xbf16> to vector<256x12xbf16>
    %c1 = arith.constant 1 : index
    %c0_10 = arith.constant 0 : index
    %c0_11 = arith.constant 0 : index
    %19 = vector.load %arg3[%c1, %c0_10, %c0_11] : memref<3x12x128xbf16, #tpu.memory_space<vmem>>, vector<1x12x128xbf16>
    %20 = vector.shape_cast %19 : vector<1x12x128xbf16> to vector<12x128xbf16>
    %cst_12 = arith.constant dense<0.000000e+00> : vector<256x128xf32>
    %21 = tpu.matmul %18, %20, %cst_12 {dimension_numbers = #tpu.dot_dimension_numbers<[1], [0], [0], [1], [0, 0, 1, 1], [], []>} : vector<256x12xbf16>, vector<12x128xbf16>, vector<256x128xf32> -> vector<256x128xf32>
    %22 = arith.addf %11, %21 : vector<256x128xf32>
    %c16_i32_13 = arith.constant 16 : i32
    %23 = arith.muli %arg1, %c16_i32_13 : i32
    %c2_i32 = arith.constant 2 : i32
    %24 = arith.addi %23, %c2_i32 : i32
    %c16_i32_14 = arith.constant 16 : i32
    %25 = arith.muli %24, %c16_i32_14 : i32
    %26 = tpu.assume_multiple %25, 16 : i32
    %c0_15 = arith.constant 0 : index
    %27 = arith.index_cast %26 : i32 to index
    %c0_16 = arith.constant 0 : index
    %28 = vector.load %arg2[%c0_15, %27, %c0_16] : memref<1x288x12xbf16, #tpu.memory_space<vmem>>, vector<1x256x12xbf16>
    %29 = vector.shape_cast %28 : vector<1x256x12xbf16> to vector<256x12xbf16>
    %c2 = arith.constant 2 : index
    %c0_17 = arith.constant 0 : index
    %c0_18 = arith.constant 0 : index
    %30 = vector.load %arg3[%c2, %c0_17, %c0_18] : memref<3x12x128xbf16, #tpu.memory_space<vmem>>, vector<1x12x128xbf16>
    %31 = vector.shape_cast %30 : vector<1x12x128xbf16> to vector<12x128xbf16>
    %cst_19 = arith.constant dense<0.000000e+00> : vector<256x128xf32>
    %32 = tpu.matmul %29, %31, %cst_19 {dimension_numbers = #tpu.dot_dimension_numbers<[1], [0], [0], [1], [0, 0, 1, 1], [], []>} : vector<256x12xbf16>, vector<12x128xbf16>, vector<256x128xf32> -> vector<256x128xf32>
    %33 = arith.addf %22, %32 : vector<256x128xf32>
    %c0_20 = arith.constant 0 : index
    %c0_21 = arith.constant 0 : index
    %34 = vector.load %arg4[%c0_20, %c0_21] : memref<1x128xf32, #tpu.memory_space<vmem>>, vector<1x128xf32>
    %35 = vector.broadcast %34 : vector<1x128xf32> to vector<256x128xf32>
    %36 = arith.addf %33, %35 : vector<256x128xf32>
    %37 = arith.truncf %36 : vector<256x128xf32> to vector<256x128xbf16>
    %c0_22 = arith.constant 0 : index
    %c0_23 = arith.constant 0 : index
    %c0_24 = arith.constant 0 : index
    %38 = vector.load %arg5[%c0_22, %c0_23, %c0_24] : memref<1x256x128xbf16, #tpu.memory_space<vmem>>, vector<1x256x128xbf16>
    %39 = vector.shape_cast %38 : vector<1x256x128xbf16> to vector<256x128xbf16>
    %40 = vector.shape_cast %37 : vector<256x128xbf16> to vector<1x256x128xbf16>
    tpu.vector_store %arg5[%c0_22, %c0_23, %c0_24], %40 {strides = array<i32>} : memref<1x256x128xbf16, #tpu.memory_space<vmem>>, vector<1x256x128xbf16>,
    %cst_25 = arith.constant dense<0.000000e+00> : vector<128xf32>
    %41 = vector.multi_reduction <add>, %33, %cst_25 [0] : vector<256x128xf32> to vector<128xf32>
    %42 = vector.shape_cast %41 : vector<128xf32> to vector<1x128xf32>
    %43 = arith.mulf %33, %33 : vector<256x128xf32>
    %cst_26 = arith.constant dense<0.000000e+00> : vector<128xf32>
    %44 = vector.multi_reduction <add>, %43, %cst_26 [0] : vector<256x128xf32> to vector<128xf32>
    %45 = vector.shape_cast %44 : vector<128xf32> to vector<1x128xf32>
    %c0_i32_27 = arith.constant 0 : i32
    %46 = arith.cmpi eq, %arg1, %c0_i32_27 : i32
    %47 = arith.extui %46 : i1 to i32
    %c0_i32_28 = arith.constant 0 : i32
    %48 = arith.cmpi ne, %47, %c0_i32_28 : i32
    scf.if %48 {
      %cst_41 = arith.constant 0.000000e+00 : f32
      %63 = vector.broadcast %cst_41 : f32 to vector<8x128xf32>
      %c0_42 = arith.constant 0 : index
      %c0_43 = arith.constant 0 : index
      %c0_44 = arith.constant 0 : index
      %64 = vector.load %arg6[%c0_42, %c0_43, %c0_44] : memref<1x8x128xf32, #tpu.memory_space<vmem>>, vector<1x8x128xf32>
      %65 = vector.shape_cast %64 : vector<1x8x128xf32> to vector<8x128xf32>
      %66 = vector.shape_cast %63 : vector<8x128xf32> to vector<1x8x128xf32>
      tpu.vector_store %arg6[%c0_42, %c0_43, %c0_44], %66 {strides = array<i32>} : memref<1x8x128xf32, #tpu.memory_space<vmem>>, vector<1x8x128xf32>,
      %cst_45 = arith.constant 0.000000e+00 : f32
      %67 = vector.broadcast %cst_45 : f32 to vector<8x128xf32>
      %c0_46 = arith.constant 0 : index
      %c0_47 = arith.constant 0 : index
      %c0_48 = arith.constant 0 : index
      %68 = vector.load %arg7[%c0_46, %c0_47, %c0_48] : memref<1x8x128xf32, #tpu.memory_space<vmem>>, vector<1x8x128xf32>
      %69 = vector.shape_cast %68 : vector<1x8x128xf32> to vector<8x128xf32>
      %70 = vector.shape_cast %67 : vector<8x128xf32> to vector<1x8x128xf32>
      tpu.vector_store %arg7[%c0_46, %c0_47, %c0_48], %70 {strides = array<i32>} : memref<1x8x128xf32, #tpu.memory_space<vmem>>, vector<1x8x128xf32>,
    } else {
    }
    %c0_29 = arith.constant 0 : index
    %c0_30 = arith.constant 0 : index
    %c0_31 = arith.constant 0 : index
    %49 = vector.load %arg6[%c0_29, %c0_30, %c0_31] : memref<1x8x128xf32, #tpu.memory_space<vmem>>, vector<1x8x128xf32>
    %50 = vector.shape_cast %49 : vector<1x8x128xf32> to vector<8x128xf32>
    %51 = vector.broadcast %42 : vector<1x128xf32> to vector<8x128xf32>
    %52 = arith.addf %50, %51 : vector<8x128xf32>
    %c0_32 = arith.constant 0 : index
    %c0_33 = arith.constant 0 : index
    %c0_34 = arith.constant 0 : index
    %53 = vector.load %arg6[%c0_32, %c0_33, %c0_34] : memref<1x8x128xf32, #tpu.memory_space<vmem>>, vector<1x8x128xf32>
    %54 = vector.shape_cast %53 : vector<1x8x128xf32> to vector<8x128xf32>
    %55 = vector.shape_cast %52 : vector<8x128xf32> to vector<1x8x128xf32>
    tpu.vector_store %arg6[%c0_32, %c0_33, %c0_34], %55 {strides = array<i32>} : memref<1x8x128xf32, #tpu.memory_space<vmem>>, vector<1x8x128xf32>,
    %c0_35 = arith.constant 0 : index
    %c0_36 = arith.constant 0 : index
    %c0_37 = arith.constant 0 : index
    %56 = vector.load %arg7[%c0_35, %c0_36, %c0_37] : memref<1x8x128xf32, #tpu.memory_space<vmem>>, vector<1x8x128xf32>
    %57 = vector.shape_cast %56 : vector<1x8x128xf32> to vector<8x128xf32>
    %58 = vector.broadcast %45 : vector<1x128xf32> to vector<8x128xf32>
    %59 = arith.addf %57, %58 : vector<8x128xf32>
    %c0_38 = arith.constant 0 : index
    %c0_39 = arith.constant 0 : index
    %c0_40 = arith.constant 0 : index
    %60 = vector.load %arg7[%c0_38, %c0_39, %c0_40] : memref<1x8x128xf32, #tpu.memory_space<vmem>>, vector<1x8x128xf32>
    %61 = vector.shape_cast %60 : vector<1x8x128xf32> to vector<8x128xf32>
    %62 = vector.shape_cast %59 : vector<8x128xf32> to vector<1x8x128xf32>
    tpu.vector_store %arg7[%c0_38, %c0_39, %c0_40], %62 {strides = array<i32>} : memref<1x8x128xf32, #tpu.memory_space<vmem>>, vector<1x8x128xf32>,
    return
  }
  func.func @transform_0(%arg0: i32, %arg1: i32) -> (i32, i32, i32) {
    %c0_i32 = arith.constant 0 : i32
    %c0_i32_0 = arith.constant 0 : i32
    %c0_i32_1 = arith.constant 0 : i32
    return %arg0, %c0_i32, %c0_i32_0 : i32, i32, i32
  }
  func.func @transform_1(%arg0: i32, %arg1: i32) -> (i32, i32, i32) {
    %c0_i32 = arith.constant 0 : i32
    %c0_i32_0 = arith.constant 0 : i32
    %c0_i32_1 = arith.constant 0 : i32
    %c0_i32_2 = arith.constant 0 : i32
    return %c0_i32, %c0_i32_0, %c0_i32_1 : i32, i32, i32
  }
  func.func @transform_2(%arg0: i32, %arg1: i32) -> (i32, i32) {
    %c0_i32 = arith.constant 0 : i32
    %c0_i32_0 = arith.constant 0 : i32
    %c0_i32_1 = arith.constant 0 : i32
    return %c0_i32, %c0_i32_0 : i32, i32
  }
  func.func @transform_3(%arg0: i32, %arg1: i32) -> (i32, i32, i32) {
    %c0_i32 = arith.constant 0 : i32
    %c0_i32_0 = arith.constant 0 : i32
    return %arg0, %arg1, %c0_i32 : i32, i32, i32
  }
  func.func @transform_4(%arg0: i32, %arg1: i32) -> (i32, i32, i32) {
    %c0_i32 = arith.constant 0 : i32
    %c0_i32_0 = arith.constant 0 : i32
    %c0_i32_1 = arith.constant 0 : i32
    return %arg0, %c0_i32, %c0_i32_0 : i32, i32, i32
  }
  func.func @transform_5(%arg0: i32, %arg1: i32) -> (i32, i32, i32) {
    %c0_i32 = arith.constant 0 : i32
    %c0_i32_0 = arith.constant 0 : i32
    %c0_i32_1 = arith.constant 0 : i32
    return %arg0, %c0_i32, %c0_i32_0 : i32, i32, i32
  }
}

</mosaic_0001>

<llo_original>
// kernel: tpu_custom_call.1
$region0: #{tpu_custom_call.1}
  #allocation0 [shape = 'u32[]', space=smem, size = 0x4, offset = 0x4, fixed_abs, tag = 'smem constant byte address 0x4 - core index']
  #allocation1 [shape = 'u32[144,128]{1,0:T(1,128)}', space=vmem, size = 0x12000, scoped, tag = 'internal scratch']
  %s0 = inlined_call_operand.hbm [shape: f32[8,128], index: 0, kind: input, shape index: {}]
  %s1 = inlined_call_operand.hbm [shape: f32[8,128], index: 1, kind: input, shape index: {}]
  %s2 = inlined_call_operand.hbm [shape: f32[8,128], index: 2, kind: output, shape index: {}]
  %s3 = sld [smem:[#allocation0]]
  $region49: #{tpu_custom_call.1} parent=0
    _
  %s5 = ssub.s32 1, %s3
  %s6 = scalar_select 0, %s5, %s3
  $region1: #{tpu_custom_call.1} parent=0
    #allocation2 [shape = 'u8[4096]{0}', space=vmem, size = 0x1000, scoped, tag = 'input window, operand 0, single buffered']
    #allocation3 [shape = 's32[2]{0}', space=sflag, size = 0x8, scoped, tag = 'scoped memory for tpu_custom_call.1']
    #allocation4 [shape = 's32[2]{0}', space=sflag, size = 0x8, scoped, tag = 'scoped memory for tpu_custom_call.1']
    #allocation5 [shape = 'u8[4096]{0}', space=vmem, size = 0x1000, scoped, tag = 'input window, operand 1, single buffered']
    #allocation6 [shape = 's32[1]{0}', space=sflag, size = 0x4, scoped, tag = 'scoped memory for tpu_custom_call.1']
    #allocation7 [shape = 'u8[4096]{0}', space=vmem, size = 0x1000, scoped, tag = 'output window, operand 0, single buffered']
    %7 = vsyncpa [#allocation3], 0
    %8 = vsyncpa [#allocation6], 0
    %9 = vsyncpa [#allocation4], 0
    loop: start=0, step=1, limit=4
    $region2: #{tpu_custom_call.1} parent=1 // loop_pre_header
      _
    $region3: #{tpu_custom_call.1} parent=1 // loop_header
      %s11 = sphi 0, %s15
      %p12 = scmp.ge.s32.totalorder %s11, 4
      %s19 = sphi 0, %s19
      %s21 = sphi 0, %s19
      %s22 = sphi 0, %s21
      %s36 = sphi 0, %s22
      %s40 = sphi 0, %s40
      %s42 = sphi 0, %s40
      %s43 = sphi 0, %s42
      %s57 = sphi 0, %s43
      %s61 = sphi 0, %s61
      %s63 = sphi 0, %s61
      %s64 = sphi 0, %s63
      %s78 = sphi 0, %s64
    $region4: #{tpu_custom_call.1} parent=1 // loop_header_branch
      %14 = sbr.rel (%p12) target = $region8
    $region5: #{tpu_custom_call.1} parent=1 // loop_body
      %s16 = ssub.s32 %s11, 1
      %s17 = ssub.s32 %s11, 2
      %s18 = sadd.s32 %s11, 1
      %s20 = sadd.s32 %s19, 1
      %p23 = scmp.eq.s32.totalorder %s11, 1
      %p24 = scmp.ne.s32.totalorder %s19, %s21
      %p25 = scmp.eq.s32.totalorder %s11, 0
      %p26 = por %p24, %p25
      %p27 = scmp.ne.s32.totalorder %s19, %s21
      %p28 = scmp.eq.s32.totalorder %s16, 1
      %p29 = por %p27, %p28
      %p30 = scmp.ne.s32.totalorder %s21, %s22
      %p31 = scmp.eq.s32.totalorder %s16, 0
      %p32 = por %p30, %p31
      %p33 = scmp.ne.s32.totalorder %s21, %s22
      %p34 = scmp.eq.s32.totalorder %s17, 1
      %p35 = por %p33, %p34
      %p37 = scmp.ne.s32.totalorder %s22, %s36
      %p38 = scmp.eq.s32.totalorder %s17, 0
      %p39 = por %p37, %p38
      %s41 = sadd.s32 %s40, 1
      %p44 = scmp.eq.s32.totalorder %s11, 1
      %p45 = scmp.ne.s32.totalorder %s40, %s42
      %p46 = scmp.eq.s32.totalorder %s11, 0
      %p47 = por %p45, %p46
      %p48 = scmp.ne.s32.totalorder %s40, %s42
      %p49 = scmp.eq.s32.totalorder %s16, 1
      %p50 = por %p48, %p49
      %p51 = scmp.ne.s32.totalorder %s42, %s43
      %p52 = scmp.eq.s32.totalorder %s16, 0
      %p53 = por %p51, %p52
      %p54 = scmp.ne.s32.totalorder %s42, %s43
      %p55 = scmp.eq.s32.totalorder %s17, 1
      %p56 = por %p54, %p55
      %p58 = scmp.ne.s32.totalorder %s43, %s57
      %p59 = scmp.eq.s32.totalorder %s17, 0
      %p60 = por %p58, %p59
      %s62 = sadd.s32 %s61, 1
      %p65 = scmp.eq.s32.totalorder %s11, 1
      %p66 = scmp.ne.s32.totalorder %s61, %s63
      %p67 = scmp.eq.s32.totalorder %s11, 0
      %p68 = por %p66, %p67
      %p69 = scmp.ne.s32.totalorder %s61, %s63
      %p70 = scmp.eq.s32.totalorder %s16, 1
      %p71 = por %p69, %p70
      %p72 = scmp.ne.s32.totalorder %s63, %s64
      %p73 = scmp.eq.s32.totalorder %s16, 0
      %p74 = por %p72, %p73
      %p75 = scmp.ne.s32.totalorder %s63, %s64
      %p76 = scmp.eq.s32.totalorder %s17, 1
      %p77 = por %p75, %p76
      %p79 = scmp.ne.s32.totalorder %s64, %s78
      %p80 = scmp.eq.s32.totalorder %s17, 0
      %p81 = por %p79, %p80
      %p82 = scmp.le.s32.totalorder 1, %s11
      %p83 = scmp.lt.s32.totalorder %s11, 3
      %p84 = pnand %p82, %p83
      %p85 = pneg %p84
      // Predicated region
      $region9: #{tpu_custom_call.1} parent=5 // pred_check
        _
      $region10: #{tpu_custom_call.1} parent=5 // pred_check_branch
        %87 = sbr.rel (%p84) target = $region12
      $region11: #{tpu_custom_call.1} parent=5 // pred_region
        %s88 = ssub.s32 %s11, 1
        // Predicated region
        $region13: #{tpu_custom_call.1} parent=11 // pred_check
          %p89 = pneg %p32
        $region14: #{tpu_custom_call.1} parent=11 // pred_check_branch
          %91 = sbr.rel (%p89) target = $region16
        $region15: #{tpu_custom_call.1} parent=11 // pred_region
          %s93 = ssub.s32 128, 128
          %94 = vsyncadd [#allocation3], %s93
          %s96 = sshll.u32 [#allocation2], 4
          %s97 = int_to_ptr.vmem [resolvable:$true] %s96
          %99 = dma.hbm_to_vmem [thread:$0]  %s0, 128, %s97, [#allocation3]
        $region16: #{tpu_custom_call.1} parent=11 // pred_fallthru
          _
        // Predicated region
        $region17: #{tpu_custom_call.1} parent=11 // pred_check
          %p100 = pneg %p53
        $region18: #{tpu_custom_call.1} parent=11 // pred_check_branch
          %102 = sbr.rel (%p100) target = $region20
        $region19: #{tpu_custom_call.1} parent=11 // pred_region
          %s104 = ssub.s32 128, 128
          %105 = vsyncadd [#allocation6], %s104
          %s107 = sshll.u32 [#allocation5], 4
          %s108 = int_to_ptr.vmem [resolvable:$true] %s107
          %110 = dma.hbm_to_vmem [thread:$0]  %s1, 128, %s108, [#allocation6]
        $region20: #{tpu_custom_call.1} parent=11 // pred_fallthru
          _
      $region12: #{tpu_custom_call.1} parent=5 // pred_fallthru
        _
      %p111 = scmp.lt.s32.totalorder %s11, 2
      // Predicated region
      $region21: #{tpu_custom_call.1} parent=5 // pred_check
        %p112 = pneg %p111
      $region22: #{tpu_custom_call.1} parent=5 // pred_check_branch
        %114 = sbr.rel (%p112) target = $region24
      $region23: #{tpu_custom_call.1} parent=5 // pred_region
        _
      $region24: #{tpu_custom_call.1} parent=5 // pred_fallthru
        _
      %p115 = scmp.le.s32.totalorder 1, %s11
      %p116 = scmp.lt.s32.totalorder %s11, 3
      %p117 = pnand %p115, %p116
      %p118 = pneg %p117
      // Predicated region
      $region25: #{tpu_custom_call.1} parent=5 // pred_check
        _
      $region26: #{tpu_custom_call.1} parent=5 // pred_check_branch
        %120 = sbr.rel (%p117) target = $region28
      $region27: #{tpu_custom_call.1} parent=5 // pred_region
        %s121 = ssub.s32 %s11, 1
        // Predicated region
        $region29: #{tpu_custom_call.1} parent=27 // pred_check
          %p122 = pneg %p32
        $region30: #{tpu_custom_call.1} parent=27 // pred_check_branch
          %124 = sbr.rel (%p122) target = $region32
        $region31: #{tpu_custom_call.1} parent=27 // pred_region
          %125 = dma.done [#allocation3], 128
        $region32: #{tpu_custom_call.1} parent=27 // pred_fallthru
          _
        // Predicated region
        $region33: #{tpu_custom_call.1} parent=27 // pred_check
          %p126 = pneg %p53
        $region34: #{tpu_custom_call.1} parent=27 // pred_check_branch
          %128 = sbr.rel (%p126) target = $region36
        $region35: #{tpu_custom_call.1} parent=27 // pred_region
          %129 = dma.done [#allocation6], 128
        $region36: #{tpu_custom_call.1} parent=27 // pred_fallthru
          _
        %p130 = pneg %p32
        %p131 = pneg %p29
        %p132 = pneg %p53
        %p133 = pneg %p50
        %p134 = pneg %p74
        %p135 = pneg %p71
        %v136 = vld [vmem:[#allocation2] sm:$0xff]
        %v137 = vld [vmem:[#allocation5] sm:$0xff]
        %v138 = vadd.f32 %v136, %v137
        %139 = vst [vmem:[#allocation7] sm:$0xff] %v138
        // Predicated region
        $region37: #{tpu_custom_call.1} parent=27 // pred_check
          %p140 = pneg %p71
        $region38: #{tpu_custom_call.1} parent=27 // pred_check_branch
          %142 = sbr.rel (%p140) target = $region40
        $region39: #{tpu_custom_call.1} parent=27 // pred_region
          %s144 = ssub.s32 128, 128
          %145 = vsyncadd [#allocation4], %s144
          %s147 = sshll.u32 [#allocation7], 4
          %s148 = int_to_ptr.vmem [resolvable:$true] %s147
          %150 = dma.vmem_to_hbm [thread:$0]  %s148, 128, %s2, [#allocation4]
        $region40: #{tpu_custom_call.1} parent=27 // pred_fallthru
          _
        // Predicated region
        $region41: #{tpu_custom_call.1} parent=27 // pred_check
          %p151 = pneg %p71
        $region42: #{tpu_custom_call.1} parent=27 // pred_check_branch
          %153 = sbr.rel (%p151) target = $region44
        $region43: #{tpu_custom_call.1} parent=27 // pred_region
          %154 = dma.done [#allocation4], 128
        $region44: #{tpu_custom_call.1} parent=27 // pred_fallthru
          _
      $region28: #{tpu_custom_call.1} parent=5 // pred_fallthru
        _
      %p155 = scmp.le.s32.totalorder 2, %s11
      // Predicated region
      $region45: #{tpu_custom_call.1} parent=5 // pred_check
        %p156 = pneg %p155
      $region46: #{tpu_custom_call.1} parent=5 // pred_check_branch
        %158 = sbr.rel (%p156) target = $region48
      $region47: #{tpu_custom_call.1} parent=5 // pred_region
        %s159 = ssub.s32 %s11, 2
      $region48: #{tpu_custom_call.1} parent=5 // pred_fallthru
        _
    $region6: #{tpu_custom_call.1} parent=1 // loop_footer
      %s15 = sadd.s32 1, %s11
    $region7: #{tpu_custom_call.1} parent=1 // loop_footer_branch
      %10 = sbr.rel target = $region3
    $region8: #{tpu_custom_call.1} parent=1 // loop_exit
      _
    %160 = vsyncpa [#allocation3], 1
    %s161 = scalar_lea.sflag [#allocation3], 1
    %162 = vsyncpa %s161, 1
    %163 = vsyncpa [#allocation6], 1
    %164 = vsyncpa [#allocation4], 1
    %s165 = scalar_lea.sflag [#allocation4], 1
    %166 = vsyncpa %s165, 1

// kernel: tile.8
$region0: #{tile.8}
  #allocation0 [shape = 's32[1]{0}', space=sflag, size = 0x4, scoped, tag = 'scoped memory for tile.8']
  %s0 = inlined_call_operand.vmem [shape: f32[4], index: 0, kind: input, shape index: {}]
  %s1 = inlined_call_operand.vmem [shape: f32[4,4], index: 1, kind: output, shape index: {}]
  // Predicated region
  $region2: #{tile.8} parent=0 // pred_check
    _
  $region3: #{tile.8} parent=0 // pred_check_branch
    %3 = sbr.rel (0) target = $region5
  $region4: #{tile.8} parent=0 // pred_region
    _
  $region5: #{tile.8} parent=0 // pred_fallthru
    _
  %v4 = vld [vmem:[%s0] ss:$0 sm:$0xff]
  %5 = vst [vmem:[%s1] sm:$0xf] %v4

// kernel: tile.9
$region0: #{tile.9}
  %s0 = inlined_call_operand.vmem [shape: f32[4,4], index: 0, kind: input, shape index: {}]
  %s1 = inlined_call_operand.vmem [shape: f32[1,16], index: 1, kind: output, shape index: {}]
  $region1: #{tile.9} parent=0
    #allocation0 [shape = 'u8[4096]{0}', space=vmem, size = 0x1000, scoped, tag = 'scoped mem for output reshape']
    #allocation1 [shape = 'u8[4096]{0}', space=vmem, size = 0x1000, scoped, tag = 'scoped mem for input reshape']
    %s3 = sshllo.u32 0, 4
    %v4 = vld [vmem:[%s0] sm:%s3]
    %5 = vst [vmem:[#allocation1] sm:%s3] %v4
    %v6 = vld [vmem:[#allocation1] sm:$0x1]
    %vm7 = vcmask 31744
    %8 = vst.msk [vmem:[#allocation0] sm:$0x1] %vm7, %v6
    %s9 = scalar_lea.vmem [#allocation1], 3
    %v10 = vld [vmem:[%s9] sm:$0x1]
    %11 = vrot.lane.b32.xlu0 %v10, 12
    %v12 = vpop.permute.xlu0 %11
    %vm13 = vcmask 130144
    %14 = vst.msk [vmem:[#allocation0] sm:$0x1] %vm13, %v12
    %s15 = scalar_lea.vmem [#allocation1], 2
    %v16 = vld [vmem:[%s15] sm:$0x1]
    %17 = vrot.lane.b32.xlu0 %v16, 8
    %v18 = vpop.permute.xlu0 %17
    %vm19 = vcmask 97344
    %20 = vst.msk [vmem:[#allocation0] sm:$0x1] %vm19, %v18
    %s21 = scalar_lea.vmem [#allocation1], 1
    %v22 = vld [vmem:[%s21] sm:$0x1]
    %23 = vrot.lane.b32.xlu0 %v22, 4
    %v24 = vpop.permute.xlu0 %23
    %vm25 = vcmask 64544
    %26 = vst.msk [vmem:[#allocation0] sm:$0x1] %vm25, %v24
    %s28 = sshllo.u32 0, 1
    %v30 = vld [vmem:[#allocation0] sm:%s28]
    %s31 = sshllo.u32 0, 1
    %32 = vst [vmem:[%s1] sm:%s31] %v30

// kernel: up_layer_forward.3
$region0: #{up_layer_forward.3}
  #allocation0 [shape = 'u32[]', space=smem, size = 0x4, offset = 0x4, fixed_abs, tag = 'smem constant byte address 0x4 - core index']
  #allocation1 [shape = 'u32[144,128]{1,0:T(1,128)}', space=vmem, size = 0x12000, scoped, tag = 'internal scratch']
  %s0 = inlined_call_operand.vmem [shape: bf16[128,8], index: 0, kind: input, shape index: {}]
  %s1 = inlined_call_operand.vmem [shape: bf16[8,128], index: 1, kind: input, shape index: {}]
  %s2 = inlined_call_operand.vmem [shape: f32[1,128], index: 2, kind: input, shape index: {}]
  %s3 = inlined_call_operand.vmem [shape: bf16[128,128], index: 3, kind: output, shape index: {}]
  %s4 = sld [smem:[#allocation0]]
  $region22: #{up_layer_forward.3} parent=0
    _
  %s6 = ssub.s32 1, %s4
  %s7 = scalar_select 0, %s6, %s4
  // Predicated region
  $region2: #{up_layer_forward.3} parent=0 // pred_check
    _
  $region3: #{up_layer_forward.3} parent=0 // pred_check_branch
    %9 = sbr.rel (0) target = $region5
  $region4: #{up_layer_forward.3} parent=0 // pred_region
    _
  $region5: #{up_layer_forward.3} parent=0 // pred_fallthru
    _
  // Predicated region
  $region6: #{up_layer_forward.3} parent=0 // pred_check
    _
  $region7: #{up_layer_forward.3} parent=0 // pred_check_branch
    %11 = sbr.rel (0) target = $region9
  $region8: #{up_layer_forward.3} parent=0 // pred_region
    _
  $region9: #{up_layer_forward.3} parent=0 // pred_fallthru
    _
  // Predicated region
  $region10: #{up_layer_forward.3} parent=0 // pred_check
    _
  $region11: #{up_layer_forward.3} parent=0 // pred_check_branch
    %13 = sbr.rel (0) target = $region13
  $region12: #{up_layer_forward.3} parent=0 // pred_region
    _
  $region13: #{up_layer_forward.3} parent=0 // pred_fallthru
    _
  %v15 = vld [vmem:[%s0] sm:$0xf]
  %v16 = vld [vmem:[%s0 + $0x4] sm:$0xf]
  %v17 = vld [vmem:[%s0 + $0x8] sm:$0xf]
  %v18 = vld [vmem:[%s0 + $0xc] sm:$0xf]
  %v19 = vld [vmem:[%s0 + $0x10] sm:$0xf]
  %v20 = vld [vmem:[%s0 + $0x14] sm:$0xf]
  %v21 = vld [vmem:[%s0 + $0x18] sm:$0xf]
  %v22 = vld [vmem:[%s0 + $0x1c] sm:$0xf]
  %v23 = vld [vmem:[%s0 + $0x20] sm:$0xf]
  %v24 = vld [vmem:[%s0 + $0x24] sm:$0xf]
  %v25 = vld [vmem:[%s0 + $0x28] sm:$0xf]
  %v26 = vld [vmem:[%s0 + $0x2c] sm:$0xf]
  %v27 = vld [vmem:[%s0 + $0x30] sm:$0xf]
  %v28 = vld [vmem:[%s0 + $0x34] sm:$0xf]
  %v29 = vld [vmem:[%s0 + $0x38] sm:$0xf]
  %v30 = vld [vmem:[%s0 + $0x3c] sm:$0xf]
  %v31 = vld [vmem:[%s1] sm:$0xf]
  %v32 = vld [vmem:[%s2] sm:$0x1]
  %v34 = vlaneseq
  %v35 = vshrl.u32 %v34, 7
  %v36 = vsub.s32 0, %v35
  %v37 = vrot.slane %v32, %v36
  %v55 = vunpack.c.l.b16 %v15
  %v56 = vunpack.c.l.b16 %v16
  %v57 = vunpack.c.l.b16 %v17
  %v58 = vunpack.c.l.b16 %v18
  %v59 = vunpack.c.l.b16 %v19
  %v60 = vunpack.c.l.b16 %v20
  %v61 = vunpack.c.l.b16 %v21
  %v62 = vunpack.c.l.b16 %v22
  %v63 = vunpack.c.l.b16 %v23
  %v64 = vunpack.c.l.b16 %v24
  %v65 = vunpack.c.l.b16 %v25
  %v66 = vunpack.c.l.b16 %v26
  %v67 = vunpack.c.l.b16 %v27
  %v68 = vunpack.c.l.b16 %v28
  %v69 = vunpack.c.l.b16 %v29
  %v70 = vunpack.c.l.b16 %v30
  %v71 = vpack.c.b16 %v56, %v55
  %v72 = vpack.c.b16 %v58, %v57
  %v73 = vpack.c.b16 %v60, %v59
  %v74 = vpack.c.b16 %v62, %v61
  %v75 = vpack.c.b16 %v64, %v63
  %v76 = vpack.c.b16 %v66, %v65
  %v77 = vpack.c.b16 %v68, %v67
  %v78 = vpack.c.b16 %v70, %v69
  %vm79 = vcmask 64512
  %v81 = vsel %vm79, %v71, 0
  %v84 = vsel %vm79, %v72, 0
  %v87 = vsel %vm79, %v73, 0
  %v90 = vsel %vm79, %v74, 0
  %v93 = vsel %vm79, %v75, 0
  %v96 = vsel %vm79, %v76, 0
  %v99 = vsel %vm79, %v77, 0
  %v102 = vsel %vm79, %v78, 0
  %vm104 = vcmask 1043456
  %v106 = vsel %vm104, %v31, 0
  %108 = vmatprep.subr.bf16.mxu0 0
  %109 = vmatpush1.bf16.msra.mxu0 %v106
  %110 = vmatprep.subr.bf16.mxu0 0
  %111 = vmatpush1.bf16.msra.mxu0 0
  %112 = vmatprep.subr.bf16.mxu0 0
  %113 = vmatpush1.bf16.msra.mxu0 0
  %114 = vmatprep.subr.bf16.mxu0 0
  %115 = vmatpush1.bf16.msra.mxu0 0
  %116 = vmatprep.subr.bf16.mxu0 0
  %117 = vmatpush1.bf16.msra.mxu0 0
  %118 = vmatprep.subr.bf16.mxu0 0
  %119 = vmatpush1.bf16.msra.mxu0 0
  %120 = vmatprep.subr.bf16.mxu0 0
  %121 = vmatpush1.bf16.msra.mxu0 0
  %122 = vmatprep.subr.bf16.mxu0 0
  %123 = vmatpush1.bf16.msra.mxu0 0
  %124 = vmatprep.subr.bf16.mxu0 0
  %125 = vmatpush1.bf16.msra.mxu0 0
  %126 = vmatprep.subr.bf16.mxu0 0
  %127 = vmatpush1.bf16.msra.mxu0 0
  %128 = vmatprep.subr.bf16.mxu0 0
  %129 = vmatpush1.bf16.msra.mxu0 0
  %130 = vmatprep.subr.bf16.mxu0 0
  %131 = vmatpush1.bf16.msra.mxu0 0
  %132 = vmatprep.subr.bf16.mxu0 0
  %133 = vmatpush1.bf16.msra.mxu0 0
  %134 = vmatprep.subr.bf16.mxu0 0
  %135 = vmatpush1.bf16.msra.mxu0 0
  %136 = vmatprep.subr.bf16.mxu0 0
  %137 = vmatpush1.bf16.msra.mxu0 0
  %138 = vmatprep.subr.bf16.mxu0 0
  %139 = vmatpush1.bf16.msra.mxu0 0
  %140 = vmatprep.mubr.bf16.mxu0 0
  %141 = vmatmul.mubr.bf16.gmra.mrb[0].mxu0 %v81
  %v142 = vpop.f32.mrb[0].mxu0
  %v143 = vadd.f32 %v37, %v142
  %v144 = vpop.f32.mrb[0].mxu0
  %v145 = vpop.f32.mrb[0].mxu0
  %v146 = vadd.f32 %v37, %v145
  %v147 = vpop.f32.mrb[0].mxu0
  %148 = vmatprep.mubr.bf16.mxu0 0
  %149 = vmatmul.mubr.bf16.gmra.mrb[0].mxu0 %v84
  %v150 = vpop.f32.mrb[0].mxu0
  %v151 = vadd.f32 %v37, %v150
  %v152 = vpop.f32.mrb[0].mxu0
  %v153 = vpop.f32.mrb[0].mxu0
  %v154 = vadd.f32 %v37, %v153
  %v155 = vpop.f32.mrb[0].mxu0
  %156 = vmatprep.mubr.bf16.mxu0 0
  %157 = vmatmul.mubr.bf16.gmra.mrb[0].mxu0 %v87
  %v158 = vpop.f32.mrb[0].mxu0
  %v159 = vadd.f32 %v37, %v158
  %v160 = vpop.f32.mrb[0].mxu0
  %v161 = vpop.f32.mrb[0].mxu0
  %v162 = vadd.f32 %v37, %v161
  %v163 = vpop.f32.mrb[0].mxu0
  %164 = vmatprep.mubr.bf16.mxu0 0
  %165 = vmatmul.mubr.bf16.gmra.mrb[0].mxu0 %v90
  %v166 = vpop.f32.mrb[0].mxu0
  %v167 = vadd.f32 %v37, %v166
  %v168 = vpop.f32.mrb[0].mxu0
  %v169 = vpop.f32.mrb[0].mxu0
  %v170 = vadd.f32 %v37, %v169
  %v171 = vpop.f32.mrb[0].mxu0
  %172 = vmatprep.mubr.bf16.mxu0 0
  %173 = vmatmul.mubr.bf16.gmra.mrb[0].mxu0 %v93
  %v174 = vpop.f32.mrb[0].mxu0
  %v175 = vadd.f32 %v37, %v174
  %v176 = vpop.f32.mrb[0].mxu0
  %v177 = vpop.f32.mrb[0].mxu0
  %v178 = vadd.f32 %v37, %v177
  %v179 = vpop.f32.mrb[0].mxu0
  %180 = vmatprep.mubr.bf16.mxu0 0
  %181 = vmatmul.mubr.bf16.gmra.mrb[0].mxu0 %v96
  %v182 = vpop.f32.mrb[0].mxu0
  %v183 = vadd.f32 %v37, %v182
  %v184 = vpop.f32.mrb[0].mxu0
  %v185 = vpop.f32.mrb[0].mxu0
  %v186 = vadd.f32 %v37, %v185
  %v187 = vpop.f32.mrb[0].mxu0
  %188 = vmatprep.mubr.bf16.mxu0 0
  %189 = vmatmul.mubr.bf16.gmra.mrb[0].mxu0 %v99
  %v190 = vpop.f32.mrb[0].mxu0
  %v191 = vadd.f32 %v37, %v190
  %v192 = vpop.f32.mrb[0].mxu0
  %v193 = vpop.f32.mrb[0].mxu0
  %v194 = vadd.f32 %v37, %v193
  %v195 = vpop.f32.mrb[0].mxu0
  %196 = vmatprep.mubr.bf16.mxu0 0
  %197 = vmatmul.mubr.bf16.gmra.mrb[0].mxu0 %v102
  %v198 = vpop.f32.mrb[0].mxu0
  %v199 = vadd.f32 %v37, %v198
  %v200 = vpop.f32.mrb[0].mxu0
  %v201 = vpop.f32.mrb[0].mxu0
  %v202 = vadd.f32 %v37, %v201
  %v203 = vpop.f32.mrb[0].mxu0
  %204 = vdwg.mxu0
  %v205 = vpack.c.bf16 %v146, %v143
  %v206 = vpack.c.bf16 %v154, %v151
  %v207 = vpack.c.bf16 %v162, %v159
  %v208 = vpack.c.bf16 %v170, %v167
  %v209 = vpack.c.bf16 %v178, %v175
  %v210 = vpack.c.bf16 %v186, %v183
  %v211 = vpack.c.bf16 %v194, %v191
  %v212 = vpack.c.bf16 %v202, %v199
  %v221 = vunpack.c.l.b16 %v205
  %v222 = vunpack.c.h.b16 %v205
  %v223 = vunpack.c.l.b16 %v206
  %v224 = vunpack.c.h.b16 %v206
  %v225 = vunpack.c.l.b16 %v207
  %v226 = vunpack.c.h.b16 %v207
  %v227 = vunpack.c.l.b16 %v208
  %v228 = vunpack.c.h.b16 %v208
  %v229 = vunpack.c.l.b16 %v209
  %v230 = vunpack.c.h.b16 %v209
  %v231 = vunpack.c.l.b16 %v210
  %v232 = vunpack.c.h.b16 %v210
  %v233 = vunpack.c.l.b16 %v211
  %v234 = vunpack.c.h.b16 %v211
  %v235 = vunpack.c.l.b16 %v212
  %v236 = vunpack.c.h.b16 %v212
  %v237 = vpack.c.b16 %v221, %v221
  %v238 = vpack.c.b16 %v222, %v222
  %v239 = vpack.c.b16 %v223, %v223
  %v240 = vpack.c.b16 %v224, %v224
  %v241 = vpack.c.b16 %v225, %v225
  %v242 = vpack.c.b16 %v226, %v226
  %v243 = vpack.c.b16 %v227, %v227
  %v244 = vpack.c.b16 %v228, %v228
  %v245 = vpack.c.b16 %v229, %v229
  %v246 = vpack.c.b16 %v230, %v230
  %v247 = vpack.c.b16 %v231, %v231
  %v248 = vpack.c.b16 %v232, %v232
  %v249 = vpack.c.b16 %v233, %v233
  %v250 = vpack.c.b16 %v234, %v234
  %v251 = vpack.c.b16 %v235, %v235
  %v252 = vpack.c.b16 %v236, %v236
  %269 = vst [vmem:[%s3] sm:$0xf] %v237
  %270 = vst [vmem:[%s3 + $0x4] sm:$0xf] %v238
  %271 = vst [vmem:[%s3 + $0x8] sm:$0xf] %v239
  %272 = vst [vmem:[%s3 + $0xc] sm:$0xf] %v240
  %273 = vst [vmem:[%s3 + $0x10] sm:$0xf] %v241
  %274 = vst [vmem:[%s3 + $0x14] sm:$0xf] %v242
  %275 = vst [vmem:[%s3 + $0x18] sm:$0xf] %v243
  %276 = vst [vmem:[%s3 + $0x1c] sm:$0xf] %v244
  %277 = vst [vmem:[%s3 + $0x20] sm:$0xf] %v245
  %278 = vst [vmem:[%s3 + $0x24] sm:$0xf] %v246
  %279 = vst [vmem:[%s3 + $0x28] sm:$0xf] %v247
  %280 = vst [vmem:[%s3 + $0x2c] sm:$0xf] %v248
  %281 = vst [vmem:[%s3 + $0x30] sm:$0xf] %v249
  %282 = vst [vmem:[%s3 + $0x34] sm:$0xf] %v250
  %283 = vst [vmem:[%s3 + $0x38] sm:$0xf] %v251
  %284 = vst [vmem:[%s3 + $0x3c] sm:$0xf] %v252
  // Predicated region
  $region14: #{up_layer_forward.3} parent=0 // pred_check
    _
  $region15: #{up_layer_forward.3} parent=0 // pred_check_branch
    %286 = sbr.rel (0) target = $region17
  $region16: #{up_layer_forward.3} parent=0 // pred_region
    _
  $region17: #{up_layer_forward.3} parent=0 // pred_fallthru
    _
  // Predicated region
  $region18: #{up_layer_forward.3} parent=0 // pred_check
    _
  $region19: #{up_layer_forward.3} parent=0 // pred_check_branch
    %288 = sbr.rel (0) target = $region21
  $region20: #{up_layer_forward.3} parent=0 // pred_region
    _
  $region21: #{up_layer_forward.3} parent=0 // pred_fallthru
    _

// kernel: up_layer_forward.4
$region0: #{up_layer_forward.4}
  #allocation0 [shape = 'u32[]', space=smem, size = 0x4, offset = 0x4, fixed_abs, tag = 'smem constant byte address 0x4 - core index']
  #allocation1 [shape = 'u32[144,128]{1,0:T(1,128)}', space=vmem, size = 0x12000, scoped, tag = 'internal scratch']
  %s0 = inlined_call_operand.vmem [shape: bf16[2,288,24], index: 0, kind: input, shape index: {}]
  %s1 = inlined_call_operand.vmem [shape: bf16[3,24,128], index: 1, kind: input, shape index: {}]
  %s2 = inlined_call_operand.vmem [shape: f32[1,128], index: 2, kind: input, shape index: {}]
  %s3 = inlined_call_operand.vmem [shape: bf16[2,256,128], index: 3, kind: output, shape index: {0}]
  %s4 = inlined_call_operand.vmem [shape: f32[2,8,128], index: 4, kind: output, shape index: {1}]
  %s5 = inlined_call_operand.vmem [shape: f32[2,8,128], index: 5, kind: output, shape index: {2}]
  %6 = xla_tuple %s3, %s4, %s5
  %s7 = sld [smem:[#allocation0]]
  $region65: #{up_layer_forward.4} parent=0
    _
  %s9 = ssub.s32 1, %s7
  %s10 = scalar_select 0, %s9, %s7
  loop: start=0, step=1, limit=4
  $region2: #{up_layer_forward.4} parent=0 // loop_pre_header
    _
  $region3: #{up_layer_forward.4} parent=0 // loop_header
    %s12 = sphi 0, %s16
    %p13 = scmp.ge.s32.totalorder %s12, 4
    %s19 = sphi 0, %s31
    %s20 = sphi 0, %s27
    %s21 = sphi 0, %s19
    %s22 = sphi 0, %s20
    %s23 = sphi 0, %s21
    %s24 = sphi 0, %s22
    %s34 = sphi 0, %s36
    %s37 = sphi 0, %s34
    %s38 = sphi 0, %s37
    %s54 = sphi 0, %s38
    %s58 = sphi 0, %s58
    %s60 = sphi 0, %s58
    %s61 = sphi 0, %s60
    %s75 = sphi 0, %s61
    %s79 = sphi 0, %s79
    %s81 = sphi 0, %s79
    %s82 = sphi 0, %s81
    %s96 = sphi 0, %s82
    %s104 = sphi 0, %s106
    %s107 = sphi 0, %s104
    %s108 = sphi 0, %s107
    %s124 = sphi 0, %s108
    %s130 = sphi 0, %s132
    %s133 = sphi 0, %s130
    %s134 = sphi 0, %s133
    %s150 = sphi 0, %s134
    %s156 = sphi 0, %s158
    %s159 = sphi 0, %s156
    %s160 = sphi 0, %s159
    %s176 = sphi 0, %s160
  $region4: #{up_layer_forward.4} parent=0 // loop_header_branch
    %15 = sbr.rel (%p13) target = $region8
  $region5: #{up_layer_forward.4} parent=0 // loop_body
    %s17 = ssub.s32 %s12, 1
    %s18 = ssub.s32 %s12, 2
    %s25 = sadd.s32 1, %s20
    %p26 = scmp.ge.s32.totalorder %s25, 1
    %s27 = scalar_select %p26, 0, %s25
    %s28 = sadd.s32 1, %s19
    %s29 = scalar_select %p26, %s28, %s19
    %p30 = scmp.ge.s32.totalorder %s29, 2
    %s31 = scalar_select %p30, 0, %s29
    %s32 = ssub.s32 %s19, %s31
    %p33 = scmp.eq.s32.totalorder %s32, 0
    %s35 = sadd.s32 %s34, 1
    %s36 = scalar_select %p33, %s34, %s35
    %p39 = pneg %p33
    %p40 = scmp.eq.s32.totalorder %s12, 1
    %p41 = por %p39, %p40
    %p42 = scmp.ne.s32.totalorder %s34, %s37
    %p43 = scmp.eq.s32.totalorder %s12, 0
    %p44 = por %p42, %p43
    %p45 = scmp.ne.s32.totalorder %s34, %s37
    %p46 = scmp.eq.s32.totalorder %s17, 1
    %p47 = por %p45, %p46
    %p48 = scmp.ne.s32.totalorder %s37, %s38
    %p49 = scmp.eq.s32.totalorder %s17, 0
    %p50 = por %p48, %p49
    %p51 = scmp.ne.s32.totalorder %s37, %s38
    %p52 = scmp.eq.s32.totalorder %s18, 1
    %p53 = por %p51, %p52
    %p55 = scmp.ne.s32.totalorder %s38, %s54
    %p56 = scmp.eq.s32.totalorder %s18, 0
    %p57 = por %p55, %p56
    %s59 = sadd.s32 %s58, 1
    %p62 = scmp.eq.s32.totalorder %s12, 1
    %p63 = scmp.ne.s32.totalorder %s58, %s60
    %p64 = scmp.eq.s32.totalorder %s12, 0
    %p65 = por %p63, %p64
    %p66 = scmp.ne.s32.totalorder %s58, %s60
    %p67 = scmp.eq.s32.totalorder %s17, 1
    %p68 = por %p66, %p67
    %p69 = scmp.ne.s32.totalorder %s60, %s61
    %p70 = scmp.eq.s32.totalorder %s17, 0
    %p71 = por %p69, %p70
    %p72 = scmp.ne.s32.totalorder %s60, %s61
    %p73 = scmp.eq.s32.totalorder %s18, 1
    %p74 = por %p72, %p73
    %p76 = scmp.ne.s32.totalorder %s61, %s75
    %p77 = scmp.eq.s32.totalorder %s18, 0
    %p78 = por %p76, %p77
    %s80 = sadd.s32 %s79, 1
    %p83 = scmp.eq.s32.totalorder %s12, 1
    %p84 = scmp.ne.s32.totalorder %s79, %s81
    %p85 = scmp.eq.s32.totalorder %s12, 0
    %p86 = por %p84, %p85
    %p87 = scmp.ne.s32.totalorder %s79, %s81
    %p88 = scmp.eq.s32.totalorder %s17, 1
    %p89 = por %p87, %p88
    %p90 = scmp.ne.s32.totalorder %s81, %s82
    %p91 = scmp.eq.s32.totalorder %s17, 0
    %p92 = por %p90, %p91
    %p93 = scmp.ne.s32.totalorder %s81, %s82
    %p94 = scmp.eq.s32.totalorder %s18, 1
    %p95 = por %p93, %p94
    %p97 = scmp.ne.s32.totalorder %s82, %s96
    %p98 = scmp.eq.s32.totalorder %s18, 0
    %p99 = por %p97, %p98
    %s100 = ssub.s32 %s19, %s31
    %s101 = ssub.s32 %s20, %s27
    %s102 = sor.u32 %s100, %s101
    %p103 = scmp.eq.s32.totalorder %s102, 0
    %s105 = sadd.s32 %s104, 1
    %s106 = scalar_select %p103, %s104, %s105
    %p109 = pneg %p103
    %p110 = scmp.eq.s32.totalorder %s12, 1
    %p111 = por %p109, %p110
    %p112 = scmp.ne.s32.totalorder %s104, %s107
    %p113 = scmp.eq.s32.totalorder %s12, 0
    %p114 = por %p112, %p113
    %p115 = scmp.ne.s32.totalorder %s104, %s107
    %p116 = scmp.eq.s32.totalorder %s17, 1
    %p117 = por %p115, %p116
    %p118 = scmp.ne.s32.totalorder %s107, %s108
    %p119 = scmp.eq.s32.totalorder %s17, 0
    %p120 = por %p118, %p119
    %p121 = scmp.ne.s32.totalorder %s107, %s108
    %p122 = scmp.eq.s32.totalorder %s18, 1
    %p123 = por %p121, %p122
    %p125 = scmp.ne.s32.totalorder %s108, %s124
    %p126 = scmp.eq.s32.totalorder %s18, 0
    %p127 = por %p125, %p126
    %s128 = ssub.s32 %s19, %s31
    %p129 = scmp.eq.s32.totalorder %s128, 0
    %s131 = sadd.s32 %s130, 1
    %s132 = scalar_select %p129, %s130, %s131
    %p135 = pneg %p129
    %p136 = scmp.eq.s32.totalorder %s12, 1
    %p137 = por %p135, %p136
    %p138 = scmp.ne.s32.totalorder %s130, %s133
    %p139 = scmp.eq.s32.totalorder %s12, 0
    %p140 = por %p138, %p139
    %p141 = scmp.ne.s32.totalorder %s130, %s133
    %p142 = scmp.eq.s32.totalorder %s17, 1
    %p143 = por %p141, %p142
    %p144 = scmp.ne.s32.totalorder %s133, %s134
    %p145 = scmp.eq.s32.totalorder %s17, 0
    %p146 = por %p144, %p145
    %p147 = scmp.ne.s32.totalorder %s133, %s134
    %p148 = scmp.eq.s32.totalorder %s18, 1
    %p149 = por %p147, %p148
    %p151 = scmp.ne.s32.totalorder %s134, %s150
    %p152 = scmp.eq.s32.totalorder %s18, 0
    %p153 = por %p151, %p152
    %s154 = ssub.s32 %s19, %s31
    %p155 = scmp.eq.s32.totalorder %s154, 0
    %s157 = sadd.s32 %s156, 1
    %s158 = scalar_select %p155, %s156, %s157
    %p161 = pneg %p155
    %p162 = scmp.eq.s32.totalorder %s12, 1
    %p163 = por %p161, %p162
    %p164 = scmp.ne.s32.totalorder %s156, %s159
    %p165 = scmp.eq.s32.totalorder %s12, 0
    %p166 = por %p164, %p165
    %p167 = scmp.ne.s32.totalorder %s156, %s159
    %p168 = scmp.eq.s32.totalorder %s17, 1
    %p169 = por %p167, %p168
    %p170 = scmp.ne.s32.totalorder %s159, %s160
    %p171 = scmp.eq.s32.totalorder %s17, 0
    %p172 = por %p170, %p171
    %p173 = scmp.ne.s32.totalorder %s159, %s160
    %p174 = scmp.eq.s32.totalorder %s18, 1
    %p175 = por %p173, %p174
    %p177 = scmp.ne.s32.totalorder %s160, %s176
    %p178 = scmp.eq.s32.totalorder %s18, 0
    %p179 = por %p177, %p178
    %p180 = scmp.le.s32.totalorder 1, %s12
    %p181 = scmp.lt.s32.totalorder %s12, 3
    %p182 = pnand %p180, %p181
    %p183 = pneg %p182
    // Predicated region
    $region9: #{up_layer_forward.4} parent=5 // pred_check
      _
    $region10: #{up_layer_forward.4} parent=5 // pred_check_branch
      %185 = sbr.rel (%p182) target = $region12
    $region11: #{up_layer_forward.4} parent=5 // pred_region
      %s186 = ssub.s32 %s12, 1
      // Predicated region
      $region13: #{up_layer_forward.4} parent=11 // pred_check
        %p187 = pneg %p71
      $region14: #{up_layer_forward.4} parent=11 // pred_check_branch
        %189 = sbr.rel (%p187) target = $region16
      $region15: #{up_layer_forward.4} parent=11 // pred_region
        _
      $region16: #{up_layer_forward.4} parent=11 // pred_fallthru
        _
      // Predicated region
      $region17: #{up_layer_forward.4} parent=11 // pred_check
        %p190 = pneg %p92
      $region18: #{up_layer_forward.4} parent=11 // pred_check_branch
        %192 = sbr.rel (%p190) target = $region20
      $region19: #{up_layer_forward.4} parent=11 // pred_region
        _
      $region20: #{up_layer_forward.4} parent=11 // pred_fallthru
        _
    $region12: #{up_layer_forward.4} parent=5 // pred_fallthru
      _
    %p193 = scmp.lt.s32.totalorder %s12, 2
    // Predicated region
    $region21: #{up_layer_forward.4} parent=5 // pred_check
      %p194 = pneg %p193
    $region22: #{up_layer_forward.4} parent=5 // pred_check_branch
      %196 = sbr.rel (%p194) target = $region24
    $region23: #{up_layer_forward.4} parent=5 // pred_region
      // Predicated region
      $region25: #{up_layer_forward.4} parent=23 // pred_check
        %p197 = pneg %p44
      $region26: #{up_layer_forward.4} parent=23 // pred_check_branch
        %199 = sbr.rel (%p197) target = $region28
      $region27: #{up_layer_forward.4} parent=23 // pred_region
        %p200 = scmp.lt.s32.totalorder %s19, 1
        %s201 = scalar_select %p200, %s19, 1
        %s202 = smul.addr %s201, 36
        %s203 = smul.addr %s202, 4
        %s204 = scalar_lea.vmem %s0, %s203
      $region28: #{up_layer_forward.4} parent=23 // pred_fallthru
        _
    $region24: #{up_layer_forward.4} parent=5 // pred_fallthru
      _
    %p205 = scmp.le.s32.totalorder 1, %s12
    %p206 = scmp.lt.s32.totalorder %s12, 3
    %p207 = pnand %p205, %p206
    %p208 = pneg %p207
    // Predicated region
    $region29: #{up_layer_forward.4} parent=5 // pred_check
      _
    $region30: #{up_layer_forward.4} parent=5 // pred_check_branch
      %210 = sbr.rel (%p207) target = $region32
    $region31: #{up_layer_forward.4} parent=5 // pred_region
      %s211 = ssub.s32 %s12, 1
      %p212 = scmp.lt.s32.totalorder %s21, 1
      %s213 = scalar_select %p212, %s21, 1
      %s214 = smul.addr %s213, 36
      %s215 = smul.addr %s214, 4
      %s216 = scalar_lea.vmem %s0, %s215
      %p217 = pneg %p50
      %p218 = pneg %p47
      %p219 = pneg %p71
      %p220 = pneg %p68
      %p221 = pneg %p92
      %p222 = pneg %p89
      %p223 = pneg %p120
      %p224 = pneg %p117
      %s225 = smul.u32 32, %s22
      %p226 = scmp.lt.s32.totalorder %s21, 1
      %s227 = scalar_select %p226, %s21, 1
      %p228 = scmp.lt.s32.totalorder %s225, 31
      %s229 = scalar_select %p228, %s225, 31
      %s230 = smul.addr %s227, 32
      %s231 = sadd.s32 %s229, %s230
      %s232 = smul.addr %s231, 4
      %s233 = scalar_lea.vmem %s3, %s232
      %p234 = pneg %p146
      %p235 = pneg %p143
      %p236 = scmp.lt.s32.totalorder %s21, 1
      %s237 = scalar_select %p236, %s21, 1
      %s238 = smul.addr %s237, 8
      %s239 = scalar_lea.vmem %s4, %s238
      %p240 = pneg %p172
      %p241 = pneg %p169
      %p242 = scmp.lt.s32.totalorder %s21, 1
      %s243 = scalar_select %p242, %s21, 1
      %s244 = smul.addr %s243, 8
      %s245 = scalar_lea.vmem %s5, %s244
      %p246 = scmp.lt.s32.totalorder %s21, 1
      %s247 = scalar_select %p246, %s21, 1
      %s248 = smul.addr %s247, 36
      %s249 = smul.addr %s248, 4
      %s250 = scalar_lea.vmem %s0, %s249
      %s251 = smul.u32 32, %s22
      %p252 = scmp.lt.s32.totalorder %s21, 1
      %s253 = scalar_select %p252, %s21, 1
      %p254 = scmp.lt.s32.totalorder %s251, 31
      %s255 = scalar_select %p254, %s251, 31
      %s256 = smul.addr %s253, 32
      %s257 = sadd.s32 %s255, %s256
      %s258 = smul.addr %s257, 4
      %s259 = scalar_lea.vmem %s3, %s258
      %s260 = smul.u32 32, %s22
      %p261 = scmp.lt.s32.totalorder %s21, 1
      %s262 = scalar_select %p261, %s21, 1
      %s263 = smul.addr %s262, 8
      %s264 = scalar_lea.vmem %s4, %s263
      %p265 = scmp.lt.s32.totalorder %s21, 1
      %s266 = scalar_select %p265, %s21, 1
      %s267 = smul.addr %s266, 8
      %s268 = scalar_lea.vmem %s5, %s267
      %s270 = smul.u32 %s22, 256
      %s271 = sshra.s32 %s270, 3
      %s272 = sand.u32 %s270, 7
      %s273 = smul.addr %s271, 4
      %s274 = scalar_lea.vmem %s250, %s273
      %v275 = vld [vmem:[%s274] sm:$0xf]
      %v276 = vld [vmem:[%s274 + $0x4] sm:$0xf]
      %v277 = vld [vmem:[%s274 + $0x8] sm:$0xf]
      %v278 = vld [vmem:[%s274 + $0xc] sm:$0xf]
      %v279 = vld [vmem:[%s274 + $0x10] sm:$0xf]
      %v280 = vld [vmem:[%s274 + $0x14] sm:$0xf]
      %v281 = vld [vmem:[%s274 + $0x18] sm:$0xf]
      %v282 = vld [vmem:[%s274 + $0x1c] sm:$0xf]
      %v283 = vld [vmem:[%s274 + $0x20] sm:$0xf]
      %v284 = vld [vmem:[%s274 + $0x24] sm:$0xf]
      %v285 = vld [vmem:[%s274 + $0x28] sm:$0xf]
      %v286 = vld [vmem:[%s274 + $0x2c] sm:$0xf]
      %v287 = vld [vmem:[%s274 + $0x30] sm:$0xf]
      %v288 = vld [vmem:[%s274 + $0x34] sm:$0xf]
      %v289 = vld [vmem:[%s274 + $0x38] sm:$0xf]
      %v290 = vld [vmem:[%s274 + $0x3c] sm:$0xf]
      %v291 = vld [vmem:[%s274 + $0x40] sm:$0xf]
      %v292 = vld [vmem:[%s274 + $0x44] sm:$0xf]
      %v293 = vld [vmem:[%s274 + $0x48] sm:$0xf]
      %v294 = vld [vmem:[%s274 + $0x4c] sm:$0xf]
      %v295 = vld [vmem:[%s274 + $0x50] sm:$0xf]
      %v296 = vld [vmem:[%s274 + $0x54] sm:$0xf]
      %v297 = vld [vmem:[%s274 + $0x58] sm:$0xf]
      %v298 = vld [vmem:[%s274 + $0x5c] sm:$0xf]
      %v299 = vld [vmem:[%s274 + $0x60] sm:$0xf]
      %v300 = vld [vmem:[%s274 + $0x64] sm:$0xf]
      %v301 = vld [vmem:[%s274 + $0x68] sm:$0xf]
      %v302 = vld [vmem:[%s274 + $0x6c] sm:$0xf]
      %v303 = vld [vmem:[%s274 + $0x70] sm:$0xf]
      %v304 = vld [vmem:[%s274 + $0x74] sm:$0xf]
      %v305 = vld [vmem:[%s274 + $0x78] sm:$0xf]
      %v306 = vld [vmem:[%s274 + $0x7c] sm:$0xf]
      %v307 = vld [vmem:[%s1] sm:$0xf]
      %v308 = vld [vmem:[%s1 + $0x4] sm:$0xf]
      %v309 = vld [vmem:[%s1 + $0x8] sm:$0xf]
      %s310 = smul.u32 %s22, 16
      %s311 = sadd.s32 %s310, 1
      %s312 = smul.u32 %s311, 16
      %s313 = sshra.s32 %s312, 3
      %s314 = sand.u32 %s312, 7
      %s315 = smul.addr %s313, 4
      %s316 = scalar_lea.vmem %s250, %s315
      %v317 = vld [vmem:[%s316] sm:$0xf]
      %v318 = vld [vmem:[%s316 + $0x4] sm:$0xf]
      %v319 = vld [vmem:[%s316 + $0x8] sm:$0xf]
      %v320 = vld [vmem:[%s316 + $0xc] sm:$0xf]
      %v321 = vld [vmem:[%s316 + $0x10] sm:$0xf]
      %v322 = vld [vmem:[%s316 + $0x14] sm:$0xf]
      %v323 = vld [vmem:[%s316 + $0x18] sm:$0xf]
      %v324 = vld [vmem:[%s316 + $0x1c] sm:$0xf]
      %v325 = vld [vmem:[%s316 + $0x20] sm:$0xf]
      %v326 = vld [vmem:[%s316 + $0x24] sm:$0xf]
      %v327 = vld [vmem:[%s316 + $0x28] sm:$0xf]
      %v328 = vld [vmem:[%s316 + $0x2c] sm:$0xf]
      %v329 = vld [vmem:[%s316 + $0x30] sm:$0xf]
      %v330 = vld [vmem:[%s316 + $0x34] sm:$0xf]
      %v331 = vld [vmem:[%s316 + $0x38] sm:$0xf]
      %v332 = vld [vmem:[%s316 + $0x3c] sm:$0xf]
      %v333 = vld [vmem:[%s316 + $0x40] sm:$0xf]
      %v334 = vld [vmem:[%s316 + $0x44] sm:$0xf]
      %v335 = vld [vmem:[%s316 + $0x48] sm:$0xf]
      %v336 = vld [vmem:[%s316 + $0x4c] sm:$0xf]
      %v337 = vld [vmem:[%s316 + $0x50] sm:$0xf]
      %v338 = vld [vmem:[%s316 + $0x54] sm:$0xf]
      %v339 = vld [vmem:[%s316 + $0x58] sm:$0xf]
      %v340 = vld [vmem:[%s316 + $0x5c] sm:$0xf]
      %v341 = vld [vmem:[%s316 + $0x60] sm:$0xf]
      %v342 = vld [vmem:[%s316 + $0x64] sm:$0xf]
      %v343 = vld [vmem:[%s316 + $0x68] sm:$0xf]
      %v344 = vld [vmem:[%s316 + $0x6c] sm:$0xf]
      %v345 = vld [vmem:[%s316 + $0x70] sm:$0xf]
      %v346 = vld [vmem:[%s316 + $0x74] sm:$0xf]
      %v347 = vld [vmem:[%s316 + $0x78] sm:$0xf]
      %v348 = vld [vmem:[%s316 + $0x7c] sm:$0xf]
      %s349 = scalar_lea.vmem %s1, 12
      %v350 = vld [vmem:[%s349] sm:$0xf]
      %v351 = vld [vmem:[%s349 + $0x4] sm:$0xf]
      %v352 = vld [vmem:[%s349 + $0x8] sm:$0xf]
      %v385 = vunpack.c.l.b16 %v317
      %v386 = vunpack.c.l.b16 %v318
      %v387 = vunpack.c.l.b16 %v319
      %v388 = vunpack.c.l.b16 %v320
      %v389 = vunpack.c.l.b16 %v321
      %v390 = vunpack.c.l.b16 %v322
      %v391 = vunpack.c.l.b16 %v323
      %v392 = vunpack.c.l.b16 %v324
      %v393 = vunpack.c.l.b16 %v325
      %v394 = vunpack.c.l.b16 %v326
      %v395 = vunpack.c.l.b16 %v327
      %v396 = vunpack.c.l.b16 %v328
      %v397 = vunpack.c.l.b16 %v329
      %v398 = vunpack.c.l.b16 %v330
      %v399 = vunpack.c.l.b16 %v331
      %v400 = vunpack.c.l.b16 %v332
      %v401 = vunpack.c.l.b16 %v333
      %v402 = vunpack.c.l.b16 %v334
      %v403 = vunpack.c.l.b16 %v335
      %v404 = vunpack.c.l.b16 %v336
      %v405 = vunpack.c.l.b16 %v337
      %v406 = vunpack.c.l.b16 %v338
      %v407 = vunpack.c.l.b16 %v339
      %v408 = vunpack.c.l.b16 %v340
      %v409 = vunpack.c.l.b16 %v341
      %v410 = vunpack.c.l.b16 %v342
      %v411 = vunpack.c.l.b16 %v343
      %v412 = vunpack.c.l.b16 %v344
      %v413 = vunpack.c.l.b16 %v345
      %v414 = vunpack.c.l.b16 %v346
      %v415 = vunpack.c.l.b16 %v347
      %v416 = vunpack.c.l.b16 %v348
      %v417 = vpack.c.b16 %v386, %v385
      %v418 = vpack.c.b16 %v388, %v387
      %v419 = vpack.c.b16 %v390, %v389
      %v420 = vpack.c.b16 %v392, %v391
      %v421 = vpack.c.b16 %v394, %v393
      %v422 = vpack.c.b16 %v396, %v395
      %v423 = vpack.c.b16 %v398, %v397
      %v424 = vpack.c.b16 %v400, %v399
      %v425 = vpack.c.b16 %v402, %v401
      %v426 = vpack.c.b16 %v404, %v403
      %v427 = vpack.c.b16 %v406, %v405
      %v428 = vpack.c.b16 %v408, %v407
      %v429 = vpack.c.b16 %v410, %v409
      %v430 = vpack.c.b16 %v412, %v411
      %v431 = vpack.c.b16 %v414, %v413
      %v432 = vpack.c.b16 %v416, %v415
      %v436 = vunpack.c.l.b16 %v350
      %v437 = vunpack.c.l.b16 %v351
      %v438 = vunpack.c.l.b16 %v352
      %v439 = vpack.c.b16 %v437, %v436
      %v440 = vpack.c.b16 %v438, %v438
      %vm442 = vcmask 195584
      %v444 = vsel %vm442, %v417, 0
      %v447 = vsel %vm442, %v418, 0
      %v450 = vsel %vm442, %v419, 0
      %v453 = vsel %vm442, %v420, 0
      %v456 = vsel %vm442, %v421, 0
      %v459 = vsel %vm442, %v422, 0
      %v462 = vsel %vm442, %v423, 0
      %v465 = vsel %vm442, %v424, 0
      %v468 = vsel %vm442, %v425, 0
      %v471 = vsel %vm442, %v426, 0
      %v474 = vsel %vm442, %v427, 0
      %v477 = vsel %vm442, %v428, 0
      %v480 = vsel %vm442, %v429, 0
      %v483 = vsel %vm442, %v430, 0
      %v486 = vsel %vm442, %v431, 0
      %v489 = vsel %vm442, %v432, 0
      %vm491 = vcmask 1043456
      %v493 = vsel %vm491, %v440, 0
      %495 = vmatprep.subr.bf16.mxu0 0
      %496 = vmatpush1.bf16.msra.mxu0 %v439
      %497 = vmatprep.subr.bf16.mxu0 0
      %498 = vmatpush1.bf16.msra.mxu0 %v493
      %499 = vmatprep.subr.bf16.mxu0 0
      %500 = vmatpush1.bf16.msra.mxu0 0
      %501 = vmatprep.subr.bf16.mxu0 0
      %502 = vmatpush1.bf16.msra.mxu0 0
      %503 = vmatprep.subr.bf16.mxu0 0
      %504 = vmatpush1.bf16.msra.mxu0 0
      %505 = vmatprep.subr.bf16.mxu0 0
      %506 = vmatpush1.bf16.msra.mxu0 0
      %507 = vmatprep.subr.bf16.mxu0 0
      %508 = vmatpush1.bf16.msra.mxu0 0
      %509 = vmatprep.subr.bf16.mxu0 0
      %510 = vmatpush1.bf16.msra.mxu0 0
      %511 = vmatprep.subr.bf16.mxu0 0
      %512 = vmatpush1.bf16.msra.mxu0 0
      %513 = vmatprep.subr.bf16.mxu0 0
      %514 = vmatpush1.bf16.msra.mxu0 0
      %515 = vmatprep.subr.bf16.mxu0 0
      %516 = vmatpush1.bf16.msra.mxu0 0
      %517 = vmatprep.subr.bf16.mxu0 0
      %518 = vmatpush1.bf16.msra.mxu0 0
      %519 = vmatprep.subr.bf16.mxu0 0
      %520 = vmatpush1.bf16.msra.mxu0 0
      %521 = vmatprep.subr.bf16.mxu0 0
      %522 = vmatpush1.bf16.msra.mxu0 0
      %523 = vmatprep.subr.bf16.mxu0 0
      %524 = vmatpush1.bf16.msra.mxu0 0
      %525 = vmatprep.subr.bf16.mxu0 0
      %526 = vmatpush1.bf16.msra.mxu0 0
      %527 = vmatprep.mubr.bf16.mxu0 0
      %528 = vmatmul.mubr.bf16.gmra.mrb[0].mxu0 %v444
      %v529 = vpop.f32.mrb[0].mxu0
      %v530 = vadd.f32 0.0, %v529
      %v531 = vpop.f32.mrb[0].mxu0
      %v532 = vpop.f32.mrb[0].mxu0
      %v533 = vadd.f32 0.0, %v532
      %v534 = vpop.f32.mrb[0].mxu0
      %535 = vmatprep.mubr.bf16.mxu0 0
      %536 = vmatmul.mubr.bf16.gmra.mrb[0].mxu0 %v447
      %v537 = vpop.f32.mrb[0].mxu0
      %v538 = vadd.f32 0.0, %v537
      %v539 = vpop.f32.mrb[0].mxu0
      %v540 = vpop.f32.mrb[0].mxu0
      %v541 = vadd.f32 0.0, %v540
      %v542 = vpop.f32.mrb[0].mxu0
      %543 = vmatprep.mubr.bf16.mxu0 0
      %544 = vmatmul.mubr.bf16.gmra.mrb[0].mxu0 %v450
      %v545 = vpop.f32.mrb[0].mxu0
      %v546 = vadd.f32 0.0, %v545
      %v547 = vpop.f32.mrb[0].mxu0
      %v548 = vpop.f32.mrb[0].mxu0
      %v549 = vadd.f32 0.0, %v548
      %v550 = vpop.f32.mrb[0].mxu0
      %551 = vmatprep.mubr.bf16.mxu0 0
      %552 = vmatmul.mubr.bf16.gmra.mrb[0].mxu0 %v453
      %v553 = vpop.f32.mrb[0].mxu0
      %v554 = vadd.f32 0.0, %v553
      %v555 = vpop.f32.mrb[0].mxu0
      %v556 = vpop.f32.mrb[0].mxu0
      %v557 = vadd.f32 0.0, %v556
      %v558 = vpop.f32.mrb[0].mxu0
      %559 = vmatprep.mubr.bf16.mxu0 0
      %560 = vmatmul.mubr.bf16.gmra.mrb[0].mxu0 %v456
      %v561 = vpop.f32.mrb[0].mxu0
      %v562 = vadd.f32 0.0, %v561
      %v563 = vpop.f32.mrb[0].mxu0
      %v564 = vpop.f32.mrb[0].mxu0
      %v565 = vadd.f32 0.0, %v564
      %v566 = vpop.f32.mrb[0].mxu0
      %567 = vmatprep.mubr.bf16.mxu0 0
      %568 = vmatmul.mubr.bf16.gmra.mrb[0].mxu0 %v459
      %v569 = vpop.f32.mrb[0].mxu0
      %v570 = vadd.f32 0.0, %v569
      %v571 = vpop.f32.mrb[0].mxu0
      %v572 = vpop.f32.mrb[0].mxu0
      %v573 = vadd.f32 0.0, %v572
      %v574 = vpop.f32.mrb[0].mxu0
      %575 = vmatprep.mubr.bf16.mxu0 0
      %576 = vmatmul.mubr.bf16.gmra.mrb[0].mxu0 %v462
      %v577 = vpop.f32.mrb[0].mxu0
      %v578 = vadd.f32 0.0, %v577
      %v579 = vpop.f32.mrb[0].mxu0
      %v580 = vpop.f32.mrb[0].mxu0
      %v581 = vadd.f32 0.0, %v580
      %v582 = vpop.f32.mrb[0].mxu0
      %583 = vmatprep.mubr.bf16.mxu0 0
      %584 = vmatmul.mubr.bf16.gmra.mrb[0].mxu0 %v465
      %v585 = vpop.f32.mrb[0].mxu0
      %v586 = vadd.f32 0.0, %v585
      %v587 = vpop.f32.mrb[0].mxu0
      %v588 = vpop.f32.mrb[0].mxu0
      %v589 = vadd.f32 0.0, %v588
      %v590 = vpop.f32.mrb[0].mxu0
      %591 = vmatprep.mubr.bf16.mxu0 0
      %592 = vmatmul.mubr.bf16.gmra.mrb[0].mxu0 %v468
      %v593 = vpop.f32.mrb[0].mxu0
      %v594 = vadd.f32 0.0, %v593
      %v595 = vpop.f32.mrb[0].mxu0
      %v596 = vpop.f32.mrb[0].mxu0
      %v597 = vadd.f32 0.0, %v596
      %v598 = vpop.f32.mrb[0].mxu0
      %599 = vmatprep.mubr.bf16.mxu0 0
      %600 = vmatmul.mubr.bf16.gmra.mrb[0].mxu0 %v471
      %v601 = vpop.f32.mrb[0].mxu0
      %v602 = vadd.f32 0.0, %v601
      %v603 = vpop.f32.mrb[0].mxu0
      %v604 = vpop.f32.mrb[0].mxu0
      %v605 = vadd.f32 0.0, %v604
      %v606 = vpop.f32.mrb[0].mxu0
      %607 = vmatprep.mubr.bf16.mxu0 0
      %608 = vmatmul.mubr.bf16.gmra.mrb[0].mxu0 %v474
      %v609 = vpop.f32.mrb[0].mxu0
      %v610 = vadd.f32 0.0, %v609
      %v611 = vpop.f32.mrb[0].mxu0
      %v612 = vpop.f32.mrb[0].mxu0
      %v613 = vadd.f32 0.0, %v612
      %v614 = vpop.f32.mrb[0].mxu0
      %615 = vmatprep.mubr.bf16.mxu0 0
      %616 = vmatmul.mubr.bf16.gmra.mrb[0].mxu0 %v477
      %v617 = vpop.f32.mrb[0].mxu0
      %v618 = vadd.f32 0.0, %v617
      %v619 = vpop.f32.mrb[0].mxu0
      %v620 = vpop.f32.mrb[0].mxu0
      %v621 = vadd.f32 0.0, %v620
      %v622 = vpop.f32.mrb[0].mxu0
      %623 = vmatprep.mubr.bf16.mxu0 0
      %624 = vmatmul.mubr.bf16.gmra.mrb[0].mxu0 %v480
      %v625 = vpop.f32.mrb[0].mxu0
      %v626 = vadd.f32 0.0, %v625
      %v627 = vpop.f32.mrb[0].mxu0
      %v628 = vpop.f32.mrb[0].mxu0
      %v629 = vadd.f32 0.0, %v628
      %v630 = vpop.f32.mrb[0].mxu0
      %631 = vmatprep.mubr.bf16.mxu0 0
      %632 = vmatmul.mubr.bf16.gmra.mrb[0].mxu0 %v483
      %v633 = vpop.f32.mrb[0].mxu0
      %v634 = vadd.f32 0.0, %v633
      %v635 = vpop.f32.mrb[0].mxu0
      %v636 = vpop.f32.mrb[0].mxu0
      %v637 = vadd.f32 0.0, %v636
      %v638 = vpop.f32.mrb[0].mxu0
      %639 = vmatprep.mubr.bf16.mxu0 0
      %640 = vmatmul.mubr.bf16.gmra.mrb[0].mxu0 %v486
      %v641 = vpop.f32.mrb[0].mxu0
      %v642 = vadd.f32 0.0, %v641
      %v643 = vpop.f32.mrb[0].mxu0
      %v644 = vpop.f32.mrb[0].mxu0
      %v645 = vadd.f32 0.0, %v644
      %v646 = vpop.f32.mrb[0].mxu0
      %647 = vmatprep.mubr.bf16.mxu0 0
      %648 = vmatmul.mubr.bf16.gmra.mrb[0].mxu0 %v489
      %v649 = vpop.f32.mrb[0].mxu0
      %v650 = vadd.f32 0.0, %v649
      %v651 = vpop.f32.mrb[0].mxu0
      %v652 = vpop.f32.mrb[0].mxu0
      %v653 = vadd.f32 0.0, %v652
      %v654 = vpop.f32.mrb[0].mxu0
      %655 = vdwg.mxu0
      %v688 = vunpack.c.l.b16 %v275
      %v689 = vunpack.c.l.b16 %v276
      %v690 = vunpack.c.l.b16 %v277
      %v691 = vunpack.c.l.b16 %v278
      %v692 = vunpack.c.l.b16 %v279
      %v693 = vunpack.c.l.b16 %v280
      %v694 = vunpack.c.l.b16 %v281
      %v695 = vunpack.c.l.b16 %v282
      %v696 = vunpack.c.l.b16 %v283
      %v697 = vunpack.c.l.b16 %v284
      %v698 = vunpack.c.l.b16 %v285
      %v699 = vunpack.c.l.b16 %v286
      %v700 = vunpack.c.l.b16 %v287
      %v701 = vunpack.c.l.b16 %v288
      %v702 = vunpack.c.l.b16 %v289
      %v703 = vunpack.c.l.b16 %v290
      %v704 = vunpack.c.l.b16 %v291
      %v705 = vunpack.c.l.b16 %v292
      %v706 = vunpack.c.l.b16 %v293
      %v707 = vunpack.c.l.b16 %v294
      %v708 = vunpack.c.l.b16 %v295
      %v709 = vunpack.c.l.b16 %v296
      %v710 = vunpack.c.l.b16 %v297
      %v711 = vunpack.c.l.b16 %v298
      %v712 = vunpack.c.l.b16 %v299
      %v713 = vunpack.c.l.b16 %v300
      %v714 = vunpack.c.l.b16 %v301
      %v715 = vunpack.c.l.b16 %v302
      %v716 = vunpack.c.l.b16 %v303
      %v717 = vunpack.c.l.b16 %v304
      %v718 = vunpack.c.l.b16 %v305
      %v719 = vunpack.c.l.b16 %v306
      %v720 = vpack.c.b16 %v689, %v688
      %v721 = vpack.c.b16 %v691, %v690
      %v722 = vpack.c.b16 %v693, %v692
      %v723 = vpack.c.b16 %v695, %v694
      %v724 = vpack.c.b16 %v697, %v696
      %v725 = vpack.c.b16 %v699, %v698
      %v726 = vpack.c.b16 %v701, %v700
      %v727 = vpack.c.b16 %v703, %v702
      %v728 = vpack.c.b16 %v705, %v704
      %v729 = vpack.c.b16 %v707, %v706
      %v730 = vpack.c.b16 %v709, %v708
      %v731 = vpack.c.b16 %v711, %v710
      %v732 = vpack.c.b16 %v713, %v712
      %v733 = vpack.c.b16 %v715, %v714
      %v734 = vpack.c.b16 %v717, %v716
      %v735 = vpack.c.b16 %v719, %v718
      %v739 = vunpack.c.l.b16 %v307
      %v740 = vunpack.c.l.b16 %v308
      %v741 = vunpack.c.l.b16 %v309
      %v742 = vpack.c.b16 %v740, %v739
      %v743 = vpack.c.b16 %v741, %v741
      %v746 = vsel %vm442, %v720, 0
      %v749 = vsel %vm442, %v721, 0
      %v752 = vsel %vm442, %v722, 0
      %v755 = vsel %vm442, %v723, 0
      %v758 = vsel %vm442, %v724, 0
      %v761 = vsel %vm442, %v725, 0
      %v764 = vsel %vm442, %v726, 0
      %v767 = vsel %vm442, %v727, 0
      %v770 = vsel %vm442, %v728, 0
      %v773 = vsel %vm442, %v729, 0
      %v776 = vsel %vm442, %v730, 0
      %v779 = vsel %vm442, %v731, 0
      %v782 = vsel %vm442, %v732, 0
      %v785 = vsel %vm442, %v733, 0
      %v788 = vsel %vm442, %v734, 0
      %v791 = vsel %vm442, %v735, 0
      %v794 = vsel %vm491, %v743, 0
      %796 = vmatprep.subr.bf16.mxu0 0
      %797 = vmatpush1.bf16.msra.mxu0 %v742
      %798 = vmatprep.subr.bf16.mxu0 0
      %799 = vmatpush1.bf16.msra.mxu0 %v794
      %800 = vmatprep.subr.bf16.mxu0 0
      %801 = vmatpush1.bf16.msra.mxu0 0
      %802 = vmatprep.subr.bf16.mxu0 0
      %803 = vmatpush1.bf16.msra.mxu0 0
      %804 = vmatprep.subr.bf16.mxu0 0
      %805 = vmatpush1.bf16.msra.mxu0 0
      %806 = vmatprep.subr.bf16.mxu0 0
      %807 = vmatpush1.bf16.msra.mxu0 0
      %808 = vmatprep.subr.bf16.mxu0 0
      %809 = vmatpush1.bf16.msra.mxu0 0
      %810 = vmatprep.subr.bf16.mxu0 0
      %811 = vmatpush1.bf16.msra.mxu0 0
      %812 = vmatprep.subr.bf16.mxu0 0
      %813 = vmatpush1.bf16.msra.mxu0 0
      %814 = vmatprep.subr.bf16.mxu0 0
      %815 = vmatpush1.bf16.msra.mxu0 0
      %816 = vmatprep.subr.bf16.mxu0 0
      %817 = vmatpush1.bf16.msra.mxu0 0
      %818 = vmatprep.subr.bf16.mxu0 0
      %819 = vmatpush1.bf16.msra.mxu0 0
      %820 = vmatprep.subr.bf16.mxu0 0
      %821 = vmatpush1.bf16.msra.mxu0 0
      %822 = vmatprep.subr.bf16.mxu0 0
      %823 = vmatpush1.bf16.msra.mxu0 0
      %824 = vmatprep.subr.bf16.mxu0 0
      %825 = vmatpush1.bf16.msra.mxu0 0
      %826 = vmatprep.subr.bf16.mxu0 0
      %827 = vmatpush1.bf16.msra.mxu0 0
      %828 = vmatprep.mubr.bf16.mxu0 0
      %829 = vmatmul.mubr.bf16.gmra.mrb[0].mxu0 %v746
      %v830 = vpop.f32.mrb[0].mxu0
      %v831 = vadd.f32 %v530, %v830
      %v832 = vpop.f32.mrb[0].mxu0
      %v833 = vpop.f32.mrb[0].mxu0
      %v834 = vadd.f32 %v533, %v833
      %v835 = vpop.f32.mrb[0].mxu0
      %836 = vmatprep.mubr.bf16.mxu0 0
      %837 = vmatmul.mubr.bf16.gmra.mrb[0].mxu0 %v749
      %v838 = vpop.f32.mrb[0].mxu0
      %v839 = vadd.f32 %v538, %v838
      %v840 = vpop.f32.mrb[0].mxu0
      %v841 = vpop.f32.mrb[0].mxu0
      %v842 = vadd.f32 %v541, %v841
      %v843 = vpop.f32.mrb[0].mxu0
      %844 = vmatprep.mubr.bf16.mxu0 0
      %845 = vmatmul.mubr.bf16.gmra.mrb[0].mxu0 %v752
      %v846 = vpop.f32.mrb[0].mxu0
      %v847 = vadd.f32 %v546, %v846
      %v848 = vpop.f32.mrb[0].mxu0
      %v849 = vpop.f32.mrb[0].mxu0
      %v850 = vadd.f32 %v549, %v849
      %v851 = vpop.f32.mrb[0].mxu0
      %852 = vmatprep.mubr.bf16.mxu0 0
      %853 = vmatmul.mubr.bf16.gmra.mrb[0].mxu0 %v755
      %v854 = vpop.f32.mrb[0].mxu0
      %v855 = vadd.f32 %v554, %v854
      %v856 = vpop.f32.mrb[0].mxu0
      %v857 = vpop.f32.mrb[0].mxu0
      %v858 = vadd.f32 %v557, %v857
      %v859 = vpop.f32.mrb[0].mxu0
      %860 = vmatprep.mubr.bf16.mxu0 0
      %861 = vmatmul.mubr.bf16.gmra.mrb[0].mxu0 %v758
      %v862 = vpop.f32.mrb[0].mxu0
      %v863 = vadd.f32 %v562, %v862
      %v864 = vpop.f32.mrb[0].mxu0
      %v865 = vpop.f32.mrb[0].mxu0
      %v866 = vadd.f32 %v565, %v865
      %v867 = vpop.f32.mrb[0].mxu0
      %868 = vmatprep.mubr.bf16.mxu0 0
      %869 = vmatmul.mubr.bf16.gmra.mrb[0].mxu0 %v761
      %v870 = vpop.f32.mrb[0].mxu0
      %v871 = vadd.f32 %v570, %v870
      %v872 = vpop.f32.mrb[0].mxu0
      %v873 = vpop.f32.mrb[0].mxu0
      %v874 = vadd.f32 %v573, %v873
      %v875 = vpop.f32.mrb[0].mxu0
      %876 = vmatprep.mubr.bf16.mxu0 0
      %877 = vmatmul.mubr.bf16.gmra.mrb[0].mxu0 %v764
      %v878 = vpop.f32.mrb[0].mxu0
      %v879 = vadd.f32 %v578, %v878
      %v880 = vpop.f32.mrb[0].mxu0
      %v881 = vpop.f32.mrb[0].mxu0
      %v882 = vadd.f32 %v581, %v881
      %v883 = vpop.f32.mrb[0].mxu0
      %884 = vmatprep.mubr.bf16.mxu0 0
      %885 = vmatmul.mubr.bf16.gmra.mrb[0].mxu0 %v767
      %v886 = vpop.f32.mrb[0].mxu0
      %v887 = vadd.f32 %v586, %v886
      %v888 = vpop.f32.mrb[0].mxu0
      %v889 = vpop.f32.mrb[0].mxu0
      %v890 = vadd.f32 %v589, %v889
      %v891 = vpop.f32.mrb[0].mxu0
      %892 = vmatprep.mubr.bf16.mxu0 0
      %893 = vmatmul.mubr.bf16.gmra.mrb[0].mxu0 %v770
      %v894 = vpop.f32.mrb[0].mxu0
      %v895 = vadd.f32 %v594, %v894
      %v896 = vpop.f32.mrb[0].mxu0
      %v897 = vpop.f32.mrb[0].mxu0
      %v898 = vadd.f32 %v597, %v897
      %v899 = vpop.f32.mrb[0].mxu0
      %900 = vmatprep.mubr.bf16.mxu0 0
      %901 = vmatmul.mubr.bf16.gmra.mrb[0].mxu0 %v773
      %v902 = vpop.f32.mrb[0].mxu0
      %v903 = vadd.f32 %v602, %v902
      %v904 = vpop.f32.mrb[0].mxu0
      %v905 = vpop.f32.mrb[0].mxu0
      %v906 = vadd.f32 %v605, %v905
      %v907 = vpop.f32.mrb[0].mxu0
      %908 = vmatprep.mubr.bf16.mxu0 0
      %909 = vmatmul.mubr.bf16.gmra.mrb[0].mxu0 %v776
      %v910 = vpop.f32.mrb[0].mxu0
      %v911 = vadd.f32 %v610, %v910
      %v912 = vpop.f32.mrb[0].mxu0
      %v913 = vpop.f32.mrb[0].mxu0
      %v914 = vadd.f32 %v613, %v913
      %v915 = vpop.f32.mrb[0].mxu0
      %916 = vmatprep.mubr.bf16.mxu0 0
      %917 = vmatmul.mubr.bf16.gmra.mrb[0].mxu0 %v779
      %v918 = vpop.f32.mrb[0].mxu0
      %v919 = vadd.f32 %v618, %v918
      %v920 = vpop.f32.mrb[0].mxu0
      %v921 = vpop.f32.mrb[0].mxu0
      %v922 = vadd.f32 %v621, %v921
      %v923 = vpop.f32.mrb[0].mxu0
      %924 = vmatprep.mubr.bf16.mxu0 0
      %925 = vmatmul.mubr.bf16.gmra.mrb[0].mxu0 %v782
      %v926 = vpop.f32.mrb[0].mxu0
      %v927 = vadd.f32 %v626, %v926
      %v928 = vpop.f32.mrb[0].mxu0
      %v929 = vpop.f32.mrb[0].mxu0
      %v930 = vadd.f32 %v629, %v929
      %v931 = vpop.f32.mrb[0].mxu0
      %932 = vmatprep.mubr.bf16.mxu0 0
      %933 = vmatmul.mubr.bf16.gmra.mrb[0].mxu0 %v785
      %v934 = vpop.f32.mrb[0].mxu0
      %v935 = vadd.f32 %v634, %v934
      %v936 = vpop.f32.mrb[0].mxu0
      %v937 = vpop.f32.mrb[0].mxu0
      %v938 = vadd.f32 %v637, %v937
      %v939 = vpop.f32.mrb[0].mxu0
      %940 = vmatprep.mubr.bf16.mxu0 0
      %941 = vmatmul.mubr.bf16.gmra.mrb[0].mxu0 %v788
      %v942 = vpop.f32.mrb[0].mxu0
      %v943 = vadd.f32 %v642, %v942
      %v944 = vpop.f32.mrb[0].mxu0
      %v945 = vpop.f32.mrb[0].mxu0
      %v946 = vadd.f32 %v645, %v945
      %v947 = vpop.f32.mrb[0].mxu0
      %948 = vmatprep.mubr.bf16.mxu0 0
      %949 = vmatmul.mubr.bf16.gmra.mrb[0].mxu0 %v791
      %v950 = vpop.f32.mrb[0].mxu0
      %v951 = vadd.f32 %v650, %v950
      %v952 = vpop.f32.mrb[0].mxu0
      %v953 = vpop.f32.mrb[0].mxu0
      %v954 = vadd.f32 %v653, %v953
      %v955 = vpop.f32.mrb[0].mxu0
      %956 = vdwg.mxu0
      %s957 = sadd.s32 %s310, 2
      %s958 = smul.u32 %s957, 16
      %s959 = sshra.s32 %s958, 3
      %s960 = sand.u32 %s958, 7
      %s961 = smul.addr %s959, 4
      %s962 = scalar_lea.vmem %s250, %s961
      %v963 = vld [vmem:[%s962] sm:$0xf]
      %v964 = vld [vmem:[%s962 + $0x4] sm:$0xf]
      %v965 = vld [vmem:[%s962 + $0x8] sm:$0xf]
      %v966 = vld [vmem:[%s962 + $0xc] sm:$0xf]
      %v967 = vld [vmem:[%s962 + $0x10] sm:$0xf]
      %v968 = vld [vmem:[%s962 + $0x14] sm:$0xf]
      %v969 = vld [vmem:[%s962 + $0x18] sm:$0xf]
      %v970 = vld [vmem:[%s962 + $0x1c] sm:$0xf]
      %v971 = vld [vmem:[%s962 + $0x20] sm:$0xf]
      %v972 = vld [vmem:[%s962 + $0x24] sm:$0xf]
      %v973 = vld [vmem:[%s962 + $0x28] sm:$0xf]
      %v974 = vld [vmem:[%s962 + $0x2c] sm:$0xf]
      %v975 = vld [vmem:[%s962 + $0x30] sm:$0xf]
      %v976 = vld [vmem:[%s962 + $0x34] sm:$0xf]
      %v977 = vld [vmem:[%s962 + $0x38] sm:$0xf]
      %v978 = vld [vmem:[%s962 + $0x3c] sm:$0xf]
      %v979 = vld [vmem:[%s962 + $0x40] sm:$0xf]
      %v980 = vld [vmem:[%s962 + $0x44] sm:$0xf]
      %v981 = vld [vmem:[%s962 + $0x48] sm:$0xf]
      %v982 = vld [vmem:[%s962 + $0x4c] sm:$0xf]
      %v983 = vld [vmem:[%s962 + $0x50] sm:$0xf]
      %v984 = vld [vmem:[%s962 + $0x54] sm:$0xf]
      %v985 = vld [vmem:[%s962 + $0x58] sm:$0xf]
      %v986 = vld [vmem:[%s962 + $0x5c] sm:$0xf]
      %v987 = vld [vmem:[%s962 + $0x60] sm:$0xf]
      %v988 = vld [vmem:[%s962 + $0x64] sm:$0xf]
      %v989 = vld [vmem:[%s962 + $0x68] sm:$0xf]
      %v990 = vld [vmem:[%s962 + $0x6c] sm:$0xf]
      %v991 = vld [vmem:[%s962 + $0x70] sm:$0xf]
      %v992 = vld [vmem:[%s962 + $0x74] sm:$0xf]
      %v993 = vld [vmem:[%s962 + $0x78] sm:$0xf]
      %v994 = vld [vmem:[%s962 + $0x7c] sm:$0xf]
      %s995 = scalar_lea.vmem %s1, 24
      %v996 = vld [vmem:[%s995] sm:$0xf]
      %v997 = vld [vmem:[%s995 + $0x4] sm:$0xf]
      %v998 = vld [vmem:[%s995 + $0x8] sm:$0xf]
      %v1031 = vunpack.c.l.b16 %v963
      %v1032 = vunpack.c.l.b16 %v964
      %v1033 = vunpack.c.l.b16 %v965
      %v1034 = vunpack.c.l.b16 %v966
      %v1035 = vunpack.c.l.b16 %v967
      %v1036 = vunpack.c.l.b16 %v968
      %v1037 = vunpack.c.l.b16 %v969
      %v1038 = vunpack.c.l.b16 %v970
      %v1039 = vunpack.c.l.b16 %v971
      %v1040 = vunpack.c.l.b16 %v972
      %v1041 = vunpack.c.l.b16 %v973
      %v1042 = vunpack.c.l.b16 %v974
      %v1043 = vunpack.c.l.b16 %v975
      %v1044 = vunpack.c.l.b16 %v976
      %v1045 = vunpack.c.l.b16 %v977
      %v1046 = vunpack.c.l.b16 %v978
      %v1047 = vunpack.c.l.b16 %v979
      %v1048 = vunpack.c.l.b16 %v980
      %v1049 = vunpack.c.l.b16 %v981
      %v1050 = vunpack.c.l.b16 %v982
      %v1051 = vunpack.c.l.b16 %v983
      %v1052 = vunpack.c.l.b16 %v984
      %v1053 = vunpack.c.l.b16 %v985
      %v1054 = vunpack.c.l.b16 %v986
      %v1055 = vunpack.c.l.b16 %v987
      %v1056 = vunpack.c.l.b16 %v988
      %v1057 = vunpack.c.l.b16 %v989
      %v1058 = vunpack.c.l.b16 %v990
      %v1059 = vunpack.c.l.b16 %v991
      %v1060 = vunpack.c.l.b16 %v992
      %v1061 = vunpack.c.l.b16 %v993
      %v1062 = vunpack.c.l.b16 %v994
      %v1063 = vpack.c.b16 %v1032, %v1031
      %v1064 = vpack.c.b16 %v1034, %v1033
      %v1065 = vpack.c.b16 %v1036, %v1035
      %v1066 = vpack.c.b16 %v1038, %v1037
      %v1067 = vpack.c.b16 %v1040, %v1039
      %v1068 = vpack.c.b16 %v1042, %v1041
      %v1069 = vpack.c.b16 %v1044, %v1043
      %v1070 = vpack.c.b16 %v1046, %v1045
      %v1071 = vpack.c.b16 %v1048, %v1047
      %v1072 = vpack.c.b16 %v1050, %v1049
      %v1073 = vpack.c.b16 %v1052, %v1051
      %v1074 = vpack.c.b16 %v1054, %v1053
      %v1075 = vpack.c.b16 %v1056, %v1055
      %v1076 = vpack.c.b16 %v1058, %v1057
      %v1077 = vpack.c.b16 %v1060, %v1059
      %v1078 = vpack.c.b16 %v1062, %v1061
      %v1082 = vunpack.c.l.b16 %v996
      %v1083 = vunpack.c.l.b16 %v997
      %v1084 = vunpack.c.l.b16 %v998
      %v1085 = vpack.c.b16 %v1083, %v1082
      %v1086 = vpack.c.b16 %v1084, %v1084
      %v1089 = vsel %vm442, %v1063, 0
      %v1092 = vsel %vm442, %v1064, 0
      %v1095 = vsel %vm442, %v1065, 0
      %v1098 = vsel %vm442, %v1066, 0
      %v1101 = vsel %vm442, %v1067, 0
      %v1104 = vsel %vm442, %v1068, 0
      %v1107 = vsel %vm442, %v1069, 0
      %v1110 = vsel %vm442, %v1070, 0
      %v1113 = vsel %vm442, %v1071, 0
      %v1116 = vsel %vm442, %v1072, 0
      %v1119 = vsel %vm442, %v1073, 0
      %v1122 = vsel %vm442, %v1074, 0
      %v1125 = vsel %vm442, %v1075, 0
      %v1128 = vsel %vm442, %v1076, 0
      %v1131 = vsel %vm442, %v1077, 0
      %v1134 = vsel %vm442, %v1078, 0
      %v1137 = vsel %vm491, %v1086, 0
      %1139 = vmatprep.subr.bf16.mxu0 0
      %1140 = vmatpush1.bf16.msra.mxu0 %v1085
      %1141 = vmatprep.subr.bf16.mxu0 0
      %1142 = vmatpush1.bf16.msra.mxu0 %v1137
      %1143 = vmatprep.subr.bf16.mxu0 0
      %1144 = vmatpush1.bf16.msra.mxu0 0
      %1145 = vmatprep.subr.bf16.mxu0 0
      %1146 = vmatpush1.bf16.msra.mxu0 0
      %1147 = vmatprep.subr.bf16.mxu0 0
      %1148 = vmatpush1.bf16.msra.mxu0 0
      %1149 = vmatprep.subr.bf16.mxu0 0
      %1150 = vmatpush1.bf16.msra.mxu0 0
      %1151 = vmatprep.subr.bf16.mxu0 0
      %1152 = vmatpush1.bf16.msra.mxu0 0
      %1153 = vmatprep.subr.bf16.mxu0 0
      %1154 = vmatpush1.bf16.msra.mxu0 0
      %1155 = vmatprep.subr.bf16.mxu0 0
      %1156 = vmatpush1.bf16.msra.mxu0 0
      %1157 = vmatprep.subr.bf16.mxu0 0
      %1158 = vmatpush1.bf16.msra.mxu0 0
      %1159 = vmatprep.subr.bf16.mxu0 0
      %1160 = vmatpush1.bf16.msra.mxu0 0
      %1161 = vmatprep.subr.bf16.mxu0 0
      %1162 = vmatpush1.bf16.msra.mxu0 0
      %1163 = vmatprep.subr.bf16.mxu0 0
      %1164 = vmatpush1.bf16.msra.mxu0 0
      %1165 = vmatprep.subr.bf16.mxu0 0
      %1166 = vmatpush1.bf16.msra.mxu0 0
      %1167 = vmatprep.subr.bf16.mxu0 0
      %1168 = vmatpush1.bf16.msra.mxu0 0
      %1169 = vmatprep.subr.bf16.mxu0 0
      %1170 = vmatpush1.bf16.msra.mxu0 0
      %1171 = vmatprep.mubr.bf16.mxu0 0
      %1172 = vmatmul.mubr.bf16.gmra.mrb[0].mxu0 %v1089
      %v1173 = vpop.f32.mrb[0].mxu0
      %v1174 = vadd.f32 0.0, %v1173
      %v1175 = vpop.f32.mrb[0].mxu0
      %v1176 = vpop.f32.mrb[0].mxu0
      %v1177 = vadd.f32 0.0, %v1176
      %v1178 = vpop.f32.mrb[0].mxu0
      %1179 = vmatprep.mubr.bf16.mxu0 0
      %1180 = vmatmul.mubr.bf16.gmra.mrb[0].mxu0 %v1092
      %v1181 = vpop.f32.mrb[0].mxu0
      %v1182 = vadd.f32 0.0, %v1181
      %v1183 = vpop.f32.mrb[0].mxu0
      %v1184 = vpop.f32.mrb[0].mxu0
      %v1185 = vadd.f32 0.0, %v1184
      %v1186 = vpop.f32.mrb[0].mxu0
      %1187 = vmatprep.mubr.bf16.mxu0 0
      %1188 = vmatmul.mubr.bf16.gmra.mrb[0].mxu0 %v1095
      %v1189 = vpop.f32.mrb[0].mxu0
      %v1190 = vadd.f32 0.0, %v1189
      %v1191 = vpop.f32.mrb[0].mxu0
      %v1192 = vpop.f32.mrb[0].mxu0
      %v1193 = vadd.f32 0.0, %v1192
      %v1194 = vpop.f32.mrb[0].mxu0
      %1195 = vmatprep.mubr.bf16.mxu0 0
      %1196 = vmatmul.mubr.bf16.gmra.mrb[0].mxu0 %v1098
      %v1197 = vpop.f32.mrb[0].mxu0
      %v1198 = vadd.f32 0.0, %v1197
      %v1199 = vpop.f32.mrb[0].mxu0
      %v1200 = vpop.f32.mrb[0].mxu0
      %v1201 = vadd.f32 0.0, %v1200
      %v1202 = vpop.f32.mrb[0].mxu0
      %1203 = vmatprep.mubr.bf16.mxu0 0
      %1204 = vmatmul.mubr.bf16.gmra.mrb[0].mxu0 %v1101
      %v1205 = vpop.f32.mrb[0].mxu0
      %v1206 = vadd.f32 0.0, %v1205
      %v1207 = vpop.f32.mrb[0].mxu0
      %v1208 = vpop.f32.mrb[0].mxu0
      %v1209 = vadd.f32 0.0, %v1208
      %v1210 = vpop.f32.mrb[0].mxu0
      %1211 = vmatprep.mubr.bf16.mxu0 0
      %1212 = vmatmul.mubr.bf16.gmra.mrb[0].mxu0 %v1104
      %v1213 = vpop.f32.mrb[0].mxu0
      %v1214 = vadd.f32 0.0, %v1213
      %v1215 = vpop.f32.mrb[0].mxu0
      %v1216 = vpop.f32.mrb[0].mxu0
      %v1217 = vadd.f32 0.0, %v1216
      %v1218 = vpop.f32.mrb[0].mxu0
      %1219 = vmatprep.mubr.bf16.mxu0 0
      %1220 = vmatmul.mubr.bf16.gmra.mrb[0].mxu0 %v1107
      %v1221 = vpop.f32.mrb[0].mxu0
      %v1222 = vadd.f32 0.0, %v1221
      %v1223 = vpop.f32.mrb[0].mxu0
      %v1224 = vpop.f32.mrb[0].mxu0
      %v1225 = vadd.f32 0.0, %v1224
      %v1226 = vpop.f32.mrb[0].mxu0
      %1227 = vmatprep.mubr.bf16.mxu0 0
      %1228 = vmatmul.mubr.bf16.gmra.mrb[0].mxu0 %v1110
      %v1229 = vpop.f32.mrb[0].mxu0
      %v1230 = vadd.f32 0.0, %v1229
      %v1231 = vpop.f32.mrb[0].mxu0
      %v1232 = vpop.f32.mrb[0].mxu0
      %v1233 = vadd.f32 0.0, %v1232
      %v1234 = vpop.f32.mrb[0].mxu0
      %1235 = vmatprep.mubr.bf16.mxu0 0
      %1236 = vmatmul.mubr.bf16.gmra.mrb[0].mxu0 %v1113
      %v1237 = vpop.f32.mrb[0].mxu0
      %v1238 = vadd.f32 0.0, %v1237
      %v1239 = vpop.f32.mrb[0].mxu0
      %v1240 = vpop.f32.mrb[0].mxu0
      %v1241 = vadd.f32 0.0, %v1240
      %v1242 = vpop.f32.mrb[0].mxu0
      %1243 = vmatprep.mubr.bf16.mxu0 0
      %1244 = vmatmul.mubr.bf16.gmra.mrb[0].mxu0 %v1116
      %v1245 = vpop.f32.mrb[0].mxu0
      %v1246 = vadd.f32 0.0, %v1245
      %v1247 = vpop.f32.mrb[0].mxu0
      %v1248 = vpop.f32.mrb[0].mxu0
      %v1249 = vadd.f32 0.0, %v1248
      %v1250 = vpop.f32.mrb[0].mxu0
      %1251 = vmatprep.mubr.bf16.mxu0 0
      %1252 = vmatmul.mubr.bf16.gmra.mrb[0].mxu0 %v1119
      %v1253 = vpop.f32.mrb[0].mxu0
      %v1254 = vadd.f32 0.0, %v1253
      %v1255 = vpop.f32.mrb[0].mxu0
      %v1256 = vpop.f32.mrb[0].mxu0
      %v1257 = vadd.f32 0.0, %v1256
      %v1258 = vpop.f32.mrb[0].mxu0
      %1259 = vmatprep.mubr.bf16.mxu0 0
      %1260 = vmatmul.mubr.bf16.gmra.mrb[0].mxu0 %v1122
      %v1261 = vpop.f32.mrb[0].mxu0
      %v1262 = vadd.f32 0.0, %v1261
      %v1263 = vpop.f32.mrb[0].mxu0
      %v1264 = vpop.f32.mrb[0].mxu0
      %v1265 = vadd.f32 0.0, %v1264
      %v1266 = vpop.f32.mrb[0].mxu0
      %1267 = vmatprep.mubr.bf16.mxu0 0
      %1268 = vmatmul.mubr.bf16.gmra.mrb[0].mxu0 %v1125
      %v1269 = vpop.f32.mrb[0].mxu0
      %v1270 = vadd.f32 0.0, %v1269
      %v1271 = vpop.f32.mrb[0].mxu0
      %v1272 = vpop.f32.mrb[0].mxu0
      %v1273 = vadd.f32 0.0, %v1272
      %v1274 = vpop.f32.mrb[0].mxu0
      %1275 = vmatprep.mubr.bf16.mxu0 0
      %1276 = vmatmul.mubr.bf16.gmra.mrb[0].mxu0 %v1128
      %v1277 = vpop.f32.mrb[0].mxu0
      %v1278 = vadd.f32 0.0, %v1277
      %v1279 = vpop.f32.mrb[0].mxu0
      %v1280 = vpop.f32.mrb[0].mxu0
      %v1281 = vadd.f32 0.0, %v1280
      %v1282 = vpop.f32.mrb[0].mxu0
      %1283 = vmatprep.mubr.bf16.mxu0 0
      %1284 = vmatmul.mubr.bf16.gmra.mrb[0].mxu0 %v1131
      %v1285 = vpop.f32.mrb[0].mxu0
      %v1286 = vadd.f32 0.0, %v1285
      %v1287 = vpop.f32.mrb[0].mxu0
      %v1288 = vpop.f32.mrb[0].mxu0
      %v1289 = vadd.f32 0.0, %v1288
      %v1290 = vpop.f32.mrb[0].mxu0
      %1291 = vmatprep.mubr.bf16.mxu0 0
      %1292 = vmatmul.mubr.bf16.gmra.mrb[0].mxu0 %v1134
      %v1293 = vpop.f32.mrb[0].mxu0
      %v1294 = vadd.f32 0.0, %v1293
      %v1295 = vpop.f32.mrb[0].mxu0
      %v1296 = vpop.f32.mrb[0].mxu0
      %v1297 = vadd.f32 0.0, %v1296
      %v1298 = vpop.f32.mrb[0].mxu0
      %1299 = vdwg.mxu0
      %v1300 = vadd.f32 %v831, %v1174
      %v1301 = vadd.f32 %v834, %v1177
      %v1302 = vadd.f32 %v839, %v1182
      %v1303 = vadd.f32 %v842, %v1185
      %v1304 = vadd.f32 %v847, %v1190
      %v1305 = vadd.f32 %v850, %v1193
      %v1306 = vadd.f32 %v855, %v1198
      %v1307 = vadd.f32 %v858, %v1201
      %v1308 = vadd.f32 %v863, %v1206
      %v1309 = vadd.f32 %v866, %v1209
      %v1310 = vadd.f32 %v871, %v1214
      %v1311 = vadd.f32 %v874, %v1217
      %v1312 = vadd.f32 %v879, %v1222
      %v1313 = vadd.f32 %v882, %v1225
      %v1314 = vadd.f32 %v887, %v1230
      %v1315 = vadd.f32 %v890, %v1233
      %v1316 = vadd.f32 %v895, %v1238
      %v1317 = vadd.f32 %v898, %v1241
      %v1318 = vadd.f32 %v903, %v1246
      %v1319 = vadd.f32 %v906, %v1249
      %v1320 = vadd.f32 %v911, %v1254
      %v1321 = vadd.f32 %v914, %v1257
      %v1322 = vadd.f32 %v919, %v1262
      %v1323 = vadd.f32 %v922, %v1265
      %v1324 = vadd.f32 %v927, %v1270
      %v1325 = vadd.f32 %v930, %v1273
      %v1326 = vadd.f32 %v935, %v1278
      %v1327 = vadd.f32 %v938, %v1281
      %v1328 = vadd.f32 %v943, %v1286
      %v1329 = vadd.f32 %v946, %v1289
      %v1330 = vadd.f32 %v951, %v1294
      %v1331 = vadd.f32 %v954, %v1297
      %v1332 = vld [vmem:[%s2] sm:$0x1]
      %v1334 = vlaneseq
      %v1335 = vshrl.u32 %v1334, 7
      %v1336 = vsub.s32 0, %v1335
      %v1337 = vrot.slane %v1332, %v1336
      %v1339 = vadd.f32 %v1300, %v1337
      %v1340 = vadd.f32 %v1301, %v1337
      %v1341 = vadd.f32 %v1302, %v1337
      %v1342 = vadd.f32 %v1303, %v1337
      %v1343 = vadd.f32 %v1304, %v1337
      %v1344 = vadd.f32 %v1305, %v1337
      %v1345 = vadd.f32 %v1306, %v1337
      %v1346 = vadd.f32 %v1307, %v1337
      %v1347 = vadd.f32 %v1308, %v1337
      %v1348 = vadd.f32 %v1309, %v1337
      %v1349 = vadd.f32 %v1310, %v1337
      %v1350 = vadd.f32 %v1311, %v1337
      %v1351 = vadd.f32 %v1312, %v1337
      %v1352 = vadd.f32 %v1313, %v1337
      %v1353 = vadd.f32 %v1314, %v1337
      %v1354 = vadd.f32 %v1315, %v1337
      %v1355 = vadd.f32 %v1316, %v1337
      %v1356 = vadd.f32 %v1317, %v1337
      %v1357 = vadd.f32 %v1318, %v1337
      %v1358 = vadd.f32 %v1319, %v1337
      %v1359 = vadd.f32 %v1320, %v1337
      %v1360 = vadd.f32 %v1321, %v1337
      %v1361 = vadd.f32 %v1322, %v1337
      %v1362 = vadd.f32 %v1323, %v1337
      %v1363 = vadd.f32 %v1324, %v1337
      %v1364 = vadd.f32 %v1325, %v1337
      %v1365 = vadd.f32 %v1326, %v1337
      %v1366 = vadd.f32 %v1327, %v1337
      %v1367 = vadd.f32 %v1328, %v1337
      %v1368 = vadd.f32 %v1329, %v1337
      %v1369 = vadd.f32 %v1330, %v1337
      %v1370 = vadd.f32 %v1331, %v1337
      %v1371 = vpack.c.bf16 %v1340, %v1339
      %v1372 = vpack.c.bf16 %v1342, %v1341
      %v1373 = vpack.c.bf16 %v1344, %v1343
      %v1374 = vpack.c.bf16 %v1346, %v1345
      %v1375 = vpack.c.bf16 %v1348, %v1347
      %v1376 = vpack.c.bf16 %v1350, %v1349
      %v1377 = vpack.c.bf16 %v1352, %v1351
      %v1378 = vpack.c.bf16 %v1354, %v1353
      %v1379 = vpack.c.bf16 %v1356, %v1355
      %v1380 = vpack.c.bf16 %v1358, %v1357
      %v1381 = vpack.c.bf16 %v1360, %v1359
      %v1382 = vpack.c.bf16 %v1362, %v1361
      %v1383 = vpack.c.bf16 %v1364, %v1363
      %v1384 = vpack.c.bf16 %v1366, %v1365
      %v1385 = vpack.c.bf16 %v1368, %v1367
      %v1386 = vpack.c.bf16 %v1370, %v1369
      %v1403 = vunpack.c.l.b16 %v1371
      %v1404 = vunpack.c.h.b16 %v1371
      %v1405 = vunpack.c.l.b16 %v1372
      %v1406 = vunpack.c.h.b16 %v1372
      %v1407 = vunpack.c.l.b16 %v1373
      %v1408 = vunpack.c.h.b16 %v1373
      %v1409 = vunpack.c.l.b16 %v1374
      %v1410 = vunpack.c.h.b16 %v1374
      %v1411 = vunpack.c.l.b16 %v1375
      %v1412 = vunpack.c.h.b16 %v1375
      %v1413 = vunpack.c.l.b16 %v1376
      %v1414 = vunpack.c.h.b16 %v1376
      %v1415 = vunpack.c.l.b16 %v1377
      %v1416 = vunpack.c.h.b16 %v1377
      %v1417 = vunpack.c.l.b16 %v1378
      %v1418 = vunpack.c.h.b16 %v1378
      %v1419 = vunpack.c.l.b16 %v1379
      %v1420 = vunpack.c.h.b16 %v1379
      %v1421 = vunpack.c.l.b16 %v1380
      %v1422 = vunpack.c.h.b16 %v1380
      %v1423 = vunpack.c.l.b16 %v1381
      %v1424 = vunpack.c.h.b16 %v1381
      %v1425 = vunpack.c.l.b16 %v1382
      %v1426 = vunpack.c.h.b16 %v1382
      %v1427 = vunpack.c.l.b16 %v1383
      %v1428 = vunpack.c.h.b16 %v1383
      %v1429 = vunpack.c.l.b16 %v1384
      %v1430 = vunpack.c.h.b16 %v1384
      %v1431 = vunpack.c.l.b16 %v1385
      %v1432 = vunpack.c.h.b16 %v1385
      %v1433 = vunpack.c.l.b16 %v1386
      %v1434 = vunpack.c.h.b16 %v1386
      %v1435 = vpack.c.b16 %v1403, %v1403
      %v1436 = vpack.c.b16 %v1404, %v1404
      %v1437 = vpack.c.b16 %v1405, %v1405
      %v1438 = vpack.c.b16 %v1406, %v1406
      %v1439 = vpack.c.b16 %v1407, %v1407
      %v1440 = vpack.c.b16 %v1408, %v1408
      %v1441 = vpack.c.b16 %v1409, %v1409
      %v1442 = vpack.c.b16 %v1410, %v1410
      %v1443 = vpack.c.b16 %v1411, %v1411
      %v1444 = vpack.c.b16 %v1412, %v1412
      %v1445 = vpack.c.b16 %v1413, %v1413
      %v1446 = vpack.c.b16 %v1414, %v1414
      %v1447 = vpack.c.b16 %v1415, %v1415
      %v1448 = vpack.c.b16 %v1416, %v1416
      %v1449 = vpack.c.b16 %v1417, %v1417
      %v1450 = vpack.c.b16 %v1418, %v1418
      %v1451 = vpack.c.b16 %v1419, %v1419
      %v1452 = vpack.c.b16 %v1420, %v1420
      %v1453 = vpack.c.b16 %v1421, %v1421
      %v1454 = vpack.c.b16 %v1422, %v1422
      %v1455 = vpack.c.b16 %v1423, %v1423
      %v1456 = vpack.c.b16 %v1424, %v1424
      %v1457 = vpack.c.b16 %v1425, %v1425
      %v1458 = vpack.c.b16 %v1426, %v1426
      %v1459 = vpack.c.b16 %v1427, %v1427
      %v1460 = vpack.c.b16 %v1428, %v1428
      %v1461 = vpack.c.b16 %v1429, %v1429
      %v1462 = vpack.c.b16 %v1430, %v1430
      %v1463 = vpack.c.b16 %v1431, %v1431
      %v1464 = vpack.c.b16 %v1432, %v1432
      %v1465 = vpack.c.b16 %v1433, %v1433
      %v1466 = vpack.c.b16 %v1434, %v1434
      %1499 = vst [vmem:[%s259] sm:$0xf] %v1435
      %1500 = vst [vmem:[%s259 + $0x4] sm:$0xf] %v1436
      %1501 = vst [vmem:[%s259 + $0x8] sm:$0xf] %v1437
      %1502 = vst [vmem:[%s259 + $0xc] sm:$0xf] %v1438
      %1503 = vst [vmem:[%s259 + $0x10] sm:$0xf] %v1439
      %1504 = vst [vmem:[%s259 + $0x14] sm:$0xf] %v1440
      %1505 = vst [vmem:[%s259 + $0x18] sm:$0xf] %v1441
      %1506 = vst [vmem:[%s259 + $0x1c] sm:$0xf] %v1442
      %1507 = vst [vmem:[%s259 + $0x20] sm:$0xf] %v1443
      %1508 = vst [vmem:[%s259 + $0x24] sm:$0xf] %v1444
      %1509 = vst [vmem:[%s259 + $0x28] sm:$0xf] %v1445
      %1510 = vst [vmem:[%s259 + $0x2c] sm:$0xf] %v1446
      %1511 = vst [vmem:[%s259 + $0x30] sm:$0xf] %v1447
      %1512 = vst [vmem:[%s259 + $0x34] sm:$0xf] %v1448
      %1513 = vst [vmem:[%s259 + $0x38] sm:$0xf] %v1449
      %1514 = vst [vmem:[%s259 + $0x3c] sm:$0xf] %v1450
      %1515 = vst [vmem:[%s259 + $0x40] sm:$0xf] %v1451
      %1516 = vst [vmem:[%s259 + $0x44] sm:$0xf] %v1452
      %1517 = vst [vmem:[%s259 + $0x48] sm:$0xf] %v1453
      %1518 = vst [vmem:[%s259 + $0x4c] sm:$0xf] %v1454
      %1519 = vst [vmem:[%s259 + $0x50] sm:$0xf] %v1455
      %1520 = vst [vmem:[%s259 + $0x54] sm:$0xf] %v1456
      %1521 = vst [vmem:[%s259 + $0x58] sm:$0xf] %v1457
      %1522 = vst [vmem:[%s259 + $0x5c] sm:$0xf] %v1458
      %1523 = vst [vmem:[%s259 + $0x60] sm:$0xf] %v1459
      %1524 = vst [vmem:[%s259 + $0x64] sm:$0xf] %v1460
      %1525 = vst [vmem:[%s259 + $0x68] sm:$0xf] %v1461
      %1526 = vst [vmem:[%s259 + $0x6c] sm:$0xf] %v1462
      %1527 = vst [vmem:[%s259 + $0x70] sm:$0xf] %v1463
      %1528 = vst [vmem:[%s259 + $0x74] sm:$0xf] %v1464
      %1529 = vst [vmem:[%s259 + $0x78] sm:$0xf] %v1465
      %1530 = vst [vmem:[%s259 + $0x7c] sm:$0xf] %v1466
      %v1531 = vadd.f32 %v1300, %v1301
      %v1532 = vadd.f32 %v1531, %v1302
      %v1533 = vadd.f32 %v1532, %v1303
      %v1534 = vadd.f32 %v1533, %v1304
      %v1535 = vadd.f32 %v1534, %v1305
      %v1536 = vadd.f32 %v1535, %v1306
      %v1537 = vadd.f32 %v1536, %v1307
      %v1538 = vadd.f32 %v1537, %v1308
      %v1539 = vadd.f32 %v1538, %v1309
      %v1540 = vadd.f32 %v1539, %v1310
      %v1541 = vadd.f32 %v1540, %v1311
      %v1542 = vadd.f32 %v1541, %v1312
      %v1543 = vadd.f32 %v1542, %v1313
      %v1544 = vadd.f32 %v1543, %v1314
      %v1545 = vadd.f32 %v1544, %v1315
      %v1546 = vadd.f32 %v1545, %v1316
      %v1547 = vadd.f32 %v1546, %v1317
      %v1548 = vadd.f32 %v1547, %v1318
      %v1549 = vadd.f32 %v1548, %v1319
      %v1550 = vadd.f32 %v1549, %v1320
      %v1551 = vadd.f32 %v1550, %v1321
      %v1552 = vadd.f32 %v1551, %v1322
      %v1553 = vadd.f32 %v1552, %v1323
      %v1554 = vadd.f32 %v1553, %v1324
      %v1555 = vadd.f32 %v1554, %v1325
      %v1556 = vadd.f32 %v1555, %v1326
      %v1557 = vadd.f32 %v1556, %v1327
      %v1558 = vadd.f32 %v1557, %v1328
      %v1559 = vadd.f32 %v1558, %v1329
      %v1560 = vadd.f32 %v1559, %v1330
      %v1561 = vadd.f32 %v1560, %v1331
      %v1562 = vrot.slane %v1561, 4
      %v1563 = vadd.f32 %v1561, %v1562
      %v1564 = vrot.slane %v1563, 2
      %v1565 = vadd.f32 %v1563, %v1564
      %v1566 = vrot.slane %v1565, 1
      %v1567 = vadd.f32 %v1565, %v1566
      %v1568 = vmul.f32 %v1300, %v1300
      %v1569 = vmul.f32 %v1301, %v1301
      %v1570 = vmul.f32 %v1302, %v1302
      %v1571 = vmul.f32 %v1303, %v1303
      %v1572 = vmul.f32 %v1304, %v1304
      %v1573 = vmul.f32 %v1305, %v1305
      %v1574 = vmul.f32 %v1306, %v1306
      %v1575 = vmul.f32 %v1307, %v1307
      %v1576 = vmul.f32 %v1308, %v1308
      %v1577 = vmul.f32 %v1309, %v1309
      %v1578 = vmul.f32 %v1310, %v1310
      %v1579 = vmul.f32 %v1311, %v1311
      %v1580 = vmul.f32 %v1312, %v1312
      %v1581 = vmul.f32 %v1313, %v1313
      %v1582 = vmul.f32 %v1314, %v1314
      %v1583 = vmul.f32 %v1315, %v1315
      %v1584 = vmul.f32 %v1316, %v1316
      %v1585 = vmul.f32 %v1317, %v1317
      %v1586 = vmul.f32 %v1318, %v1318
      %v1587 = vmul.f32 %v1319, %v1319
      %v1588 = vmul.f32 %v1320, %v1320
      %v1589 = vmul.f32 %v1321, %v1321
      %v1590 = vmul.f32 %v1322, %v1322
      %v1591 = vmul.f32 %v1323, %v1323
      %v1592 = vmul.f32 %v1324, %v1324
      %v1593 = vmul.f32 %v1325, %v1325
      %v1594 = vmul.f32 %v1326, %v1326
      %v1595 = vmul.f32 %v1327, %v1327
      %v1596 = vmul.f32 %v1328, %v1328
      %v1597 = vmul.f32 %v1329, %v1329
      %v1598 = vmul.f32 %v1330, %v1330
      %v1599 = vmul.f32 %v1331, %v1331
      %v1600 = vadd.f32 %v1568, %v1569
      %v1601 = vadd.f32 %v1600, %v1570
      %v1602 = vadd.f32 %v1601, %v1571
      %v1603 = vadd.f32 %v1602, %v1572
      %v1604 = vadd.f32 %v1603, %v1573
      %v1605 = vadd.f32 %v1604, %v1574
      %v1606 = vadd.f32 %v1605, %v1575
      %v1607 = vadd.f32 %v1606, %v1576
      %v1608 = vadd.f32 %v1607, %v1577
      %v1609 = vadd.f32 %v1608, %v1578
      %v1610 = vadd.f32 %v1609, %v1579
      %v1611 = vadd.f32 %v1610, %v1580
      %v1612 = vadd.f32 %v1611, %v1581
      %v1613 = vadd.f32 %v1612, %v1582
      %v1614 = vadd.f32 %v1613, %v1583
      %v1615 = vadd.f32 %v1614, %v1584
      %v1616 = vadd.f32 %v1615, %v1585
      %v1617 = vadd.f32 %v1616, %v1586
      %v1618 = vadd.f32 %v1617, %v1587
      %v1619 = vadd.f32 %v1618, %v1588
      %v1620 = vadd.f32 %v1619, %v1589
      %v1621 = vadd.f32 %v1620, %v1590
      %v1622 = vadd.f32 %v1621, %v1591
      %v1623 = vadd.f32 %v1622, %v1592
      %v1624 = vadd.f32 %v1623, %v1593
      %v1625 = vadd.f32 %v1624, %v1594
      %v1626 = vadd.f32 %v1625, %v1595
      %v1627 = vadd.f32 %v1626, %v1596
      %v1628 = vadd.f32 %v1627, %v1597
      %v1629 = vadd.f32 %v1628, %v1598
      %v1630 = vadd.f32 %v1629, %v1599
      %v1631 = vrot.slane %v1630, 4
      %v1632 = vadd.f32 %v1630, %v1631
      %v1633 = vrot.slane %v1632, 2
      %v1634 = vadd.f32 %v1632, %v1633
      %v1635 = vrot.slane %v1634, 1
      %v1636 = vadd.f32 %v1634, %v1635
      %p1637 = scmp.eq.s32.totalorder %s22, 0
      // Predicated region
      $region33: #{up_layer_forward.4} parent=31 // pred_check
        %p1638 = pneg %p1637
      $region34: #{up_layer_forward.4} parent=31 // pred_check_branch
        %1640 = sbr.rel (%p1638) target = $region36
      $region35: #{up_layer_forward.4} parent=31 // pred_region
        %1641 = vst [vmem:[%s264] sm:$0xff] 0.0
        %1642 = vst [vmem:[%s268] sm:$0xff] 0.0
      $region36: #{up_layer_forward.4} parent=31 // pred_fallthru
        _
      %v1643 = vld [vmem:[%s264] sm:$0xff]
      %v1644 = vadd.f32 %v1643, %v1567
      %1645 = vst [vmem:[%s264] sm:$0xff] %v1644
      %v1646 = vld [vmem:[%s268] sm:$0xff]
      %v1647 = vadd.f32 %v1646, %v1636
      %1648 = vst [vmem:[%s268] sm:$0xff] %v1647
      %s1649 = smul.u32 32, %s22
      %p1650 = scmp.lt.s32.totalorder %s21, 1
      %s1651 = scalar_select %p1650, %s21, 1
      %p1652 = scmp.lt.s32.totalorder %s1649, 31
      %s1653 = scalar_select %p1652, %s1649, 31
      %s1654 = smul.addr %s1651, 32
      %s1655 = sadd.s32 %s1653, %s1654
      %s1656 = smul.addr %s1655, 4
      %s1657 = scalar_lea.vmem %s3, %s1656
      %p1658 = scmp.lt.s32.totalorder %s21, 1
      %s1659 = scalar_select %p1658, %s21, 1
      %s1660 = smul.addr %s1659, 8
      %s1661 = scalar_lea.vmem %s4, %s1660
      %p1662 = scmp.lt.s32.totalorder %s21, 1
      %s1663 = scalar_select %p1662, %s21, 1
      %s1664 = smul.addr %s1663, 8
      %s1665 = scalar_lea.vmem %s5, %s1664
      // Predicated region
      $region37: #{up_layer_forward.4} parent=31 // pred_check
        %p1666 = pneg %p117
      $region38: #{up_layer_forward.4} parent=31 // pred_check_branch
        %1668 = sbr.rel (%p1666) target = $region40
      $region39: #{up_layer_forward.4} parent=31 // pred_region
        %s1669 = smul.u32 32, %s22
      $region40: #{up_layer_forward.4} parent=31 // pred_fallthru
        _
      // Predicated region
      $region41: #{up_layer_forward.4} parent=31 // pred_check
        %p1670 = pneg %p143
      $region42: #{up_layer_forward.4} parent=31 // pred_check_branch
        %1672 = sbr.rel (%p1670) target = $region44
      $region43: #{up_layer_forward.4} parent=31 // pred_region
        _
      $region44: #{up_layer_forward.4} parent=31 // pred_fallthru
        _
      // Predicated region
      $region45: #{up_layer_forward.4} parent=31 // pred_check
        %p1673 = pneg %p169
      $region46: #{up_layer_forward.4} parent=31 // pred_check_branch
        %1675 = sbr.rel (%p1673) target = $region48
      $region47: #{up_layer_forward.4} parent=31 // pred_region
        _
      $region48: #{up_layer_forward.4} parent=31 // pred_fallthru
        _
    $region32: #{up_layer_forward.4} parent=5 // pred_fallthru
      _
    %p1676 = scmp.le.s32.totalorder 2, %s12
    // Predicated region
    $region49: #{up_layer_forward.4} parent=5 // pred_check
      %p1677 = pneg %p1676
    $region50: #{up_layer_forward.4} parent=5 // pred_check_branch
      %1679 = sbr.rel (%p1677) target = $region52
    $region51: #{up_layer_forward.4} parent=5 // pred_region
      %s1680 = ssub.s32 %s12, 2
      // Predicated region
      $region53: #{up_layer_forward.4} parent=51 // pred_check
        %p1681 = pneg %p123
      $region54: #{up_layer_forward.4} parent=51 // pred_check_branch
        %1683 = sbr.rel (%p1681) target = $region56
      $region55: #{up_layer_forward.4} parent=51 // pred_region
        %s1684 = smul.u32 32, %s24
        %p1685 = scmp.lt.s32.totalorder %s23, 1
        %s1686 = scalar_select %p1685, %s23, 1
        %p1687 = scmp.lt.s32.totalorder %s1684, 31
        %s1688 = scalar_select %p1687, %s1684, 31
        %s1689 = smul.addr %s1686, 32
        %s1690 = sadd.s32 %s1688, %s1689
        %s1691 = smul.addr %s1690, 4
        %s1692 = scalar_lea.vmem %s3, %s1691
      $region56: #{up_layer_forward.4} parent=51 // pred_fallthru
        _
      // Predicated region
      $region57: #{up_layer_forward.4} parent=51 // pred_check
        %p1693 = pneg %p149
      $region58: #{up_layer_forward.4} parent=51 // pred_check_branch
        %1695 = sbr.rel (%p1693) target = $region60
      $region59: #{up_layer_forward.4} parent=51 // pred_region
        %p1696 = scmp.lt.s32.totalorder %s23, 1
        %s1697 = scalar_select %p1696, %s23, 1
        %s1698 = smul.addr %s1697, 8
        %s1699 = scalar_lea.vmem %s4, %s1698
      $region60: #{up_layer_forward.4} parent=51 // pred_fallthru
        _
      // Predicated region
      $region61: #{up_layer_forward.4} parent=51 // pred_check
        %p1700 = pneg %p175
      $region62: #{up_layer_forward.4} parent=51 // pred_check_branch
        %1702 = sbr.rel (%p1700) target = $region64
      $region63: #{up_layer_forward.4} parent=51 // pred_region
        %p1703 = scmp.lt.s32.totalorder %s23, 1
        %s1704 = scalar_select %p1703, %s23, 1
        %s1705 = smul.addr %s1704, 8
        %s1706 = scalar_lea.vmem %s5, %s1705
      $region64: #{up_layer_forward.4} parent=51 // pred_fallthru
        _
    $region52: #{up_layer_forward.4} parent=5 // pred_fallthru
      _
  $region6: #{up_layer_forward.4} parent=0 // loop_footer
    %s16 = sadd.s32 1, %s12
  $region7: #{up_layer_forward.4} parent=0 // loop_footer_branch
    %11 = sbr.rel target = $region3
  $region8: #{up_layer_forward.4} parent=0 // loop_exit
    _

// kernel: up_layer_forward.5
$region0: #{up_layer_forward.5}
  #allocation0 [shape = 'u32[]', space=smem, size = 0x4, offset = 0x4, fixed_abs, tag = 'smem constant byte address 0x4 - core index']
  #allocation1 [shape = 'u32[144,128]{1,0:T(1,128)}', space=vmem, size = 0x12000, scoped, tag = 'internal scratch']
  %s0 = inlined_call_operand.vmem [shape: bf16[2,288,12], index: 0, kind: input, shape index: {}]
  %s1 = inlined_call_operand.vmem [shape: bf16[3,12,128], index: 1, kind: input, shape index: {}]
  %s2 = inlined_call_operand.vmem [shape: f32[1,128], index: 2, kind: input, shape index: {}]
  %s3 = inlined_call_operand.vmem [shape: bf16[2,256,128], index: 3, kind: output, shape index: {0}]
  %s4 = inlined_call_operand.vmem [shape: f32[2,8,128], index: 4, kind: output, shape index: {1}]
  %s5 = inlined_call_operand.vmem [shape: f32[2,8,128], index: 5, kind: output, shape index: {2}]
  %6 = xla_tuple %s3, %s4, %s5
  %s7 = sld [smem:[#allocation0]]
  $region65: #{up_layer_forward.5} parent=0
    _
  %s9 = ssub.s32 1, %s7
  %s10 = scalar_select 0, %s9, %s7
  loop: start=0, step=1, limit=4
  $region2: #{up_layer_forward.5} parent=0 // loop_pre_header
    _
  $region3: #{up_layer_forward.5} parent=0 // loop_header
    %s12 = sphi 0, %s16
    %p13 = scmp.ge.s32.totalorder %s12, 4
    %s19 = sphi 0, %s31
    %s20 = sphi 0, %s27
    %s21 = sphi 0, %s19
    %s22 = sphi 0, %s20
    %s23 = sphi 0, %s21
    %s24 = sphi 0, %s22
    %s34 = sphi 0, %s36
    %s37 = sphi 0, %s34
    %s38 = sphi 0, %s37
    %s54 = sphi 0, %s38
    %s58 = sphi 0, %s58
    %s60 = sphi 0, %s58
    %s61 = sphi 0, %s60
    %s75 = sphi 0, %s61
    %s79 = sphi 0, %s79
    %s81 = sphi 0, %s79
    %s82 = sphi 0, %s81
    %s96 = sphi 0, %s82
    %s104 = sphi 0, %s106
    %s107 = sphi 0, %s104
    %s108 = sphi 0, %s107
    %s124 = sphi 0, %s108
    %s130 = sphi 0, %s132
    %s133 = sphi 0, %s130
    %s134 = sphi 0, %s133
    %s150 = sphi 0, %s134
    %s156 = sphi 0, %s158
    %s159 = sphi 0, %s156
    %s160 = sphi 0, %s159
    %s176 = sphi 0, %s160
  $region4: #{up_layer_forward.5} parent=0 // loop_header_branch
    %15 = sbr.rel (%p13) target = $region8
  $region5: #{up_layer_forward.5} parent=0 // loop_body
    %s17 = ssub.s32 %s12, 1
    %s18 = ssub.s32 %s12, 2
    %s25 = sadd.s32 1, %s20
    %p26 = scmp.ge.s32.totalorder %s25, 1
    %s27 = scalar_select %p26, 0, %s25
    %s28 = sadd.s32 1, %s19
    %s29 = scalar_select %p26, %s28, %s19
    %p30 = scmp.ge.s32.totalorder %s29, 2
    %s31 = scalar_select %p30, 0, %s29
    %s32 = ssub.s32 %s19, %s31
    %p33 = scmp.eq.s32.totalorder %s32, 0
    %s35 = sadd.s32 %s34, 1
    %s36 = scalar_select %p33, %s34, %s35
    %p39 = pneg %p33
    %p40 = scmp.eq.s32.totalorder %s12, 1
    %p41 = por %p39, %p40
    %p42 = scmp.ne.s32.totalorder %s34, %s37
    %p43 = scmp.eq.s32.totalorder %s12, 0
    %p44 = por %p42, %p43
    %p45 = scmp.ne.s32.totalorder %s34, %s37
    %p46 = scmp.eq.s32.totalorder %s17, 1
    %p47 = por %p45, %p46
    %p48 = scmp.ne.s32.totalorder %s37, %s38
    %p49 = scmp.eq.s32.totalorder %s17, 0
    %p50 = por %p48, %p49
    %p51 = scmp.ne.s32.totalorder %s37, %s38
    %p52 = scmp.eq.s32.totalorder %s18, 1
    %p53 = por %p51, %p52
    %p55 = scmp.ne.s32.totalorder %s38, %s54
    %p56 = scmp.eq.s32.totalorder %s18, 0
    %p57 = por %p55, %p56
    %s59 = sadd.s32 %s58, 1
    %p62 = scmp.eq.s32.totalorder %s12, 1
    %p63 = scmp.ne.s32.totalorder %s58, %s60
    %p64 = scmp.eq.s32.totalorder %s12, 0
    %p65 = por %p63, %p64
    %p66 = scmp.ne.s32.totalorder %s58, %s60
    %p67 = scmp.eq.s32.totalorder %s17, 1
    %p68 = por %p66, %p67
    %p69 = scmp.ne.s32.totalorder %s60, %s61
    %p70 = scmp.eq.s32.totalorder %s17, 0
    %p71 = por %p69, %p70
    %p72 = scmp.ne.s32.totalorder %s60, %s61
    %p73 = scmp.eq.s32.totalorder %s18, 1
    %p74 = por %p72, %p73
    %p76 = scmp.ne.s32.totalorder %s61, %s75
    %p77 = scmp.eq.s32.totalorder %s18, 0
    %p78 = por %p76, %p77
    %s80 = sadd.s32 %s79, 1
    %p83 = scmp.eq.s32.totalorder %s12, 1
    %p84 = scmp.ne.s32.totalorder %s79, %s81
    %p85 = scmp.eq.s32.totalorder %s12, 0
    %p86 = por %p84, %p85
    %p87 = scmp.ne.s32.totalorder %s79, %s81
    %p88 = scmp.eq.s32.totalorder %s17, 1
    %p89 = por %p87, %p88
    %p90 = scmp.ne.s32.totalorder %s81, %s82
    %p91 = scmp.eq.s32.totalorder %s17, 0
    %p92 = por %p90, %p91
    %p93 = scmp.ne.s32.totalorder %s81, %s82
    %p94 = scmp.eq.s32.totalorder %s18, 1
    %p95 = por %p93, %p94
    %p97 = scmp.ne.s32.totalorder %s82, %s96
    %p98 = scmp.eq.s32.totalorder %s18, 0
    %p99 = por %p97, %p98
    %s100 = ssub.s32 %s19, %s31
    %s101 = ssub.s32 %s20, %s27
    %s102 = sor.u32 %s100, %s101
    %p103 = scmp.eq.s32.totalorder %s102, 0
    %s105 = sadd.s32 %s104, 1
    %s106 = scalar_select %p103, %s104, %s105
    %p109 = pneg %p103
    %p110 = scmp.eq.s32.totalorder %s12, 1
    %p111 = por %p109, %p110
    %p112 = scmp.ne.s32.totalorder %s104, %s107
    %p113 = scmp.eq.s32.totalorder %s12, 0
    %p114 = por %p112, %p113
    %p115 = scmp.ne.s32.totalorder %s104, %s107
    %p116 = scmp.eq.s32.totalorder %s17, 1
    %p117 = por %p115, %p116
    %p118 = scmp.ne.s32.totalorder %s107, %s108
    %p119 = scmp.eq.s32.totalorder %s17, 0
    %p120 = por %p118, %p119
    %p121 = scmp.ne.s32.totalorder %s107, %s108
    %p122 = scmp.eq.s32.totalorder %s18, 1
    %p123 = por %p121, %p122
    %p125 = scmp.ne.s32.totalorder %s108, %s124
    %p126 = scmp.eq.s32.totalorder %s18, 0
    %p127 = por %p125, %p126
    %s128 = ssub.s32 %s19, %s31
    %p129 = scmp.eq.s32.totalorder %s128, 0
    %s131 = sadd.s32 %s130, 1
    %s132 = scalar_select %p129, %s130, %s131
    %p135 = pneg %p129
    %p136 = scmp.eq.s32.totalorder %s12, 1
    %p137 = por %p135, %p136
    %p138 = scmp.ne.s32.totalorder %s130, %s133
    %p139 = scmp.eq.s32.totalorder %s12, 0
    %p140 = por %p138, %p139
    %p141 = scmp.ne.s32.totalorder %s130, %s133
    %p142 = scmp.eq.s32.totalorder %s17, 1
    %p143 = por %p141, %p142
    %p144 = scmp.ne.s32.totalorder %s133, %s134
    %p145 = scmp.eq.s32.totalorder %s17, 0
    %p146 = por %p144, %p145
    %p147 = scmp.ne.s32.totalorder %s133, %s134
    %p148 = scmp.eq.s32.totalorder %s18, 1
    %p149 = por %p147, %p148
    %p151 = scmp.ne.s32.totalorder %s134, %s150
    %p152 = scmp.eq.s32.totalorder %s18, 0
    %p153 = por %p151, %p152
    %s154 = ssub.s32 %s19, %s31
    %p155 = scmp.eq.s32.totalorder %s154, 0
    %s157 = sadd.s32 %s156, 1
    %s158 = scalar_select %p155, %s156, %s157
    %p161 = pneg %p155
    %p162 = scmp.eq.s32.totalorder %s12, 1
    %p163 = por %p161, %p162
    %p164 = scmp.ne.s32.totalorder %s156, %s159
    %p165 = scmp.eq.s32.totalorder %s12, 0
    %p166 = por %p164, %p165
    %p167 = scmp.ne.s32.totalorder %s156, %s159
    %p168 = scmp.eq.s32.totalorder %s17, 1
    %p169 = por %p167, %p168
    %p170 = scmp.ne.s32.totalorder %s159, %s160
    %p171 = scmp.eq.s32.totalorder %s17, 0
    %p172 = por %p170, %p171
    %p173 = scmp.ne.s32.totalorder %s159, %s160
    %p174 = scmp.eq.s32.totalorder %s18, 1
    %p175 = por %p173, %p174
    %p177 = scmp.ne.s32.totalorder %s160, %s176
    %p178 = scmp.eq.s32.totalorder %s18, 0
    %p179 = por %p177, %p178
    %p180 = scmp.le.s32.totalorder 1, %s12
    %p181 = scmp.lt.s32.totalorder %s12, 3
    %p182 = pnand %p180, %p181
    %p183 = pneg %p182
    // Predicated region
    $region9: #{up_layer_forward.5} parent=5 // pred_check
      _
    $region10: #{up_layer_forward.5} parent=5 // pred_check_branch
      %185 = sbr.rel (%p182) target = $region12
    $region11: #{up_layer_forward.5} parent=5 // pred_region
      %s186 = ssub.s32 %s12, 1
      // Predicated region
      $region13: #{up_layer_forward.5} parent=11 // pred_check
        %p187 = pneg %p71
      $region14: #{up_layer_forward.5} parent=11 // pred_check_branch
        %189 = sbr.rel (%p187) target = $region16
      $region15: #{up_layer_forward.5} parent=11 // pred_region
        _
      $region16: #{up_layer_forward.5} parent=11 // pred_fallthru
        _
      // Predicated region
      $region17: #{up_layer_forward.5} parent=11 // pred_check
        %p190 = pneg %p92
      $region18: #{up_layer_forward.5} parent=11 // pred_check_branch
        %192 = sbr.rel (%p190) target = $region20
      $region19: #{up_layer_forward.5} parent=11 // pred_region
        _
      $region20: #{up_layer_forward.5} parent=11 // pred_fallthru
        _
    $region12: #{up_layer_forward.5} parent=5 // pred_fallthru
      _
    %p193 = scmp.lt.s32.totalorder %s12, 2
    // Predicated region
    $region21: #{up_layer_forward.5} parent=5 // pred_check
      %p194 = pneg %p193
    $region22: #{up_layer_forward.5} parent=5 // pred_check_branch
      %196 = sbr.rel (%p194) target = $region24
    $region23: #{up_layer_forward.5} parent=5 // pred_region
      // Predicated region
      $region25: #{up_layer_forward.5} parent=23 // pred_check
        %p197 = pneg %p44
      $region26: #{up_layer_forward.5} parent=23 // pred_check_branch
        %199 = sbr.rel (%p197) target = $region28
      $region27: #{up_layer_forward.5} parent=23 // pred_region
        %p200 = scmp.lt.s32.totalorder %s19, 1
        %s201 = scalar_select %p200, %s19, 1
        %s202 = smul.addr %s201, 36
        %s203 = smul.addr %s202, 4
        %s204 = scalar_lea.vmem %s0, %s203
      $region28: #{up_layer_forward.5} parent=23 // pred_fallthru
        _
    $region24: #{up_layer_forward.5} parent=5 // pred_fallthru
      _
    %p205 = scmp.le.s32.totalorder 1, %s12
    %p206 = scmp.lt.s32.totalorder %s12, 3
    %p207 = pnand %p205, %p206
    %p208 = pneg %p207
    // Predicated region
    $region29: #{up_layer_forward.5} parent=5 // pred_check
      _
    $region30: #{up_layer_forward.5} parent=5 // pred_check_branch
      %210 = sbr.rel (%p207) target = $region32
    $region31: #{up_layer_forward.5} parent=5 // pred_region
      %s211 = ssub.s32 %s12, 1
      %p212 = scmp.lt.s32.totalorder %s21, 1
      %s213 = scalar_select %p212, %s21, 1
      %s214 = smul.addr %s213, 36
      %s215 = smul.addr %s214, 4
      %s216 = scalar_lea.vmem %s0, %s215
      %p217 = pneg %p50
      %p218 = pneg %p47
      %p219 = pneg %p71
      %p220 = pneg %p68
      %p221 = pneg %p92
      %p222 = pneg %p89
      %p223 = pneg %p120
      %p224 = pneg %p117
      %s225 = smul.u32 32, %s22
      %p226 = scmp.lt.s32.totalorder %s21, 1
      %s227 = scalar_select %p226, %s21, 1
      %p228 = scmp.lt.s32.totalorder %s225, 31
      %s229 = scalar_select %p228, %s225, 31
      %s230 = smul.addr %s227, 32
      %s231 = sadd.s32 %s229, %s230
      %s232 = smul.addr %s231, 4
      %s233 = scalar_lea.vmem %s3, %s232
      %p234 = pneg %p146
      %p235 = pneg %p143
      %p236 = scmp.lt.s32.totalorder %s21, 1
      %s237 = scalar_select %p236, %s21, 1
      %s238 = smul.addr %s237, 8
      %s239 = scalar_lea.vmem %s4, %s238
      %p240 = pneg %p172
      %p241 = pneg %p169
      %p242 = scmp.lt.s32.totalorder %s21, 1
      %s243 = scalar_select %p242, %s21, 1
      %s244 = smul.addr %s243, 8
      %s245 = scalar_lea.vmem %s5, %s244
      %p246 = scmp.lt.s32.totalorder %s21, 1
      %s247 = scalar_select %p246, %s21, 1
      %s248 = smul.addr %s247, 36
      %s249 = smul.addr %s248, 4
      %s250 = scalar_lea.vmem %s0, %s249
      %s251 = smul.u32 32, %s22
      %p252 = scmp.lt.s32.totalorder %s21, 1
      %s253 = scalar_select %p252, %s21, 1
      %p254 = scmp.lt.s32.totalorder %s251, 31
      %s255 = scalar_select %p254, %s251, 31
      %s256 = smul.addr %s253, 32
      %s257 = sadd.s32 %s255, %s256
      %s258 = smul.addr %s257, 4
      %s259 = scalar_lea.vmem %s3, %s258
      %s260 = smul.u32 32, %s22
      %p261 = scmp.lt.s32.totalorder %s21, 1
      %s262 = scalar_select %p261, %s21, 1
      %s263 = smul.addr %s262, 8
      %s264 = scalar_lea.vmem %s4, %s263
      %p265 = scmp.lt.s32.totalorder %s21, 1
      %s266 = scalar_select %p265, %s21, 1
      %s267 = smul.addr %s266, 8
      %s268 = scalar_lea.vmem %s5, %s267
      %s270 = smul.u32 %s22, 256
      %s271 = sshra.s32 %s270, 3
      %s272 = sand.u32 %s270, 7
      %s273 = smul.addr %s271, 4
      %s274 = scalar_lea.vmem %s250, %s273
      %v275 = vld [vmem:[%s274] sm:$0xf]
      %v276 = vld [vmem:[%s274 + $0x4] sm:$0xf]
      %v277 = vld [vmem:[%s274 + $0x8] sm:$0xf]
      %v278 = vld [vmem:[%s274 + $0xc] sm:$0xf]
      %v279 = vld [vmem:[%s274 + $0x10] sm:$0xf]
      %v280 = vld [vmem:[%s274 + $0x14] sm:$0xf]
      %v281 = vld [vmem:[%s274 + $0x18] sm:$0xf]
      %v282 = vld [vmem:[%s274 + $0x1c] sm:$0xf]
      %v283 = vld [vmem:[%s274 + $0x20] sm:$0xf]
      %v284 = vld [vmem:[%s274 + $0x24] sm:$0xf]
      %v285 = vld [vmem:[%s274 + $0x28] sm:$0xf]
      %v286 = vld [vmem:[%s274 + $0x2c] sm:$0xf]
      %v287 = vld [vmem:[%s274 + $0x30] sm:$0xf]
      %v288 = vld [vmem:[%s274 + $0x34] sm:$0xf]
      %v289 = vld [vmem:[%s274 + $0x38] sm:$0xf]
      %v290 = vld [vmem:[%s274 + $0x3c] sm:$0xf]
      %v291 = vld [vmem:[%s274 + $0x40] sm:$0xf]
      %v292 = vld [vmem:[%s274 + $0x44] sm:$0xf]
      %v293 = vld [vmem:[%s274 + $0x48] sm:$0xf]
      %v294 = vld [vmem:[%s274 + $0x4c] sm:$0xf]
      %v295 = vld [vmem:[%s274 + $0x50] sm:$0xf]
      %v296 = vld [vmem:[%s274 + $0x54] sm:$0xf]
      %v297 = vld [vmem:[%s274 + $0x58] sm:$0xf]
      %v298 = vld [vmem:[%s274 + $0x5c] sm:$0xf]
      %v299 = vld [vmem:[%s274 + $0x60] sm:$0xf]
      %v300 = vld [vmem:[%s274 + $0x64] sm:$0xf]
      %v301 = vld [vmem:[%s274 + $0x68] sm:$0xf]
      %v302 = vld [vmem:[%s274 + $0x6c] sm:$0xf]
      %v303 = vld [vmem:[%s274 + $0x70] sm:$0xf]
      %v304 = vld [vmem:[%s274 + $0x74] sm:$0xf]
      %v305 = vld [vmem:[%s274 + $0x78] sm:$0xf]
      %v306 = vld [vmem:[%s274 + $0x7c] sm:$0xf]
      %v307 = vld [vmem:[%s1] sm:$0xf]
      %v308 = vld [vmem:[%s1 + $0x4] sm:$0x3]
      %s309 = smul.u32 %s22, 16
      %s310 = sadd.s32 %s309, 1
      %s311 = smul.u32 %s310, 16
      %s312 = sshra.s32 %s311, 3
      %s313 = sand.u32 %s311, 7
      %s314 = smul.addr %s312, 4
      %s315 = scalar_lea.vmem %s250, %s314
      %v316 = vld [vmem:[%s315] sm:$0xf]
      %v317 = vld [vmem:[%s315 + $0x4] sm:$0xf]
      %v318 = vld [vmem:[%s315 + $0x8] sm:$0xf]
      %v319 = vld [vmem:[%s315 + $0xc] sm:$0xf]
      %v320 = vld [vmem:[%s315 + $0x10] sm:$0xf]
      %v321 = vld [vmem:[%s315 + $0x14] sm:$0xf]
      %v322 = vld [vmem:[%s315 + $0x18] sm:$0xf]
      %v323 = vld [vmem:[%s315 + $0x1c] sm:$0xf]
      %v324 = vld [vmem:[%s315 + $0x20] sm:$0xf]
      %v325 = vld [vmem:[%s315 + $0x24] sm:$0xf]
      %v326 = vld [vmem:[%s315 + $0x28] sm:$0xf]
      %v327 = vld [vmem:[%s315 + $0x2c] sm:$0xf]
      %v328 = vld [vmem:[%s315 + $0x30] sm:$0xf]
      %v329 = vld [vmem:[%s315 + $0x34] sm:$0xf]
      %v330 = vld [vmem:[%s315 + $0x38] sm:$0xf]
      %v331 = vld [vmem:[%s315 + $0x3c] sm:$0xf]
      %v332 = vld [vmem:[%s315 + $0x40] sm:$0xf]
      %v333 = vld [vmem:[%s315 + $0x44] sm:$0xf]
      %v334 = vld [vmem:[%s315 + $0x48] sm:$0xf]
      %v335 = vld [vmem:[%s315 + $0x4c] sm:$0xf]
      %v336 = vld [vmem:[%s315 + $0x50] sm:$0xf]
      %v337 = vld [vmem:[%s315 + $0x54] sm:$0xf]
      %v338 = vld [vmem:[%s315 + $0x58] sm:$0xf]
      %v339 = vld [vmem:[%s315 + $0x5c] sm:$0xf]
      %v340 = vld [vmem:[%s315 + $0x60] sm:$0xf]
      %v341 = vld [vmem:[%s315 + $0x64] sm:$0xf]
      %v342 = vld [vmem:[%s315 + $0x68] sm:$0xf]
      %v343 = vld [vmem:[%s315 + $0x6c] sm:$0xf]
      %v344 = vld [vmem:[%s315 + $0x70] sm:$0xf]
      %v345 = vld [vmem:[%s315 + $0x74] sm:$0xf]
      %v346 = vld [vmem:[%s315 + $0x78] sm:$0xf]
      %v347 = vld [vmem:[%s315 + $0x7c] sm:$0xf]
      %s348 = scalar_lea.vmem %s1, 8
      %v349 = vld [vmem:[%s348] sm:$0xf]
      %v350 = vld [vmem:[%s348 + $0x4] sm:$0x3]
      %v383 = vunpack.c.l.b16 %v316
      %v384 = vunpack.c.l.b16 %v317
      %v385 = vunpack.c.l.b16 %v318
      %v386 = vunpack.c.l.b16 %v319
      %v387 = vunpack.c.l.b16 %v320
      %v388 = vunpack.c.l.b16 %v321
      %v389 = vunpack.c.l.b16 %v322
      %v390 = vunpack.c.l.b16 %v323
      %v391 = vunpack.c.l.b16 %v324
      %v392 = vunpack.c.l.b16 %v325
      %v393 = vunpack.c.l.b16 %v326
      %v394 = vunpack.c.l.b16 %v327
      %v395 = vunpack.c.l.b16 %v328
      %v396 = vunpack.c.l.b16 %v329
      %v397 = vunpack.c.l.b16 %v330
      %v398 = vunpack.c.l.b16 %v331
      %v399 = vunpack.c.l.b16 %v332
      %v400 = vunpack.c.l.b16 %v333
      %v401 = vunpack.c.l.b16 %v334
      %v402 = vunpack.c.l.b16 %v335
      %v403 = vunpack.c.l.b16 %v336
      %v404 = vunpack.c.l.b16 %v337
      %v405 = vunpack.c.l.b16 %v338
      %v406 = vunpack.c.l.b16 %v339
      %v407 = vunpack.c.l.b16 %v340
      %v408 = vunpack.c.l.b16 %v341
      %v409 = vunpack.c.l.b16 %v342
      %v410 = vunpack.c.l.b16 %v343
      %v411 = vunpack.c.l.b16 %v344
      %v412 = vunpack.c.l.b16 %v345
      %v413 = vunpack.c.l.b16 %v346
      %v414 = vunpack.c.l.b16 %v347
      %v415 = vpack.c.b16 %v384, %v383
      %v416 = vpack.c.b16 %v386, %v385
      %v417 = vpack.c.b16 %v388, %v387
      %v418 = vpack.c.b16 %v390, %v389
      %v419 = vpack.c.b16 %v392, %v391
      %v420 = vpack.c.b16 %v394, %v393
      %v421 = vpack.c.b16 %v396, %v395
      %v422 = vpack.c.b16 %v398, %v397
      %v423 = vpack.c.b16 %v400, %v399
      %v424 = vpack.c.b16 %v402, %v401
      %v425 = vpack.c.b16 %v404, %v403
      %v426 = vpack.c.b16 %v406, %v405
      %v427 = vpack.c.b16 %v408, %v407
      %v428 = vpack.c.b16 %v410, %v409
      %v429 = vpack.c.b16 %v412, %v411
      %v430 = vpack.c.b16 %v414, %v413
      %v433 = vunpack.c.l.b16 %v349
      %v434 = vunpack.c.l.b16 %v350
      %v435 = vpack.c.b16 %v434, %v433
      %vm436 = vcmask 97280
      %v438 = vsel %vm436, %v415, 0
      %v441 = vsel %vm436, %v416, 0
      %v444 = vsel %vm436, %v417, 0
      %v447 = vsel %vm436, %v418, 0
      %v450 = vsel %vm436, %v419, 0
      %v453 = vsel %vm436, %v420, 0
      %v456 = vsel %vm436, %v421, 0
      %v459 = vsel %vm436, %v422, 0
      %v462 = vsel %vm436, %v423, 0
      %v465 = vsel %vm436, %v424, 0
      %v468 = vsel %vm436, %v425, 0
      %v471 = vsel %vm436, %v426, 0
      %v474 = vsel %vm436, %v427, 0
      %v477 = vsel %vm436, %v428, 0
      %v480 = vsel %vm436, %v429, 0
      %v483 = vsel %vm436, %v430, 0
      %vm485 = vcmask 1045504
      %v487 = vsel %vm485, %v435, 0
      %489 = vmatprep.subr.bf16.mxu0 0
      %490 = vmatpush1.bf16.msra.mxu0 %v487
      %491 = vmatprep.subr.bf16.mxu0 0
      %492 = vmatpush1.bf16.msra.mxu0 0
      %493 = vmatprep.subr.bf16.mxu0 0
      %494 = vmatpush1.bf16.msra.mxu0 0
      %495 = vmatprep.subr.bf16.mxu0 0
      %496 = vmatpush1.bf16.msra.mxu0 0
      %497 = vmatprep.subr.bf16.mxu0 0
      %498 = vmatpush1.bf16.msra.mxu0 0
      %499 = vmatprep.subr.bf16.mxu0 0
      %500 = vmatpush1.bf16.msra.mxu0 0
      %501 = vmatprep.subr.bf16.mxu0 0
      %502 = vmatpush1.bf16.msra.mxu0 0
      %503 = vmatprep.subr.bf16.mxu0 0
      %504 = vmatpush1.bf16.msra.mxu0 0
      %505 = vmatprep.subr.bf16.mxu0 0
      %506 = vmatpush1.bf16.msra.mxu0 0
      %507 = vmatprep.subr.bf16.mxu0 0
      %508 = vmatpush1.bf16.msra.mxu0 0
      %509 = vmatprep.subr.bf16.mxu0 0
      %510 = vmatpush1.bf16.msra.mxu0 0
      %511 = vmatprep.subr.bf16.mxu0 0
      %512 = vmatpush1.bf16.msra.mxu0 0
      %513 = vmatprep.subr.bf16.mxu0 0
      %514 = vmatpush1.bf16.msra.mxu0 0
      %515 = vmatprep.subr.bf16.mxu0 0
      %516 = vmatpush1.bf16.msra.mxu0 0
      %517 = vmatprep.subr.bf16.mxu0 0
      %518 = vmatpush1.bf16.msra.mxu0 0
      %519 = vmatprep.subr.bf16.mxu0 0
      %520 = vmatpush1.bf16.msra.mxu0 0
      %521 = vmatprep.mubr.bf16.mxu0 0
      %522 = vmatmul.mubr.bf16.gmra.mrb[0].mxu0 %v438
      %v523 = vpop.f32.mrb[0].mxu0
      %v524 = vadd.f32 0.0, %v523
      %v525 = vpop.f32.mrb[0].mxu0
      %v526 = vpop.f32.mrb[0].mxu0
      %v527 = vadd.f32 0.0, %v526
      %v528 = vpop.f32.mrb[0].mxu0
      %529 = vmatprep.mubr.bf16.mxu0 0
      %530 = vmatmul.mubr.bf16.gmra.mrb[0].mxu0 %v441
      %v531 = vpop.f32.mrb[0].mxu0
      %v532 = vadd.f32 0.0, %v531
      %v533 = vpop.f32.mrb[0].mxu0
      %v534 = vpop.f32.mrb[0].mxu0
      %v535 = vadd.f32 0.0, %v534
      %v536 = vpop.f32.mrb[0].mxu0
      %537 = vmatprep.mubr.bf16.mxu0 0
      %538 = vmatmul.mubr.bf16.gmra.mrb[0].mxu0 %v444
      %v539 = vpop.f32.mrb[0].mxu0
      %v540 = vadd.f32 0.0, %v539
      %v541 = vpop.f32.mrb[0].mxu0
      %v542 = vpop.f32.mrb[0].mxu0
      %v543 = vadd.f32 0.0, %v542
      %v544 = vpop.f32.mrb[0].mxu0
      %545 = vmatprep.mubr.bf16.mxu0 0
      %546 = vmatmul.mubr.bf16.gmra.mrb[0].mxu0 %v447
      %v547 = vpop.f32.mrb[0].mxu0
      %v548 = vadd.f32 0.0, %v547
      %v549 = vpop.f32.mrb[0].mxu0
      %v550 = vpop.f32.mrb[0].mxu0
      %v551 = vadd.f32 0.0, %v550
      %v552 = vpop.f32.mrb[0].mxu0
      %553 = vmatprep.mubr.bf16.mxu0 0
      %554 = vmatmul.mubr.bf16.gmra.mrb[0].mxu0 %v450
      %v555 = vpop.f32.mrb[0].mxu0
      %v556 = vadd.f32 0.0, %v555
      %v557 = vpop.f32.mrb[0].mxu0
      %v558 = vpop.f32.mrb[0].mxu0
      %v559 = vadd.f32 0.0, %v558
      %v560 = vpop.f32.mrb[0].mxu0
      %561 = vmatprep.mubr.bf16.mxu0 0
      %562 = vmatmul.mubr.bf16.gmra.mrb[0].mxu0 %v453
      %v563 = vpop.f32.mrb[0].mxu0
      %v564 = vadd.f32 0.0, %v563
      %v565 = vpop.f32.mrb[0].mxu0
      %v566 = vpop.f32.mrb[0].mxu0
      %v567 = vadd.f32 0.0, %v566
      %v568 = vpop.f32.mrb[0].mxu0
      %569 = vmatprep.mubr.bf16.mxu0 0
      %570 = vmatmul.mubr.bf16.gmra.mrb[0].mxu0 %v456
      %v571 = vpop.f32.mrb[0].mxu0
      %v572 = vadd.f32 0.0, %v571
      %v573 = vpop.f32.mrb[0].mxu0
      %v574 = vpop.f32.mrb[0].mxu0
      %v575 = vadd.f32 0.0, %v574
      %v576 = vpop.f32.mrb[0].mxu0
      %577 = vmatprep.mubr.bf16.mxu0 0
      %578 = vmatmul.mubr.bf16.gmra.mrb[0].mxu0 %v459
      %v579 = vpop.f32.mrb[0].mxu0
      %v580 = vadd.f32 0.0, %v579
      %v581 = vpop.f32.mrb[0].mxu0
      %v582 = vpop.f32.mrb[0].mxu0
      %v583 = vadd.f32 0.0, %v582
      %v584 = vpop.f32.mrb[0].mxu0
      %585 = vmatprep.mubr.bf16.mxu0 0
      %586 = vmatmul.mubr.bf16.gmra.mrb[0].mxu0 %v462
      %v587 = vpop.f32.mrb[0].mxu0
      %v588 = vadd.f32 0.0, %v587
      %v589 = vpop.f32.mrb[0].mxu0
      %v590 = vpop.f32.mrb[0].mxu0
      %v591 = vadd.f32 0.0, %v590
      %v592 = vpop.f32.mrb[0].mxu0
      %593 = vmatprep.mubr.bf16.mxu0 0
      %594 = vmatmul.mubr.bf16.gmra.mrb[0].mxu0 %v465
      %v595 = vpop.f32.mrb[0].mxu0
      %v596 = vadd.f32 0.0, %v595
      %v597 = vpop.f32.mrb[0].mxu0
      %v598 = vpop.f32.mrb[0].mxu0
      %v599 = vadd.f32 0.0, %v598
      %v600 = vpop.f32.mrb[0].mxu0
      %601 = vmatprep.mubr.bf16.mxu0 0
      %602 = vmatmul.mubr.bf16.gmra.mrb[0].mxu0 %v468
      %v603 = vpop.f32.mrb[0].mxu0
      %v604 = vadd.f32 0.0, %v603
      %v605 = vpop.f32.mrb[0].mxu0
      %v606 = vpop.f32.mrb[0].mxu0
      %v607 = vadd.f32 0.0, %v606
      %v608 = vpop.f32.mrb[0].mxu0
      %609 = vmatprep.mubr.bf16.mxu0 0
      %610 = vmatmul.mubr.bf16.gmra.mrb[0].mxu0 %v471
      %v611 = vpop.f32.mrb[0].mxu0
      %v612 = vadd.f32 0.0, %v611
      %v613 = vpop.f32.mrb[0].mxu0
      %v614 = vpop.f32.mrb[0].mxu0
      %v615 = vadd.f32 0.0, %v614
      %v616 = vpop.f32.mrb[0].mxu0
      %617 = vmatprep.mubr.bf16.mxu0 0
      %618 = vmatmul.mubr.bf16.gmra.mrb[0].mxu0 %v474
      %v619 = vpop.f32.mrb[0].mxu0
      %v620 = vadd.f32 0.0, %v619
      %v621 = vpop.f32.mrb[0].mxu0
      %v622 = vpop.f32.mrb[0].mxu0
      %v623 = vadd.f32 0.0, %v622
      %v624 = vpop.f32.mrb[0].mxu0
      %625 = vmatprep.mubr.bf16.mxu0 0
      %626 = vmatmul.mubr.bf16.gmra.mrb[0].mxu0 %v477
      %v627 = vpop.f32.mrb[0].mxu0
      %v628 = vadd.f32 0.0, %v627
      %v629 = vpop.f32.mrb[0].mxu0
      %v630 = vpop.f32.mrb[0].mxu0
      %v631 = vadd.f32 0.0, %v630
      %v632 = vpop.f32.mrb[0].mxu0
      %633 = vmatprep.mubr.bf16.mxu0 0
      %634 = vmatmul.mubr.bf16.gmra.mrb[0].mxu0 %v480
      %v635 = vpop.f32.mrb[0].mxu0
      %v636 = vadd.f32 0.0, %v635
      %v637 = vpop.f32.mrb[0].mxu0
      %v638 = vpop.f32.mrb[0].mxu0
      %v639 = vadd.f32 0.0, %v638
      %v640 = vpop.f32.mrb[0].mxu0
      %641 = vmatprep.mubr.bf16.mxu0 0
      %642 = vmatmul.mubr.bf16.gmra.mrb[0].mxu0 %v483
      %v643 = vpop.f32.mrb[0].mxu0
      %v644 = vadd.f32 0.0, %v643
      %v645 = vpop.f32.mrb[0].mxu0
      %v646 = vpop.f32.mrb[0].mxu0
      %v647 = vadd.f32 0.0, %v646
      %v648 = vpop.f32.mrb[0].mxu0
      %649 = vdwg.mxu0
      %v682 = vunpack.c.l.b16 %v275
      %v683 = vunpack.c.l.b16 %v276
      %v684 = vunpack.c.l.b16 %v277
      %v685 = vunpack.c.l.b16 %v278
      %v686 = vunpack.c.l.b16 %v279
      %v687 = vunpack.c.l.b16 %v280
      %v688 = vunpack.c.l.b16 %v281
      %v689 = vunpack.c.l.b16 %v282
      %v690 = vunpack.c.l.b16 %v283
      %v691 = vunpack.c.l.b16 %v284
      %v692 = vunpack.c.l.b16 %v285
      %v693 = vunpack.c.l.b16 %v286
      %v694 = vunpack.c.l.b16 %v287
      %v695 = vunpack.c.l.b16 %v288
      %v696 = vunpack.c.l.b16 %v289
      %v697 = vunpack.c.l.b16 %v290
      %v698 = vunpack.c.l.b16 %v291
      %v699 = vunpack.c.l.b16 %v292
      %v700 = vunpack.c.l.b16 %v293
      %v701 = vunpack.c.l.b16 %v294
      %v702 = vunpack.c.l.b16 %v295
      %v703 = vunpack.c.l.b16 %v296
      %v704 = vunpack.c.l.b16 %v297
      %v705 = vunpack.c.l.b16 %v298
      %v706 = vunpack.c.l.b16 %v299
      %v707 = vunpack.c.l.b16 %v300
      %v708 = vunpack.c.l.b16 %v301
      %v709 = vunpack.c.l.b16 %v302
      %v710 = vunpack.c.l.b16 %v303
      %v711 = vunpack.c.l.b16 %v304
      %v712 = vunpack.c.l.b16 %v305
      %v713 = vunpack.c.l.b16 %v306
      %v714 = vpack.c.b16 %v683, %v682
      %v715 = vpack.c.b16 %v685, %v684
      %v716 = vpack.c.b16 %v687, %v686
      %v717 = vpack.c.b16 %v689, %v688
      %v718 = vpack.c.b16 %v691, %v690
      %v719 = vpack.c.b16 %v693, %v692
      %v720 = vpack.c.b16 %v695, %v694
      %v721 = vpack.c.b16 %v697, %v696
      %v722 = vpack.c.b16 %v699, %v698
      %v723 = vpack.c.b16 %v701, %v700
      %v724 = vpack.c.b16 %v703, %v702
      %v725 = vpack.c.b16 %v705, %v704
      %v726 = vpack.c.b16 %v707, %v706
      %v727 = vpack.c.b16 %v709, %v708
      %v728 = vpack.c.b16 %v711, %v710
      %v729 = vpack.c.b16 %v713, %v712
      %v732 = vunpack.c.l.b16 %v307
      %v733 = vunpack.c.l.b16 %v308
      %v734 = vpack.c.b16 %v733, %v732
      %v736 = vsel %vm436, %v714, 0
      %v739 = vsel %vm436, %v715, 0
      %v742 = vsel %vm436, %v716, 0
      %v745 = vsel %vm436, %v717, 0
      %v748 = vsel %vm436, %v718, 0
      %v751 = vsel %vm436, %v719, 0
      %v754 = vsel %vm436, %v720, 0
      %v757 = vsel %vm436, %v721, 0
      %v760 = vsel %vm436, %v722, 0
      %v763 = vsel %vm436, %v723, 0
      %v766 = vsel %vm436, %v724, 0
      %v769 = vsel %vm436, %v725, 0
      %v772 = vsel %vm436, %v726, 0
      %v775 = vsel %vm436, %v727, 0
      %v778 = vsel %vm436, %v728, 0
      %v781 = vsel %vm436, %v729, 0
      %v784 = vsel %vm485, %v734, 0
      %786 = vmatprep.subr.bf16.mxu0 0
      %787 = vmatpush1.bf16.msra.mxu0 %v784
      %788 = vmatprep.subr.bf16.mxu0 0
      %789 = vmatpush1.bf16.msra.mxu0 0
      %790 = vmatprep.subr.bf16.mxu0 0
      %791 = vmatpush1.bf16.msra.mxu0 0
      %792 = vmatprep.subr.bf16.mxu0 0
      %793 = vmatpush1.bf16.msra.mxu0 0
      %794 = vmatprep.subr.bf16.mxu0 0
      %795 = vmatpush1.bf16.msra.mxu0 0
      %796 = vmatprep.subr.bf16.mxu0 0
      %797 = vmatpush1.bf16.msra.mxu0 0
      %798 = vmatprep.subr.bf16.mxu0 0
      %799 = vmatpush1.bf16.msra.mxu0 0
      %800 = vmatprep.subr.bf16.mxu0 0
      %801 = vmatpush1.bf16.msra.mxu0 0
      %802 = vmatprep.subr.bf16.mxu0 0
      %803 = vmatpush1.bf16.msra.mxu0 0
      %804 = vmatprep.subr.bf16.mxu0 0
      %805 = vmatpush1.bf16.msra.mxu0 0
      %806 = vmatprep.subr.bf16.mxu0 0
      %807 = vmatpush1.bf16.msra.mxu0 0
      %808 = vmatprep.subr.bf16.mxu0 0
      %809 = vmatpush1.bf16.msra.mxu0 0
      %810 = vmatprep.subr.bf16.mxu0 0
      %811 = vmatpush1.bf16.msra.mxu0 0
      %812 = vmatprep.subr.bf16.mxu0 0
      %813 = vmatpush1.bf16.msra.mxu0 0
      %814 = vmatprep.subr.bf16.mxu0 0
      %815 = vmatpush1.bf16.msra.mxu0 0
      %816 = vmatprep.subr.bf16.mxu0 0
      %817 = vmatpush1.bf16.msra.mxu0 0
      %818 = vmatprep.mubr.bf16.mxu0 0
      %819 = vmatmul.mubr.bf16.gmra.mrb[0].mxu0 %v736
      %v820 = vpop.f32.mrb[0].mxu0
      %v821 = vadd.f32 %v524, %v820
      %v822 = vpop.f32.mrb[0].mxu0
      %v823 = vpop.f32.mrb[0].mxu0
      %v824 = vadd.f32 %v527, %v823
      %v825 = vpop.f32.mrb[0].mxu0
      %826 = vmatprep.mubr.bf16.mxu0 0
      %827 = vmatmul.mubr.bf16.gmra.mrb[0].mxu0 %v739
      %v828 = vpop.f32.mrb[0].mxu0
      %v829 = vadd.f32 %v532, %v828
      %v830 = vpop.f32.mrb[0].mxu0
      %v831 = vpop.f32.mrb[0].mxu0
      %v832 = vadd.f32 %v535, %v831
      %v833 = vpop.f32.mrb[0].mxu0
      %834 = vmatprep.mubr.bf16.mxu0 0
      %835 = vmatmul.mubr.bf16.gmra.mrb[0].mxu0 %v742
      %v836 = vpop.f32.mrb[0].mxu0
      %v837 = vadd.f32 %v540, %v836
      %v838 = vpop.f32.mrb[0].mxu0
      %v839 = vpop.f32.mrb[0].mxu0
      %v840 = vadd.f32 %v543, %v839
      %v841 = vpop.f32.mrb[0].mxu0
      %842 = vmatprep.mubr.bf16.mxu0 0
      %843 = vmatmul.mubr.bf16.gmra.mrb[0].mxu0 %v745
      %v844 = vpop.f32.mrb[0].mxu0
      %v845 = vadd.f32 %v548, %v844
      %v846 = vpop.f32.mrb[0].mxu0
      %v847 = vpop.f32.mrb[0].mxu0
      %v848 = vadd.f32 %v551, %v847
      %v849 = vpop.f32.mrb[0].mxu0
      %850 = vmatprep.mubr.bf16.mxu0 0
      %851 = vmatmul.mubr.bf16.gmra.mrb[0].mxu0 %v748
      %v852 = vpop.f32.mrb[0].mxu0
      %v853 = vadd.f32 %v556, %v852
      %v854 = vpop.f32.mrb[0].mxu0
      %v855 = vpop.f32.mrb[0].mxu0
      %v856 = vadd.f32 %v559, %v855
      %v857 = vpop.f32.mrb[0].mxu0
      %858 = vmatprep.mubr.bf16.mxu0 0
      %859 = vmatmul.mubr.bf16.gmra.mrb[0].mxu0 %v751
      %v860 = vpop.f32.mrb[0].mxu0
      %v861 = vadd.f32 %v564, %v860
      %v862 = vpop.f32.mrb[0].mxu0
      %v863 = vpop.f32.mrb[0].mxu0
      %v864 = vadd.f32 %v567, %v863
      %v865 = vpop.f32.mrb[0].mxu0
      %866 = vmatprep.mubr.bf16.mxu0 0
      %867 = vmatmul.mubr.bf16.gmra.mrb[0].mxu0 %v754
      %v868 = vpop.f32.mrb[0].mxu0
      %v869 = vadd.f32 %v572, %v868
      %v870 = vpop.f32.mrb[0].mxu0
      %v871 = vpop.f32.mrb[0].mxu0
      %v872 = vadd.f32 %v575, %v871
      %v873 = vpop.f32.mrb[0].mxu0
      %874 = vmatprep.mubr.bf16.mxu0 0
      %875 = vmatmul.mubr.bf16.gmra.mrb[0].mxu0 %v757
      %v876 = vpop.f32.mrb[0].mxu0
      %v877 = vadd.f32 %v580, %v876
      %v878 = vpop.f32.mrb[0].mxu0
      %v879 = vpop.f32.mrb[0].mxu0
      %v880 = vadd.f32 %v583, %v879
      %v881 = vpop.f32.mrb[0].mxu0
      %882 = vmatprep.mubr.bf16.mxu0 0
      %883 = vmatmul.mubr.bf16.gmra.mrb[0].mxu0 %v760
      %v884 = vpop.f32.mrb[0].mxu0
      %v885 = vadd.f32 %v588, %v884
      %v886 = vpop.f32.mrb[0].mxu0
      %v887 = vpop.f32.mrb[0].mxu0
      %v888 = vadd.f32 %v591, %v887
      %v889 = vpop.f32.mrb[0].mxu0
      %890 = vmatprep.mubr.bf16.mxu0 0
      %891 = vmatmul.mubr.bf16.gmra.mrb[0].mxu0 %v763
      %v892 = vpop.f32.mrb[0].mxu0
      %v893 = vadd.f32 %v596, %v892
      %v894 = vpop.f32.mrb[0].mxu0
      %v895 = vpop.f32.mrb[0].mxu0
      %v896 = vadd.f32 %v599, %v895
      %v897 = vpop.f32.mrb[0].mxu0
      %898 = vmatprep.mubr.bf16.mxu0 0
      %899 = vmatmul.mubr.bf16.gmra.mrb[0].mxu0 %v766
      %v900 = vpop.f32.mrb[0].mxu0
      %v901 = vadd.f32 %v604, %v900
      %v902 = vpop.f32.mrb[0].mxu0
      %v903 = vpop.f32.mrb[0].mxu0
      %v904 = vadd.f32 %v607, %v903
      %v905 = vpop.f32.mrb[0].mxu0
      %906 = vmatprep.mubr.bf16.mxu0 0
      %907 = vmatmul.mubr.bf16.gmra.mrb[0].mxu0 %v769
      %v908 = vpop.f32.mrb[0].mxu0
      %v909 = vadd.f32 %v612, %v908
      %v910 = vpop.f32.mrb[0].mxu0
      %v911 = vpop.f32.mrb[0].mxu0
      %v912 = vadd.f32 %v615, %v911
      %v913 = vpop.f32.mrb[0].mxu0
      %914 = vmatprep.mubr.bf16.mxu0 0
      %915 = vmatmul.mubr.bf16.gmra.mrb[0].mxu0 %v772
      %v916 = vpop.f32.mrb[0].mxu0
      %v917 = vadd.f32 %v620, %v916
      %v918 = vpop.f32.mrb[0].mxu0
      %v919 = vpop.f32.mrb[0].mxu0
      %v920 = vadd.f32 %v623, %v919
      %v921 = vpop.f32.mrb[0].mxu0
      %922 = vmatprep.mubr.bf16.mxu0 0
      %923 = vmatmul.mubr.bf16.gmra.mrb[0].mxu0 %v775
      %v924 = vpop.f32.mrb[0].mxu0
      %v925 = vadd.f32 %v628, %v924
      %v926 = vpop.f32.mrb[0].mxu0
      %v927 = vpop.f32.mrb[0].mxu0
      %v928 = vadd.f32 %v631, %v927
      %v929 = vpop.f32.mrb[0].mxu0
      %930 = vmatprep.mubr.bf16.mxu0 0
      %931 = vmatmul.mubr.bf16.gmra.mrb[0].mxu0 %v778
      %v932 = vpop.f32.mrb[0].mxu0
      %v933 = vadd.f32 %v636, %v932
      %v934 = vpop.f32.mrb[0].mxu0
      %v935 = vpop.f32.mrb[0].mxu0
      %v936 = vadd.f32 %v639, %v935
      %v937 = vpop.f32.mrb[0].mxu0
      %938 = vmatprep.mubr.bf16.mxu0 0
      %939 = vmatmul.mubr.bf16.gmra.mrb[0].mxu0 %v781
      %v940 = vpop.f32.mrb[0].mxu0
      %v941 = vadd.f32 %v644, %v940
      %v942 = vpop.f32.mrb[0].mxu0
      %v943 = vpop.f32.mrb[0].mxu0
      %v944 = vadd.f32 %v647, %v943
      %v945 = vpop.f32.mrb[0].mxu0
      %946 = vdwg.mxu0
      %s947 = sadd.s32 %s309, 2
      %s948 = smul.u32 %s947, 16
      %s949 = sshra.s32 %s948, 3
      %s950 = sand.u32 %s948, 7
      %s951 = smul.addr %s949, 4
      %s952 = scalar_lea.vmem %s250, %s951
      %v953 = vld [vmem:[%s952] sm:$0xf]
      %v954 = vld [vmem:[%s952 + $0x4] sm:$0xf]
      %v955 = vld [vmem:[%s952 + $0x8] sm:$0xf]
      %v956 = vld [vmem:[%s952 + $0xc] sm:$0xf]
      %v957 = vld [vmem:[%s952 + $0x10] sm:$0xf]
      %v958 = vld [vmem:[%s952 + $0x14] sm:$0xf]
      %v959 = vld [vmem:[%s952 + $0x18] sm:$0xf]
      %v960 = vld [vmem:[%s952 + $0x1c] sm:$0xf]
      %v961 = vld [vmem:[%s952 + $0x20] sm:$0xf]
      %v962 = vld [vmem:[%s952 + $0x24] sm:$0xf]
      %v963 = vld [vmem:[%s952 + $0x28] sm:$0xf]
      %v964 = vld [vmem:[%s952 + $0x2c] sm:$0xf]
      %v965 = vld [vmem:[%s952 + $0x30] sm:$0xf]
      %v966 = vld [vmem:[%s952 + $0x34] sm:$0xf]
      %v967 = vld [vmem:[%s952 + $0x38] sm:$0xf]
      %v968 = vld [vmem:[%s952 + $0x3c] sm:$0xf]
      %v969 = vld [vmem:[%s952 + $0x40] sm:$0xf]
      %v970 = vld [vmem:[%s952 + $0x44] sm:$0xf]
      %v971 = vld [vmem:[%s952 + $0x48] sm:$0xf]
      %v972 = vld [vmem:[%s952 + $0x4c] sm:$0xf]
      %v973 = vld [vmem:[%s952 + $0x50] sm:$0xf]
      %v974 = vld [vmem:[%s952 + $0x54] sm:$0xf]
      %v975 = vld [vmem:[%s952 + $0x58] sm:$0xf]
      %v976 = vld [vmem:[%s952 + $0x5c] sm:$0xf]
      %v977 = vld [vmem:[%s952 + $0x60] sm:$0xf]
      %v978 = vld [vmem:[%s952 + $0x64] sm:$0xf]
      %v979 = vld [vmem:[%s952 + $0x68] sm:$0xf]
      %v980 = vld [vmem:[%s952 + $0x6c] sm:$0xf]
      %v981 = vld [vmem:[%s952 + $0x70] sm:$0xf]
      %v982 = vld [vmem:[%s952 + $0x74] sm:$0xf]
      %v983 = vld [vmem:[%s952 + $0x78] sm:$0xf]
      %v984 = vld [vmem:[%s952 + $0x7c] sm:$0xf]
      %s985 = scalar_lea.vmem %s1, 16
      %v986 = vld [vmem:[%s985] sm:$0xf]
      %v987 = vld [vmem:[%s985 + $0x4] sm:$0x3]
      %v1020 = vunpack.c.l.b16 %v953
      %v1021 = vunpack.c.l.b16 %v954
      %v1022 = vunpack.c.l.b16 %v955
      %v1023 = vunpack.c.l.b16 %v956
      %v1024 = vunpack.c.l.b16 %v957
      %v1025 = vunpack.c.l.b16 %v958
      %v1026 = vunpack.c.l.b16 %v959
      %v1027 = vunpack.c.l.b16 %v960
      %v1028 = vunpack.c.l.b16 %v961
      %v1029 = vunpack.c.l.b16 %v962
      %v1030 = vunpack.c.l.b16 %v963
      %v1031 = vunpack.c.l.b16 %v964
      %v1032 = vunpack.c.l.b16 %v965
      %v1033 = vunpack.c.l.b16 %v966
      %v1034 = vunpack.c.l.b16 %v967
      %v1035 = vunpack.c.l.b16 %v968
      %v1036 = vunpack.c.l.b16 %v969
      %v1037 = vunpack.c.l.b16 %v970
      %v1038 = vunpack.c.l.b16 %v971
      %v1039 = vunpack.c.l.b16 %v972
      %v1040 = vunpack.c.l.b16 %v973
      %v1041 = vunpack.c.l.b16 %v974
      %v1042 = vunpack.c.l.b16 %v975
      %v1043 = vunpack.c.l.b16 %v976
      %v1044 = vunpack.c.l.b16 %v977
      %v1045 = vunpack.c.l.b16 %v978
      %v1046 = vunpack.c.l.b16 %v979
      %v1047 = vunpack.c.l.b16 %v980
      %v1048 = vunpack.c.l.b16 %v981
      %v1049 = vunpack.c.l.b16 %v982
      %v1050 = vunpack.c.l.b16 %v983
      %v1051 = vunpack.c.l.b16 %v984
      %v1052 = vpack.c.b16 %v1021, %v1020
      %v1053 = vpack.c.b16 %v1023, %v1022
      %v1054 = vpack.c.b16 %v1025, %v1024
      %v1055 = vpack.c.b16 %v1027, %v1026
      %v1056 = vpack.c.b16 %v1029, %v1028
      %v1057 = vpack.c.b16 %v1031, %v1030
      %v1058 = vpack.c.b16 %v1033, %v1032
      %v1059 = vpack.c.b16 %v1035, %v1034
      %v1060 = vpack.c.b16 %v1037, %v1036
      %v1061 = vpack.c.b16 %v1039, %v1038
      %v1062 = vpack.c.b16 %v1041, %v1040
      %v1063 = vpack.c.b16 %v1043, %v1042
      %v1064 = vpack.c.b16 %v1045, %v1044
      %v1065 = vpack.c.b16 %v1047, %v1046
      %v1066 = vpack.c.b16 %v1049, %v1048
      %v1067 = vpack.c.b16 %v1051, %v1050
      %v1070 = vunpack.c.l.b16 %v986
      %v1071 = vunpack.c.l.b16 %v987
      %v1072 = vpack.c.b16 %v1071, %v1070
      %v1074 = vsel %vm436, %v1052, 0
      %v1077 = vsel %vm436, %v1053, 0
      %v1080 = vsel %vm436, %v1054, 0
      %v1083 = vsel %vm436, %v1055, 0
      %v1086 = vsel %vm436, %v1056, 0
      %v1089 = vsel %vm436, %v1057, 0
      %v1092 = vsel %vm436, %v1058, 0
      %v1095 = vsel %vm436, %v1059, 0
      %v1098 = vsel %vm436, %v1060, 0
      %v1101 = vsel %vm436, %v1061, 0
      %v1104 = vsel %vm436, %v1062, 0
      %v1107 = vsel %vm436, %v1063, 0
      %v1110 = vsel %vm436, %v1064, 0
      %v1113 = vsel %vm436, %v1065, 0
      %v1116 = vsel %vm436, %v1066, 0
      %v1119 = vsel %vm436, %v1067, 0
      %v1122 = vsel %vm485, %v1072, 0
      %1124 = vmatprep.subr.bf16.mxu0 0
      %1125 = vmatpush1.bf16.msra.mxu0 %v1122
      %1126 = vmatprep.subr.bf16.mxu0 0
      %1127 = vmatpush1.bf16.msra.mxu0 0
      %1128 = vmatprep.subr.bf16.mxu0 0
      %1129 = vmatpush1.bf16.msra.mxu0 0
      %1130 = vmatprep.subr.bf16.mxu0 0
      %1131 = vmatpush1.bf16.msra.mxu0 0
      %1132 = vmatprep.subr.bf16.mxu0 0
      %1133 = vmatpush1.bf16.msra.mxu0 0
      %1134 = vmatprep.subr.bf16.mxu0 0
      %1135 = vmatpush1.bf16.msra.mxu0 0
      %1136 = vmatprep.subr.bf16.mxu0 0
      %1137 = vmatpush1.bf16.msra.mxu0 0
      %1138 = vmatprep.subr.bf16.mxu0 0
      %1139 = vmatpush1.bf16.msra.mxu0 0
      %1140 = vmatprep.subr.bf16.mxu0 0
      %1141 = vmatpush1.bf16.msra.mxu0 0
      %1142 = vmatprep.subr.bf16.mxu0 0
      %1143 = vmatpush1.bf16.msra.mxu0 0
      %1144 = vmatprep.subr.bf16.mxu0 0
      %1145 = vmatpush1.bf16.msra.mxu0 0
      %1146 = vmatprep.subr.bf16.mxu0 0
      %1147 = vmatpush1.bf16.msra.mxu0 0
      %1148 = vmatprep.subr.bf16.mxu0 0
      %1149 = vmatpush1.bf16.msra.mxu0 0
      %1150 = vmatprep.subr.bf16.mxu0 0
      %1151 = vmatpush1.bf16.msra.mxu0 0
      %1152 = vmatprep.subr.bf16.mxu0 0
      %1153 = vmatpush1.bf16.msra.mxu0 0
      %1154 = vmatprep.subr.bf16.mxu0 0
      %1155 = vmatpush1.bf16.msra.mxu0 0
      %1156 = vmatprep.mubr.bf16.mxu0 0
      %1157 = vmatmul.mubr.bf16.gmra.mrb[0].mxu0 %v1074
      %v1158 = vpop.f32.mrb[0].mxu0
      %v1159 = vadd.f32 0.0, %v1158
      %v1160 = vpop.f32.mrb[0].mxu0
      %v1161 = vpop.f32.mrb[0].mxu0
      %v1162 = vadd.f32 0.0, %v1161
      %v1163 = vpop.f32.mrb[0].mxu0
      %1164 = vmatprep.mubr.bf16.mxu0 0
      %1165 = vmatmul.mubr.bf16.gmra.mrb[0].mxu0 %v1077
      %v1166 = vpop.f32.mrb[0].mxu0
      %v1167 = vadd.f32 0.0, %v1166
      %v1168 = vpop.f32.mrb[0].mxu0
      %v1169 = vpop.f32.mrb[0].mxu0
      %v1170 = vadd.f32 0.0, %v1169
      %v1171 = vpop.f32.mrb[0].mxu0
      %1172 = vmatprep.mubr.bf16.mxu0 0
      %1173 = vmatmul.mubr.bf16.gmra.mrb[0].mxu0 %v1080
      %v1174 = vpop.f32.mrb[0].mxu0
      %v1175 = vadd.f32 0.0, %v1174
      %v1176 = vpop.f32.mrb[0].mxu0
      %v1177 = vpop.f32.mrb[0].mxu0
      %v1178 = vadd.f32 0.0, %v1177
      %v1179 = vpop.f32.mrb[0].mxu0
      %1180 = vmatprep.mubr.bf16.mxu0 0
      %1181 = vmatmul.mubr.bf16.gmra.mrb[0].mxu0 %v1083
      %v1182 = vpop.f32.mrb[0].mxu0
      %v1183 = vadd.f32 0.0, %v1182
      %v1184 = vpop.f32.mrb[0].mxu0
      %v1185 = vpop.f32.mrb[0].mxu0
      %v1186 = vadd.f32 0.0, %v1185
      %v1187 = vpop.f32.mrb[0].mxu0
      %1188 = vmatprep.mubr.bf16.mxu0 0
      %1189 = vmatmul.mubr.bf16.gmra.mrb[0].mxu0 %v1086
      %v1190 = vpop.f32.mrb[0].mxu0
      %v1191 = vadd.f32 0.0, %v1190
      %v1192 = vpop.f32.mrb[0].mxu0
      %v1193 = vpop.f32.mrb[0].mxu0
      %v1194 = vadd.f32 0.0, %v1193
      %v1195 = vpop.f32.mrb[0].mxu0
      %1196 = vmatprep.mubr.bf16.mxu0 0
      %1197 = vmatmul.mubr.bf16.gmra.mrb[0].mxu0 %v1089
      %v1198 = vpop.f32.mrb[0].mxu0
      %v1199 = vadd.f32 0.0, %v1198
      %v1200 = vpop.f32.mrb[0].mxu0
      %v1201 = vpop.f32.mrb[0].mxu0
      %v1202 = vadd.f32 0.0, %v1201
      %v1203 = vpop.f32.mrb[0].mxu0
      %1204 = vmatprep.mubr.bf16.mxu0 0
      %1205 = vmatmul.mubr.bf16.gmra.mrb[0].mxu0 %v1092
      %v1206 = vpop.f32.mrb[0].mxu0
      %v1207 = vadd.f32 0.0, %v1206
      %v1208 = vpop.f32.mrb[0].mxu0
      %v1209 = vpop.f32.mrb[0].mxu0
      %v1210 = vadd.f32 0.0, %v1209
      %v1211 = vpop.f32.mrb[0].mxu0
      %1212 = vmatprep.mubr.bf16.mxu0 0
      %1213 = vmatmul.mubr.bf16.gmra.mrb[0].mxu0 %v1095
      %v1214 = vpop.f32.mrb[0].mxu0
      %v1215 = vadd.f32 0.0, %v1214
      %v1216 = vpop.f32.mrb[0].mxu0
      %v1217 = vpop.f32.mrb[0].mxu0
      %v1218 = vadd.f32 0.0, %v1217
      %v1219 = vpop.f32.mrb[0].mxu0
      %1220 = vmatprep.mubr.bf16.mxu0 0
      %1221 = vmatmul.mubr.bf16.gmra.mrb[0].mxu0 %v1098
      %v1222 = vpop.f32.mrb[0].mxu0
      %v1223 = vadd.f32 0.0, %v1222
      %v1224 = vpop.f32.mrb[0].mxu0
      %v1225 = vpop.f32.mrb[0].mxu0
      %v1226 = vadd.f32 0.0, %v1225
      %v1227 = vpop.f32.mrb[0].mxu0
      %1228 = vmatprep.mubr.bf16.mxu0 0
      %1229 = vmatmul.mubr.bf16.gmra.mrb[0].mxu0 %v1101
      %v1230 = vpop.f32.mrb[0].mxu0
      %v1231 = vadd.f32 0.0, %v1230
      %v1232 = vpop.f32.mrb[0].mxu0
      %v1233 = vpop.f32.mrb[0].mxu0
      %v1234 = vadd.f32 0.0, %v1233
      %v1235 = vpop.f32.mrb[0].mxu0
      %1236 = vmatprep.mubr.bf16.mxu0 0
      %1237 = vmatmul.mubr.bf16.gmra.mrb[0].mxu0 %v1104
      %v1238 = vpop.f32.mrb[0].mxu0
      %v1239 = vadd.f32 0.0, %v1238
      %v1240 = vpop.f32.mrb[0].mxu0
      %v1241 = vpop.f32.mrb[0].mxu0
      %v1242 = vadd.f32 0.0, %v1241
      %v1243 = vpop.f32.mrb[0].mxu0
      %1244 = vmatprep.mubr.bf16.mxu0 0
      %1245 = vmatmul.mubr.bf16.gmra.mrb[0].mxu0 %v1107
      %v1246 = vpop.f32.mrb[0].mxu0
      %v1247 = vadd.f32 0.0, %v1246
      %v1248 = vpop.f32.mrb[0].mxu0
      %v1249 = vpop.f32.mrb[0].mxu0
      %v1250 = vadd.f32 0.0, %v1249
      %v1251 = vpop.f32.mrb[0].mxu0
      %1252 = vmatprep.mubr.bf16.mxu0 0
      %1253 = vmatmul.mubr.bf16.gmra.mrb[0].mxu0 %v1110
      %v1254 = vpop.f32.mrb[0].mxu0
      %v1255 = vadd.f32 0.0, %v1254
      %v1256 = vpop.f32.mrb[0].mxu0
      %v1257 = vpop.f32.mrb[0].mxu0
      %v1258 = vadd.f32 0.0, %v1257
      %v1259 = vpop.f32.mrb[0].mxu0
      %1260 = vmatprep.mubr.bf16.mxu0 0
      %1261 = vmatmul.mubr.bf16.gmra.mrb[0].mxu0 %v1113
      %v1262 = vpop.f32.mrb[0].mxu0
      %v1263 = vadd.f32 0.0, %v1262
      %v1264 = vpop.f32.mrb[0].mxu0
      %v1265 = vpop.f32.mrb[0].mxu0
      %v1266 = vadd.f32 0.0, %v1265
      %v1267 = vpop.f32.mrb[0].mxu0
      %1268 = vmatprep.mubr.bf16.mxu0 0
      %1269 = vmatmul.mubr.bf16.gmra.mrb[0].mxu0 %v1116
      %v1270 = vpop.f32.mrb[0].mxu0
      %v1271 = vadd.f32 0.0, %v1270
      %v1272 = vpop.f32.mrb[0].mxu0
      %v1273 = vpop.f32.mrb[0].mxu0
      %v1274 = vadd.f32 0.0, %v1273
      %v1275 = vpop.f32.mrb[0].mxu0
      %1276 = vmatprep.mubr.bf16.mxu0 0
      %1277 = vmatmul.mubr.bf16.gmra.mrb[0].mxu0 %v1119
      %v1278 = vpop.f32.mrb[0].mxu0
      %v1279 = vadd.f32 0.0, %v1278
      %v1280 = vpop.f32.mrb[0].mxu0
      %v1281 = vpop.f32.mrb[0].mxu0
      %v1282 = vadd.f32 0.0, %v1281
      %v1283 = vpop.f32.mrb[0].mxu0
      %1284 = vdwg.mxu0
      %v1285 = vadd.f32 %v821, %v1159
      %v1286 = vadd.f32 %v824, %v1162
      %v1287 = vadd.f32 %v829, %v1167
      %v1288 = vadd.f32 %v832, %v1170
      %v1289 = vadd.f32 %v837, %v1175
      %v1290 = vadd.f32 %v840, %v1178
      %v1291 = vadd.f32 %v845, %v1183
      %v1292 = vadd.f32 %v848, %v1186
      %v1293 = vadd.f32 %v853, %v1191
      %v1294 = vadd.f32 %v856, %v1194
      %v1295 = vadd.f32 %v861, %v1199
      %v1296 = vadd.f32 %v864, %v1202
      %v1297 = vadd.f32 %v869, %v1207
      %v1298 = vadd.f32 %v872, %v1210
      %v1299 = vadd.f32 %v877, %v1215
      %v1300 = vadd.f32 %v880, %v1218
      %v1301 = vadd.f32 %v885, %v1223
      %v1302 = vadd.f32 %v888, %v1226
      %v1303 = vadd.f32 %v893, %v1231
      %v1304 = vadd.f32 %v896, %v1234
      %v1305 = vadd.f32 %v901, %v1239
      %v1306 = vadd.f32 %v904, %v1242
      %v1307 = vadd.f32 %v909, %v1247
      %v1308 = vadd.f32 %v912, %v1250
      %v1309 = vadd.f32 %v917, %v1255
      %v1310 = vadd.f32 %v920, %v1258
      %v1311 = vadd.f32 %v925, %v1263
      %v1312 = vadd.f32 %v928, %v1266
      %v1313 = vadd.f32 %v933, %v1271
      %v1314 = vadd.f32 %v936, %v1274
      %v1315 = vadd.f32 %v941, %v1279
      %v1316 = vadd.f32 %v944, %v1282
      %v1317 = vld [vmem:[%s2] sm:$0x1]
      %v1319 = vlaneseq
      %v1320 = vshrl.u32 %v1319, 7
      %v1321 = vsub.s32 0, %v1320
      %v1322 = vrot.slane %v1317, %v1321
      %v1324 = vadd.f32 %v1285, %v1322
      %v1325 = vadd.f32 %v1286, %v1322
      %v1326 = vadd.f32 %v1287, %v1322
      %v1327 = vadd.f32 %v1288, %v1322
      %v1328 = vadd.f32 %v1289, %v1322
      %v1329 = vadd.f32 %v1290, %v1322
      %v1330 = vadd.f32 %v1291, %v1322
      %v1331 = vadd.f32 %v1292, %v1322
      %v1332 = vadd.f32 %v1293, %v1322
      %v1333 = vadd.f32 %v1294, %v1322
      %v1334 = vadd.f32 %v1295, %v1322
      %v1335 = vadd.f32 %v1296, %v1322
      %v1336 = vadd.f32 %v1297, %v1322
      %v1337 = vadd.f32 %v1298, %v1322
      %v1338 = vadd.f32 %v1299, %v1322
      %v1339 = vadd.f32 %v1300, %v1322
      %v1340 = vadd.f32 %v1301, %v1322
      %v1341 = vadd.f32 %v1302, %v1322
      %v1342 = vadd.f32 %v1303, %v1322
      %v1343 = vadd.f32 %v1304, %v1322
      %v1344 = vadd.f32 %v1305, %v1322
      %v1345 = vadd.f32 %v1306, %v1322
      %v1346 = vadd.f32 %v1307, %v1322
      %v1347 = vadd.f32 %v1308, %v1322
      %v1348 = vadd.f32 %v1309, %v1322
      %v1349 = vadd.f32 %v1310, %v1322
      %v1350 = vadd.f32 %v1311, %v1322
      %v1351 = vadd.f32 %v1312, %v1322
      %v1352 = vadd.f32 %v1313, %v1322
      %v1353 = vadd.f32 %v1314, %v1322
      %v1354 = vadd.f32 %v1315, %v1322
      %v1355 = vadd.f32 %v1316, %v1322
      %v1356 = vpack.c.bf16 %v1325, %v1324
      %v1357 = vpack.c.bf16 %v1327, %v1326
      %v1358 = vpack.c.bf16 %v1329, %v1328
      %v1359 = vpack.c.bf16 %v1331, %v1330
      %v1360 = vpack.c.bf16 %v1333, %v1332
      %v1361 = vpack.c.bf16 %v1335, %v1334
      %v1362 = vpack.c.bf16 %v1337, %v1336
      %v1363 = vpack.c.bf16 %v1339, %v1338
      %v1364 = vpack.c.bf16 %v1341, %v1340
      %v1365 = vpack.c.bf16 %v1343, %v1342
      %v1366 = vpack.c.bf16 %v1345, %v1344
      %v1367 = vpack.c.bf16 %v1347, %v1346
      %v1368 = vpack.c.bf16 %v1349, %v1348
      %v1369 = vpack.c.bf16 %v1351, %v1350
      %v1370 = vpack.c.bf16 %v1353, %v1352
      %v1371 = vpack.c.bf16 %v1355, %v1354
      %v1388 = vunpack.c.l.b16 %v1356
      %v1389 = vunpack.c.h.b16 %v1356
      %v1390 = vunpack.c.l.b16 %v1357
      %v1391 = vunpack.c.h.b16 %v1357
      %v1392 = vunpack.c.l.b16 %v1358
      %v1393 = vunpack.c.h.b16 %v1358
      %v1394 = vunpack.c.l.b16 %v1359
      %v1395 = vunpack.c.h.b16 %v1359
      %v1396 = vunpack.c.l.b16 %v1360
      %v1397 = vunpack.c.h.b16 %v1360
      %v1398 = vunpack.c.l.b16 %v1361
      %v1399 = vunpack.c.h.b16 %v1361
      %v1400 = vunpack.c.l.b16 %v1362
      %v1401 = vunpack.c.h.b16 %v1362
      %v1402 = vunpack.c.l.b16 %v1363
      %v1403 = vunpack.c.h.b16 %v1363
      %v1404 = vunpack.c.l.b16 %v1364
      %v1405 = vunpack.c.h.b16 %v1364
      %v1406 = vunpack.c.l.b16 %v1365
      %v1407 = vunpack.c.h.b16 %v1365
      %v1408 = vunpack.c.l.b16 %v1366
      %v1409 = vunpack.c.h.b16 %v1366
      %v1410 = vunpack.c.l.b16 %v1367
      %v1411 = vunpack.c.h.b16 %v1367
      %v1412 = vunpack.c.l.b16 %v1368
      %v1413 = vunpack.c.h.b16 %v1368
      %v1414 = vunpack.c.l.b16 %v1369
      %v1415 = vunpack.c.h.b16 %v1369
      %v1416 = vunpack.c.l.b16 %v1370
      %v1417 = vunpack.c.h.b16 %v1370
      %v1418 = vunpack.c.l.b16 %v1371
      %v1419 = vunpack.c.h.b16 %v1371
      %v1420 = vpack.c.b16 %v1388, %v1388
      %v1421 = vpack.c.b16 %v1389, %v1389
      %v1422 = vpack.c.b16 %v1390, %v1390
      %v1423 = vpack.c.b16 %v1391, %v1391
      %v1424 = vpack.c.b16 %v1392, %v1392
      %v1425 = vpack.c.b16 %v1393, %v1393
      %v1426 = vpack.c.b16 %v1394, %v1394
      %v1427 = vpack.c.b16 %v1395, %v1395
      %v1428 = vpack.c.b16 %v1396, %v1396
      %v1429 = vpack.c.b16 %v1397, %v1397
      %v1430 = vpack.c.b16 %v1398, %v1398
      %v1431 = vpack.c.b16 %v1399, %v1399
      %v1432 = vpack.c.b16 %v1400, %v1400
      %v1433 = vpack.c.b16 %v1401, %v1401
      %v1434 = vpack.c.b16 %v1402, %v1402
      %v1435 = vpack.c.b16 %v1403, %v1403
      %v1436 = vpack.c.b16 %v1404, %v1404
      %v1437 = vpack.c.b16 %v1405, %v1405
      %v1438 = vpack.c.b16 %v1406, %v1406
      %v1439 = vpack.c.b16 %v1407, %v1407
      %v1440 = vpack.c.b16 %v1408, %v1408
      %v1441 = vpack.c.b16 %v1409, %v1409
      %v1442 = vpack.c.b16 %v1410, %v1410
      %v1443 = vpack.c.b16 %v1411, %v1411
      %v1444 = vpack.c.b16 %v1412, %v1412
      %v1445 = vpack.c.b16 %v1413, %v1413
      %v1446 = vpack.c.b16 %v1414, %v1414
      %v1447 = vpack.c.b16 %v1415, %v1415
      %v1448 = vpack.c.b16 %v1416, %v1416
      %v1449 = vpack.c.b16 %v1417, %v1417
      %v1450 = vpack.c.b16 %v1418, %v1418
      %v1451 = vpack.c.b16 %v1419, %v1419
      %1484 = vst [vmem:[%s259] sm:$0xf] %v1420
      %1485 = vst [vmem:[%s259 + $0x4] sm:$0xf] %v1421
      %1486 = vst [vmem:[%s259 + $0x8] sm:$0xf] %v1422
      %1487 = vst [vmem:[%s259 + $0xc] sm:$0xf] %v1423
      %1488 = vst [vmem:[%s259 + $0x10] sm:$0xf] %v1424
      %1489 = vst [vmem:[%s259 + $0x14] sm:$0xf] %v1425
      %1490 = vst [vmem:[%s259 + $0x18] sm:$0xf] %v1426
      %1491 = vst [vmem:[%s259 + $0x1c] sm:$0xf] %v1427
      %1492 = vst [vmem:[%s259 + $0x20] sm:$0xf] %v1428
      %1493 = vst [vmem:[%s259 + $0x24] sm:$0xf] %v1429
      %1494 = vst [vmem:[%s259 + $0x28] sm:$0xf] %v1430
      %1495 = vst [vmem:[%s259 + $0x2c] sm:$0xf] %v1431
      %1496 = vst [vmem:[%s259 + $0x30] sm:$0xf] %v1432
      %1497 = vst [vmem:[%s259 + $0x34] sm:$0xf] %v1433
      %1498 = vst [vmem:[%s259 + $0x38] sm:$0xf] %v1434
      %1499 = vst [vmem:[%s259 + $0x3c] sm:$0xf] %v1435
      %1500 = vst [vmem:[%s259 + $0x40] sm:$0xf] %v1436
      %1501 = vst [vmem:[%s259 + $0x44] sm:$0xf] %v1437
      %1502 = vst [vmem:[%s259 + $0x48] sm:$0xf] %v1438
      %1503 = vst [vmem:[%s259 + $0x4c] sm:$0xf] %v1439
      %1504 = vst [vmem:[%s259 + $0x50] sm:$0xf] %v1440
      %1505 = vst [vmem:[%s259 + $0x54] sm:$0xf] %v1441
      %1506 = vst [vmem:[%s259 + $0x58] sm:$0xf] %v1442
      %1507 = vst [vmem:[%s259 + $0x5c] sm:$0xf] %v1443
      %1508 = vst [vmem:[%s259 + $0x60] sm:$0xf] %v1444
      %1509 = vst [vmem:[%s259 + $0x64] sm:$0xf] %v1445
      %1510 = vst [vmem:[%s259 + $0x68] sm:$0xf] %v1446
      %1511 = vst [vmem:[%s259 + $0x6c] sm:$0xf] %v1447
      %1512 = vst [vmem:[%s259 + $0x70] sm:$0xf] %v1448
      %1513 = vst [vmem:[%s259 + $0x74] sm:$0xf] %v1449
      %1514 = vst [vmem:[%s259 + $0x78] sm:$0xf] %v1450
      %1515 = vst [vmem:[%s259 + $0x7c] sm:$0xf] %v1451
      %v1516 = vadd.f32 %v1285, %v1286
      %v1517 = vadd.f32 %v1516, %v1287
      %v1518 = vadd.f32 %v1517, %v1288
      %v1519 = vadd.f32 %v1518, %v1289
      %v1520 = vadd.f32 %v1519, %v1290
      %v1521 = vadd.f32 %v1520, %v1291
      %v1522 = vadd.f32 %v1521, %v1292
      %v1523 = vadd.f32 %v1522, %v1293
      %v1524 = vadd.f32 %v1523, %v1294
      %v1525 = vadd.f32 %v1524, %v1295
      %v1526 = vadd.f32 %v1525, %v1296
      %v1527 = vadd.f32 %v1526, %v1297
      %v1528 = vadd.f32 %v1527, %v1298
      %v1529 = vadd.f32 %v1528, %v1299
      %v1530 = vadd.f32 %v1529, %v1300
      %v1531 = vadd.f32 %v1530, %v1301
      %v1532 = vadd.f32 %v1531, %v1302
      %v1533 = vadd.f32 %v1532, %v1303
      %v1534 = vadd.f32 %v1533, %v1304
      %v1535 = vadd.f32 %v1534, %v1305
      %v1536 = vadd.f32 %v1535, %v1306
      %v1537 = vadd.f32 %v1536, %v1307
      %v1538 = vadd.f32 %v1537, %v1308
      %v1539 = vadd.f32 %v1538, %v1309
      %v1540 = vadd.f32 %v1539, %v1310
      %v1541 = vadd.f32 %v1540, %v1311
      %v1542 = vadd.f32 %v1541, %v1312
      %v1543 = vadd.f32 %v1542, %v1313
      %v1544 = vadd.f32 %v1543, %v1314
      %v1545 = vadd.f32 %v1544, %v1315
      %v1546 = vadd.f32 %v1545, %v1316
      %v1547 = vrot.slane %v1546, 4
      %v1548 = vadd.f32 %v1546, %v1547
      %v1549 = vrot.slane %v1548, 2
      %v1550 = vadd.f32 %v1548, %v1549
      %v1551 = vrot.slane %v1550, 1
      %v1552 = vadd.f32 %v1550, %v1551
      %v1553 = vmul.f32 %v1285, %v1285
      %v1554 = vmul.f32 %v1286, %v1286
      %v1555 = vmul.f32 %v1287, %v1287
      %v1556 = vmul.f32 %v1288, %v1288
      %v1557 = vmul.f32 %v1289, %v1289
      %v1558 = vmul.f32 %v1290, %v1290
      %v1559 = vmul.f32 %v1291, %v1291
      %v1560 = vmul.f32 %v1292, %v1292
      %v1561 = vmul.f32 %v1293, %v1293
      %v1562 = vmul.f32 %v1294, %v1294
      %v1563 = vmul.f32 %v1295, %v1295
      %v1564 = vmul.f32 %v1296, %v1296
      %v1565 = vmul.f32 %v1297, %v1297
      %v1566 = vmul.f32 %v1298, %v1298
      %v1567 = vmul.f32 %v1299, %v1299
      %v1568 = vmul.f32 %v1300, %v1300
      %v1569 = vmul.f32 %v1301, %v1301
      %v1570 = vmul.f32 %v1302, %v1302
      %v1571 = vmul.f32 %v1303, %v1303
      %v1572 = vmul.f32 %v1304, %v1304
      %v1573 = vmul.f32 %v1305, %v1305
      %v1574 = vmul.f32 %v1306, %v1306
      %v1575 = vmul.f32 %v1307, %v1307
      %v1576 = vmul.f32 %v1308, %v1308
      %v1577 = vmul.f32 %v1309, %v1309
      %v1578 = vmul.f32 %v1310, %v1310
      %v1579 = vmul.f32 %v1311, %v1311
      %v1580 = vmul.f32 %v1312, %v1312
      %v1581 = vmul.f32 %v1313, %v1313
      %v1582 = vmul.f32 %v1314, %v1314
      %v1583 = vmul.f32 %v1315, %v1315
      %v1584 = vmul.f32 %v1316, %v1316
      %v1585 = vadd.f32 %v1553, %v1554
      %v1586 = vadd.f32 %v1585, %v1555
      %v1587 = vadd.f32 %v1586, %v1556
      %v1588 = vadd.f32 %v1587, %v1557
      %v1589 = vadd.f32 %v1588, %v1558
      %v1590 = vadd.f32 %v1589, %v1559
      %v1591 = vadd.f32 %v1590, %v1560
      %v1592 = vadd.f32 %v1591, %v1561
      %v1593 = vadd.f32 %v1592, %v1562
      %v1594 = vadd.f32 %v1593, %v1563
      %v1595 = vadd.f32 %v1594, %v1564
      %v1596 = vadd.f32 %v1595, %v1565
      %v1597 = vadd.f32 %v1596, %v1566
      %v1598 = vadd.f32 %v1597, %v1567
      %v1599 = vadd.f32 %v1598, %v1568
      %v1600 = vadd.f32 %v1599, %v1569
      %v1601 = vadd.f32 %v1600, %v1570
      %v1602 = vadd.f32 %v1601, %v1571
      %v1603 = vadd.f32 %v1602, %v1572
      %v1604 = vadd.f32 %v1603, %v1573
      %v1605 = vadd.f32 %v1604, %v1574
      %v1606 = vadd.f32 %v1605, %v1575
      %v1607 = vadd.f32 %v1606, %v1576
      %v1608 = vadd.f32 %v1607, %v1577
      %v1609 = vadd.f32 %v1608, %v1578
      %v1610 = vadd.f32 %v1609, %v1579
      %v1611 = vadd.f32 %v1610, %v1580
      %v1612 = vadd.f32 %v1611, %v1581
      %v1613 = vadd.f32 %v1612, %v1582
      %v1614 = vadd.f32 %v1613, %v1583
      %v1615 = vadd.f32 %v1614, %v1584
      %v1616 = vrot.slane %v1615, 4
      %v1617 = vadd.f32 %v1615, %v1616
      %v1618 = vrot.slane %v1617, 2
      %v1619 = vadd.f32 %v1617, %v1618
      %v1620 = vrot.slane %v1619, 1
      %v1621 = vadd.f32 %v1619, %v1620
      %p1622 = scmp.eq.s32.totalorder %s22, 0
      // Predicated region
      $region33: #{up_layer_forward.5} parent=31 // pred_check
        %p1623 = pneg %p1622
      $region34: #{up_layer_forward.5} parent=31 // pred_check_branch
        %1625 = sbr.rel (%p1623) target = $region36
      $region35: #{up_layer_forward.5} parent=31 // pred_region
        %1626 = vst [vmem:[%s264] sm:$0xff] 0.0
        %1627 = vst [vmem:[%s268] sm:$0xff] 0.0
      $region36: #{up_layer_forward.5} parent=31 // pred_fallthru
        _
      %v1628 = vld [vmem:[%s264] sm:$0xff]
      %v1629 = vadd.f32 %v1628, %v1552
      %1630 = vst [vmem:[%s264] sm:$0xff] %v1629
      %v1631 = vld [vmem:[%s268] sm:$0xff]
      %v1632 = vadd.f32 %v1631, %v1621
      %1633 = vst [vmem:[%s268] sm:$0xff] %v1632
      %s1634 = smul.u32 32, %s22
      %p1635 = scmp.lt.s32.totalorder %s21, 1
      %s1636 = scalar_select %p1635, %s21, 1
      %p1637 = scmp.lt.s32.totalorder %s1634, 31
      %s1638 = scalar_select %p1637, %s1634, 31
      %s1639 = smul.addr %s1636, 32
      %s1640 = sadd.s32 %s1638, %s1639
      %s1641 = smul.addr %s1640, 4
      %s1642 = scalar_lea.vmem %s3, %s1641
      %p1643 = scmp.lt.s32.totalorder %s21, 1
      %s1644 = scalar_select %p1643, %s21, 1
      %s1645 = smul.addr %s1644, 8
      %s1646 = scalar_lea.vmem %s4, %s1645
      %p1647 = scmp.lt.s32.totalorder %s21, 1
      %s1648 = scalar_select %p1647, %s21, 1
      %s1649 = smul.addr %s1648, 8
      %s1650 = scalar_lea.vmem %s5, %s1649
      // Predicated region
      $region37: #{up_layer_forward.5} parent=31 // pred_check
        %p1651 = pneg %p117
      $region38: #{up_layer_forward.5} parent=31 // pred_check_branch
        %1653 = sbr.rel (%p1651) target = $region40
      $region39: #{up_layer_forward.5} parent=31 // pred_region
        %s1654 = smul.u32 32, %s22
      $region40: #{up_layer_forward.5} parent=31 // pred_fallthru
        _
      // Predicated region
      $region41: #{up_layer_forward.5} parent=31 // pred_check
        %p1655 = pneg %p143
      $region42: #{up_layer_forward.5} parent=31 // pred_check_branch
        %1657 = sbr.rel (%p1655) target = $region44
      $region43: #{up_layer_forward.5} parent=31 // pred_region
        _
      $region44: #{up_layer_forward.5} parent=31 // pred_fallthru
        _
      // Predicated region
      $region45: #{up_layer_forward.5} parent=31 // pred_check
        %p1658 = pneg %p169
      $region46: #{up_layer_forward.5} parent=31 // pred_check_branch
        %1660 = sbr.rel (%p1658) target = $region48
      $region47: #{up_layer_forward.5} parent=31 // pred_region
        _
      $region48: #{up_layer_forward.5} parent=31 // pred_fallthru
        _
    $region32: #{up_layer_forward.5} parent=5 // pred_fallthru
      _
    %p1661 = scmp.le.s32.totalorder 2, %s12
    // Predicated region
    $region49: #{up_layer_forward.5} parent=5 // pred_check
      %p1662 = pneg %p1661
    $region50: #{up_layer_forward.5} parent=5 // pred_check_branch
      %1664 = sbr.rel (%p1662) target = $region52
    $region51: #{up_layer_forward.5} parent=5 // pred_region
      %s1665 = ssub.s32 %s12, 2
      // Predicated region
      $region53: #{up_layer_forward.5} parent=51 // pred_check
        %p1666 = pneg %p123
      $region54: #{up_layer_forward.5} parent=51 // pred_check_branch
        %1668 = sbr.rel (%p1666) target = $region56
      $region55: #{up_layer_forward.5} parent=51 // pred_region
        %s1669 = smul.u32 32, %s24
        %p1670 = scmp.lt.s32.totalorder %s23, 1
        %s1671 = scalar_select %p1670, %s23, 1
        %p1672 = scmp.lt.s32.totalorder %s1669, 31
        %s1673 = scalar_select %p1672, %s1669, 31
        %s1674 = smul.addr %s1671, 32
        %s1675 = sadd.s32 %s1673, %s1674
        %s1676 = smul.addr %s1675, 4
        %s1677 = scalar_lea.vmem %s3, %s1676
      $region56: #{up_layer_forward.5} parent=51 // pred_fallthru
        _
      // Predicated region
      $region57: #{up_layer_forward.5} parent=51 // pred_check
        %p1678 = pneg %p149
      $region58: #{up_layer_forward.5} parent=51 // pred_check_branch
        %1680 = sbr.rel (%p1678) target = $region60
      $region59: #{up_layer_forward.5} parent=51 // pred_region
        %p1681 = scmp.lt.s32.totalorder %s23, 1
        %s1682 = scalar_select %p1681, %s23, 1
        %s1683 = smul.addr %s1682, 8
        %s1684 = scalar_lea.vmem %s4, %s1683
      $region60: #{up_layer_forward.5} parent=51 // pred_fallthru
        _
      // Predicated region
      $region61: #{up_layer_forward.5} parent=51 // pred_check
        %p1685 = pneg %p175
      $region62: #{up_layer_forward.5} parent=51 // pred_check_branch
        %1687 = sbr.rel (%p1685) target = $region64
      $region63: #{up_layer_forward.5} parent=51 // pred_region
        %p1688 = scmp.lt.s32.totalorder %s23, 1
        %s1689 = scalar_select %p1688, %s23, 1
        %s1690 = smul.addr %s1689, 8
        %s1691 = scalar_lea.vmem %s5, %s1690
      $region64: #{up_layer_forward.5} parent=51 // pred_fallthru
        _
    $region52: #{up_layer_forward.5} parent=5 // pred_fallthru
      _
  $region6: #{up_layer_forward.5} parent=0 // loop_footer
    %s16 = sadd.s32 1, %s12
  $region7: #{up_layer_forward.5} parent=0 // loop_footer_branch
    %11 = sbr.rel target = $region3
  $region8: #{up_layer_forward.5} parent=0 // loop_exit
    _

</llo_original>
